<compile_context>
chip_gen: v5e
topology: v5e:2x2
jax: 0.10.0
libtpu: 0.0.40
codegen_flags: <defaults>
</compile_context>

<pallas_src>
import jax
import jax.numpy as jnp
from jax.experimental import pallas as pl
from jax.experimental.pallas import tpu as pltpu

EPS = 1e-5  # nn.BatchNorm2d default eps


# ---------------------------------------------------------------------------
# Pass 1: 3x3 depthwise conv (stride=1, padding=1, groups=Cin, bias=False)
#         + per-tile partial BatchNorm1 statistics.  Grid over batch N.
# ---------------------------------------------------------------------------
def _depthwise_kernel(x_ref, w_ref, dw_ref, s_ref, q_ref):
    # x_ref : (1, H+2, W+2, Cin)  zero-padded input tile (one sample), NHWC
    # w_ref : (9, Cin)            depthwise taps, row k = ki*3 + kj
    # dw_ref: (1, H*W, Cin)       depthwise output rows
    # s_ref, q_ref: (1, 1, Cin)   per-tile sum / sum-of-squares (BN1 partials)
    x = x_ref[0]
    w = w_ref[...]
    Hp, Wp, C = x.shape
    H, W = Hp - 2, Wp - 2

    # TODO(synk): stride != 1 not implemented (module default stride=1).
    acc = jnp.zeros((H, W, C), jnp.float32)
    for k in range(9):
        ki, kj = k // 3, k % 3
        # ki shifts the outer dim, kj shifts sublanes -- no lane shuffles.
        # TODO(synk): at production sizes fold the ki shift into the grid /
        # BlockSpec index_map so the DMA performs it instead of in-VMEM slices.
        acc = acc + x[ki:ki + H, kj:kj + W, :] * w[k].reshape(1, 1, C)

    dw = acc.reshape(H * W, C)           # channels stay on lanes
    dw_ref[0] = dw
    s_ref[0] = jnp.sum(dw, axis=0, keepdims=True)
    q_ref[0] = jnp.sum(dw * dw, axis=0, keepdims=True)


# ---------------------------------------------------------------------------
# Pass 2: BN1 apply + ReLU6 + 1x1 pointwise conv as one plain (Cin, Cout) MXU
#         matmul over a tile of rows, + per-tile partial BN2 statistics.
# ---------------------------------------------------------------------------
def _pointwise_kernel(h_ref, sc_ref, sh_ref, w_ref, y_ref, s_ref, q_ref):
    # h_ref : (tile_m, Cin) depthwise output rows
    # sc/sh : (1, Cin)      folded BN1 scale / shift
    # w_ref : (Cin, Cout)   pointwise weight
    # y_ref : (tile_m, Cout); s_ref/q_ref: (1, 1, Cout) BN2 partials
    h = jnp.clip(h_ref[...] * sc_ref[...] + sh_ref[...], 0.0, 6.0)
    y = jnp.dot(h, w_ref[...], preferred_element_type=jnp.float32,
                precision=jax.lax.Precision.HIGHEST)
    y_ref[...] = y
    s_ref[0] = jnp.sum(y, axis=0, keepdims=True)
    q_ref[0] = jnp.sum(y * y, axis=0, keepdims=True)


# ---------------------------------------------------------------------------
# Pass 3: BN2 apply + ReLU6 over row tiles.
# ---------------------------------------------------------------------------
def _bn2_relu6_kernel(y_ref, sc_ref, sh_ref, o_ref):
    o_ref[...] = jnp.clip(y_ref[...] * sc_ref[...] + sh_ref[...], 0.0, 6.0)


def _row_tile(m):
    # >=256 rows fills the MXU M dim on v6e/v7x (>=128 on v5e); keep >=2 grid
    # steps so the "parallel" axis can shard across v7x's two TensorCores.
    for t in (512, 256, 128):
        if m % t == 0 and m // t >= 2:
            return t
    return m


@jax.jit
def depthwise_separable_conv(x_nchw, dw_weight, gamma1, beta1, pw_weight,
                             gamma2, beta2):
    """Forward of the MobileNet DepthwiseSeparableConv block (training-mode BN).

    x_nchw: (N, Cin, H, W); dw_weight: (Cin, 1, 3, 3); pw_weight: (Cout, Cin, 1, 1).
    Returns (N, Cout, H, W).
    """
    N, Cin, H, W = x_nchw.shape
    Cout = pw_weight.shape[0]
    parallel = pltpu.CompilerParams(dimension_semantics=("parallel",))

    # NCHW -> NHWC (channels on lanes), zero-pad H/W by 1 (conv padding=1).
    x = jnp.transpose(x_nchw, (0, 2, 3, 1)).astype(jnp.float32)
    x = jnp.pad(x, ((0, 0), (1, 1), (1, 1), (0, 0)))

    dw_w = jnp.transpose(dw_weight[:, 0], (1, 2, 0)).reshape(9, Cin).astype(jnp.float32)
    pw_w = jnp.transpose(pw_weight[:, :, 0, 0], (1, 0)).astype(jnp.float32)   # (Cin, Cout)

    # ---- pass 1: depthwise conv + BN1 partial stats (grid over batch) ----
    dw_out, s1, q1 = pl.pallas_call(
        _depthwise_kernel,
        grid=(N,),
        out_shape=(jax.ShapeDtypeStruct((N, H * W, Cin), jnp.float32),
                   jax.ShapeDtypeStruct((N, 1, Cin), jnp.float32),
                   jax.ShapeDtypeStruct((N, 1, Cin), jnp.float32)),
        in_specs=[pl.BlockSpec((1, H + 2, W + 2, Cin), lambda i: (i, 0, 0, 0)),
                  pl.BlockSpec((9, Cin), lambda i: (0, 0))],
        out_specs=(pl.BlockSpec((1, H * W, Cin), lambda i: (i, 0, 0)),
                   pl.BlockSpec((1, 1, Cin), lambda i: (i, 0, 0)),
                   pl.BlockSpec((1, 1, Cin), lambda i: (i, 0, 0))),
        compiler_params=parallel,
    )(x, dw_w)

    # BN1 finalize (tiny per-channel math in plain JAX between passes).
    # TODO(synk): eval-mode running_mean/var not implemented (training-mode
    # batch statistics, biased variance, as in PyTorch training forward).
    cnt = float(N * H * W)
    m1 = jnp.sum(s1, axis=(0, 1)) / cnt
    v1 = jnp.maximum(jnp.sum(q1, axis=(0, 1)) / cnt - m1 * m1, 0.0)
    sc1 = gamma1.astype(jnp.float32) * jax.lax.rsqrt(v1 + EPS)
    sh1 = beta1.astype(jnp.float32) - m1 * sc1

    # ---- pass 2: BN1 apply + ReLU6 + pointwise matmul + BN2 partials ----
    M = N * H * W
    tm = _row_tile(M)
    G = M // tm
    h_rows = dw_out.reshape(M, Cin)      # collapse leading dims; lanes unchanged
    y, s2, q2 = pl.pallas_call(
        _pointwise_kernel,
        grid=(G,),
        out_shape=(jax.ShapeDtypeStruct((M, Cout), jnp.float32),
                   jax.ShapeDtypeStruct((G, 1, Cout), jnp.float32),
                   jax.ShapeDtypeStruct((G, 1, Cout), jnp.float32)),
        in_specs=[pl.BlockSpec((tm, Cin), lambda i: (i, 0)),
                  pl.BlockSpec((1, Cin), lambda i: (0, 0)),
                  pl.BlockSpec((1, Cin), lambda i: (0, 0)),
                  pl.BlockSpec((Cin, Cout), lambda i: (0, 0))],
        out_specs=(pl.BlockSpec((tm, Cout), lambda i: (i, 0)),
                   pl.BlockSpec((1, 1, Cout), lambda i: (i, 0, 0)),
                   pl.BlockSpec((1, 1, Cout), lambda i: (i, 0, 0))),
        compiler_params=parallel,
    )(h_rows, sc1.reshape(1, Cin), sh1.reshape(1, Cin), pw_w)

    # BN2 finalize.
    m2 = jnp.sum(s2, axis=(0, 1)) / float(M)
    v2 = jnp.maximum(jnp.sum(q2, axis=(0, 1)) / float(M) - m2 * m2, 0.0)
    sc2 = gamma2.astype(jnp.float32) * jax.lax.rsqrt(v2 + EPS)
    sh2 = beta2.astype(jnp.float32) - m2 * sc2

    # ---- pass 3: BN2 apply + ReLU6 ----
    out_rows = pl.pallas_call(
        _bn2_relu6_kernel,
        grid=(G,),
        out_shape=jax.ShapeDtypeStruct((M, Cout), jnp.float32),
        in_specs=[pl.BlockSpec((tm, Cout), lambda i: (i, 0)),
                  pl.BlockSpec((1, Cout), lambda i: (0, 0)),
                  pl.BlockSpec((1, Cout), lambda i: (0, 0))],
        out_specs=pl.BlockSpec((tm, Cout), lambda i: (i, 0)),
        compiler_params=parallel,
    )(y, sc2.reshape(1, Cout), sh2.reshape(1, Cout))

    # Rows (NHWC order) -> NCHW to match the PyTorch module.  Returning NHWC
    # instead would avoid this full HBM relayout when the consumer allows it.
    return jnp.transpose(out_rows.reshape(N, H, W, Cout), (0, 3, 1, 2))


# ---------------------------------------------------------------------------
# Pure-JAX reference (same training-mode BN semantics) for a correctness check.
# ---------------------------------------------------------------------------
def _reference_forward(x_nchw, dw_weight, gamma1, beta1, pw_weight, gamma2, beta2):
    Cin = x_nchw.shape[1]
    x = jnp.transpose(x_nchw, (0, 2, 3, 1)).astype(jnp.float32)
    k_dw = jnp.transpose(dw_weight, (2, 3, 1, 0)).astype(jnp.float32)   # (3,3,1,Cin)
    y = jax.lax.conv_general_dilated(
        x, k_dw, window_strides=(1, 1), padding=((1, 1), (1, 1)),
        dimension_numbers=("NHWC", "HWIO", "NHWC"),
        feature_group_count=Cin, precision=jax.lax.Precision.HIGHEST)

    def bn_relu6(t, g, b):
        m = jnp.mean(t, axis=(0, 1, 2))
        v = jnp.mean((t - m) ** 2, axis=(0, 1, 2))
        return jnp.clip((t - m) * (g * jax.lax.rsqrt(v + EPS)) + b, 0.0, 6.0)

    y = bn_relu6(y, gamma1, beta1)
    k_pw = jnp.transpose(pw_weight, (2, 3, 1, 0)).astype(jnp.float32)   # (1,1,Cin,Cout)
    z = jax.lax.conv_general_dilated(
        y, k_pw, window_strides=(1, 1), padding="VALID",
        dimension_numbers=("NHWC", "HWIO", "NHWC"),
        precision=jax.lax.Precision.HIGHEST)
    z = bn_relu6(z, gamma2, beta2)
    return jnp.transpose(z, (0, 3, 1, 2))


if __name__ == "__main__":
    N, Cin, Cout, H, W = 2, 4, 8, 16, 16

    key = jax.random.PRNGKey(0)
    k_x, k_dw, k_pw, k_g1, k_b1, k_g2, k_b2 = jax.random.split(key, 7)

    x = jax.random.normal(k_x, (N, Cin, H, W), jnp.float32)
    dw_weight = jax.random.normal(k_dw, (Cin, 1, 3, 3), jnp.float32) * 0.2
    pw_weight = jax.random.normal(k_pw, (Cout, Cin, 1, 1), jnp.float32) * 0.2
    gamma1 = 1.0 + 0.1 * jax.random.normal(k_g1, (Cin,), jnp.float32)
    beta1 = 0.1 * jax.random.normal(k_b1, (Cin,), jnp.float32)
    gamma2 = 1.0 + 0.1 * jax.random.normal(k_g2, (Cout,), jnp.float32)
    beta2 = 0.1 * jax.random.normal(k_b2, (Cout,), jnp.float32)

    out = depthwise_separable_conv(x, dw_weight, gamma1, beta1,
                                   pw_weight, gamma2, beta2)
    out = jax.block_until_ready(out)

    assert out.shape == (N, Cout, H, W), out.shape
    assert bool(jnp.all(jnp.isfinite(out)))
    assert bool(jnp.all(out >= 0.0)) and bool(jnp.all(out <= 6.0))   # ReLU6 range

    ref = _reference_forward(x, dw_weight, gamma1, beta1, pw_weight, gamma2, beta2)
    max_err = float(jnp.max(jnp.abs(out - ref)))
    assert max_err < 2e-2, max_err   # f32 kernel vs f32 XLA reference

    print("KERNEL_OK")
</pallas_src>

<mosaic_0001>
module attributes {stable_mosaic.version = 11 : i64} {
  func.func @_depthwise_kernel(%arg0: i32, %arg1: memref<1x18x18x4xf32, #tpu.memory_space<vmem>>, %arg2: memref<9x4xf32, #tpu.memory_space<vmem>>, %arg3: memref<1x256x4xf32, #tpu.memory_space<vmem>>, %arg4: memref<1x1x4xf32, #tpu.memory_space<vmem>>, %arg5: memref<1x1x4xf32, #tpu.memory_space<vmem>>) attributes {dimension_semantics = [#tpu.dimension_semantics<parallel>], iteration_bounds = array<i64: 2>, scalar_prefetch = 0 : i64, scratch_operands = 0 : i64, tpu.core_type = #tpu.core_type<tc>, window_params = [{transform_indices = @transform_0, window_bounds = array<i64: 1, 18, 18, 4>}, {pipeline_mode = #tpu.pipeline_mode<synchronous>, transform_indices = @transform_1, window_bounds = array<i64: 9, 4>}, {transform_indices = @transform_2, window_bounds = array<i64: 1, 256, 4>}, {transform_indices = @transform_3, window_bounds = array<i64: 1, 1, 4>}, {transform_indices = @transform_4, window_bounds = array<i64: 1, 1, 4>}]} {
    %c0 = arith.constant 0 : index
    %c0_0 = arith.constant 0 : index
    %c0_1 = arith.constant 0 : index
    %c0_2 = arith.constant 0 : index
    %0 = vector.load %arg1[%c0, %c0_0, %c0_1, %c0_2] : memref<1x18x18x4xf32, #tpu.memory_space<vmem>>, vector<1x18x18x4xf32>
    %1 = vector.shape_cast %0 : vector<1x18x18x4xf32> to vector<18x18x4xf32>
    %c0_3 = arith.constant 0 : index
    %c0_4 = arith.constant 0 : index
    %2 = vector.load %arg2[%c0_3, %c0_4] : memref<9x4xf32, #tpu.memory_space<vmem>>, vector<9x4xf32>
    %cst = arith.constant 0.000000e+00 : f32
    %3 = vector.broadcast %cst : f32 to vector<16x16x4xf32>
    %4 = vector.extract_strided_slice %1 {offsets = [0, 0, 0], sizes = [16, 16, 4], strides = [1, 1, 1]} : vector<18x18x4xf32> to vector<16x16x4xf32>
    %5 = vector.extract_strided_slice %2 {offsets = [0, 0], sizes = [1, 4], strides = [1, 1]} : vector<9x4xf32> to vector<1x4xf32>
    %6 = vector.shape_cast %5 : vector<1x4xf32> to vector<4xf32>
    %7 = vector.shape_cast %6 : vector<4xf32> to vector<1x1x4xf32>
    %8 = vector.broadcast %7 : vector<1x1x4xf32> to vector<16x16x4xf32>
    %9 = arith.mulf %4, %8 : vector<16x16x4xf32>
    %10 = arith.addf %3, %9 : vector<16x16x4xf32>
    %11 = vector.extract_strided_slice %1 {offsets = [0, 1, 0], sizes = [16, 16, 4], strides = [1, 1, 1]} : vector<18x18x4xf32> to vector<16x16x4xf32>
    %12 = vector.extract_strided_slice %2 {offsets = [1, 0], sizes = [1, 4], strides = [1, 1]} : vector<9x4xf32> to vector<1x4xf32>
    %13 = vector.shape_cast %12 : vector<1x4xf32> to vector<4xf32>
    %14 = vector.shape_cast %13 : vector<4xf32> to vector<1x1x4xf32>
    %15 = vector.broadcast %14 : vector<1x1x4xf32> to vector<16x16x4xf32>
    %16 = arith.mulf %11, %15 : vector<16x16x4xf32>
    %17 = arith.addf %10, %16 : vector<16x16x4xf32>
    %18 = vector.extract_strided_slice %1 {offsets = [0, 2, 0], sizes = [16, 16, 4], strides = [1, 1, 1]} : vector<18x18x4xf32> to vector<16x16x4xf32>
    %19 = vector.extract_strided_slice %2 {offsets = [2, 0], sizes = [1, 4], strides = [1, 1]} : vector<9x4xf32> to vector<1x4xf32>
    %20 = vector.shape_cast %19 : vector<1x4xf32> to vector<4xf32>
    %21 = vector.shape_cast %20 : vector<4xf32> to vector<1x1x4xf32>
    %22 = vector.broadcast %21 : vector<1x1x4xf32> to vector<16x16x4xf32>
    %23 = arith.mulf %18, %22 : vector<16x16x4xf32>
    %24 = arith.addf %17, %23 : vector<16x16x4xf32>
    %25 = vector.extract_strided_slice %1 {offsets = [1, 0, 0], sizes = [16, 16, 4], strides = [1, 1, 1]} : vector<18x18x4xf32> to vector<16x16x4xf32>
    %26 = vector.extract_strided_slice %2 {offsets = [3, 0], sizes = [1, 4], strides = [1, 1]} : vector<9x4xf32> to vector<1x4xf32>
    %27 = vector.shape_cast %26 : vector<1x4xf32> to vector<4xf32>
    %28 = vector.shape_cast %27 : vector<4xf32> to vector<1x1x4xf32>
    %29 = vector.broadcast %28 : vector<1x1x4xf32> to vector<16x16x4xf32>
    %30 = arith.mulf %25, %29 : vector<16x16x4xf32>
    %31 = arith.addf %24, %30 : vector<16x16x4xf32>
    %32 = vector.extract_strided_slice %1 {offsets = [1, 1, 0], sizes = [16, 16, 4], strides = [1, 1, 1]} : vector<18x18x4xf32> to vector<16x16x4xf32>
    %33 = vector.extract_strided_slice %2 {offsets = [4, 0], sizes = [1, 4], strides = [1, 1]} : vector<9x4xf32> to vector<1x4xf32>
    %34 = vector.shape_cast %33 : vector<1x4xf32> to vector<4xf32>
    %35 = vector.shape_cast %34 : vector<4xf32> to vector<1x1x4xf32>
    %36 = vector.broadcast %35 : vector<1x1x4xf32> to vector<16x16x4xf32>
    %37 = arith.mulf %32, %36 : vector<16x16x4xf32>
    %38 = arith.addf %31, %37 : vector<16x16x4xf32>
    %39 = vector.extract_strided_slice %1 {offsets = [1, 2, 0], sizes = [16, 16, 4], strides = [1, 1, 1]} : vector<18x18x4xf32> to vector<16x16x4xf32>
    %40 = vector.extract_strided_slice %2 {offsets = [5, 0], sizes = [1, 4], strides = [1, 1]} : vector<9x4xf32> to vector<1x4xf32>
    %41 = vector.shape_cast %40 : vector<1x4xf32> to vector<4xf32>
    %42 = vector.shape_cast %41 : vector<4xf32> to vector<1x1x4xf32>
    %43 = vector.broadcast %42 : vector<1x1x4xf32> to vector<16x16x4xf32>
    %44 = arith.mulf %39, %43 : vector<16x16x4xf32>
    %45 = arith.addf %38, %44 : vector<16x16x4xf32>
    %46 = vector.extract_strided_slice %1 {offsets = [2, 0, 0], sizes = [16, 16, 4], strides = [1, 1, 1]} : vector<18x18x4xf32> to vector<16x16x4xf32>
    %47 = vector.extract_strided_slice %2 {offsets = [6, 0], sizes = [1, 4], strides = [1, 1]} : vector<9x4xf32> to vector<1x4xf32>
    %48 = vector.shape_cast %47 : vector<1x4xf32> to vector<4xf32>
    %49 = vector.shape_cast %48 : vector<4xf32> to vector<1x1x4xf32>
    %50 = vector.broadcast %49 : vector<1x1x4xf32> to vector<16x16x4xf32>
    %51 = arith.mulf %46, %50 : vector<16x16x4xf32>
    %52 = arith.addf %45, %51 : vector<16x16x4xf32>
    %53 = vector.extract_strided_slice %1 {offsets = [2, 1, 0], sizes = [16, 16, 4], strides = [1, 1, 1]} : vector<18x18x4xf32> to vector<16x16x4xf32>
    %54 = vector.extract_strided_slice %2 {offsets = [7, 0], sizes = [1, 4], strides = [1, 1]} : vector<9x4xf32> to vector<1x4xf32>
    %55 = vector.shape_cast %54 : vector<1x4xf32> to vector<4xf32>
    %56 = vector.shape_cast %55 : vector<4xf32> to vector<1x1x4xf32>
    %57 = vector.broadcast %56 : vector<1x1x4xf32> to vector<16x16x4xf32>
    %58 = arith.mulf %53, %57 : vector<16x16x4xf32>
    %59 = arith.addf %52, %58 : vector<16x16x4xf32>
    %60 = vector.extract_strided_slice %1 {offsets = [2, 2, 0], sizes = [16, 16, 4], strides = [1, 1, 1]} : vector<18x18x4xf32> to vector<16x16x4xf32>
    %61 = vector.extract_strided_slice %2 {offsets = [8, 0], sizes = [1, 4], strides = [1, 1]} : vector<9x4xf32> to vector<1x4xf32>
    %62 = vector.shape_cast %61 : vector<1x4xf32> to vector<4xf32>
    %63 = vector.shape_cast %62 : vector<4xf32> to vector<1x1x4xf32>
    %64 = vector.broadcast %63 : vector<1x1x4xf32> to vector<16x16x4xf32>
    %65 = arith.mulf %60, %64 : vector<16x16x4xf32>
    %66 = arith.addf %59, %65 : vector<16x16x4xf32>
    %67 = vector.shape_cast %66 : vector<16x16x4xf32> to vector<256x4xf32>
    %c0_5 = arith.constant 0 : index
    %c0_6 = arith.constant 0 : index
    %c0_7 = arith.constant 0 : index
    %68 = vector.load %arg3[%c0_5, %c0_6, %c0_7] : memref<1x256x4xf32, #tpu.memory_space<vmem>>, vector<1x256x4xf32>
    %69 = vector.shape_cast %68 : vector<1x256x4xf32> to vector<256x4xf32>
    %70 = vector.shape_cast %67 : vector<256x4xf32> to vector<1x256x4xf32>
    tpu.vector_store %arg3[%c0_5, %c0_6, %c0_7], %70 {strides = array<i32>} : memref<1x256x4xf32, #tpu.memory_space<vmem>>, vector<1x256x4xf32>,
    %cst_8 = arith.constant dense<0.000000e+00> : vector<4xf32>
    %71 = vector.multi_reduction <add>, %67, %cst_8 [0] : vector<256x4xf32> to vector<4xf32>
    %72 = vector.shape_cast %71 : vector<4xf32> to vector<1x4xf32>
    %c0_9 = arith.constant 0 : index
    %c0_10 = arith.constant 0 : index
    %c0_11 = arith.constant 0 : index
    %73 = vector.load %arg4[%c0_9, %c0_10, %c0_11] : memref<1x1x4xf32, #tpu.memory_space<vmem>>, vector<1x1x4xf32>
    %74 = vector.shape_cast %73 : vector<1x1x4xf32> to vector<1x4xf32>
    %75 = vector.shape_cast %72 : vector<1x4xf32> to vector<1x1x4xf32>
    tpu.vector_store %arg4[%c0_9, %c0_10, %c0_11], %75 {strides = array<i32>} : memref<1x1x4xf32, #tpu.memory_space<vmem>>, vector<1x1x4xf32>,
    %76 = arith.mulf %67, %67 : vector<256x4xf32>
    %cst_12 = arith.constant dense<0.000000e+00> : vector<4xf32>
    %77 = vector.multi_reduction <add>, %76, %cst_12 [0] : vector<256x4xf32> to vector<4xf32>
    %78 = vector.shape_cast %77 : vector<4xf32> to vector<1x4xf32>
    %c0_13 = arith.constant 0 : index
    %c0_14 = arith.constant 0 : index
    %c0_15 = arith.constant 0 : index
    %79 = vector.load %arg5[%c0_13, %c0_14, %c0_15] : memref<1x1x4xf32, #tpu.memory_space<vmem>>, vector<1x1x4xf32>
    %80 = vector.shape_cast %79 : vector<1x1x4xf32> to vector<1x4xf32>
    %81 = vector.shape_cast %78 : vector<1x4xf32> to vector<1x1x4xf32>
    tpu.vector_store %arg5[%c0_13, %c0_14, %c0_15], %81 {strides = array<i32>} : memref<1x1x4xf32, #tpu.memory_space<vmem>>, vector<1x1x4xf32>,
    return
  }
  func.func @transform_0(%arg0: i32) -> (i32, i32, i32, i32) {
    %c0_i32 = arith.constant 0 : i32
    %c0_i32_0 = arith.constant 0 : i32
    %c0_i32_1 = arith.constant 0 : i32
    %c0_i32_2 = arith.constant 0 : i32
    return %arg0, %c0_i32, %c0_i32_0, %c0_i32_1 : i32, i32, i32, i32
  }
  func.func @transform_1(%arg0: i32) -> (i32, i32) {
    %c0_i32 = arith.constant 0 : i32
    %c0_i32_0 = arith.constant 0 : i32
    %c0_i32_1 = arith.constant 0 : i32
    return %c0_i32, %c0_i32_0 : i32, i32
  }
  func.func @transform_2(%arg0: i32) -> (i32, i32, i32) {
    %c0_i32 = arith.constant 0 : i32
    %c0_i32_0 = arith.constant 0 : i32
    %c0_i32_1 = arith.constant 0 : i32
    return %arg0, %c0_i32, %c0_i32_0 : i32, i32, i32
  }
  func.func @transform_3(%arg0: i32) -> (i32, i32, i32) {
    %c0_i32 = arith.constant 0 : i32
    %c0_i32_0 = arith.constant 0 : i32
    %c0_i32_1 = arith.constant 0 : i32
    return %arg0, %c0_i32, %c0_i32_0 : i32, i32, i32
  }
  func.func @transform_4(%arg0: i32) -> (i32, i32, i32) {
    %c0_i32 = arith.constant 0 : i32
    %c0_i32_0 = arith.constant 0 : i32
    %c0_i32_1 = arith.constant 0 : i32
    return %arg0, %c0_i32, %c0_i32_0 : i32, i32, i32
  }
}

module attributes {stable_mosaic.version = 11 : i64} {
  func.func @_pointwise_kernel(%arg0: i32, %arg1: memref<256x4xf32, #tpu.memory_space<vmem>>, %arg2: memref<1x4xf32, #tpu.memory_space<vmem>>, %arg3: memref<1x4xf32, #tpu.memory_space<vmem>>, %arg4: memref<4x8xf32, #tpu.memory_space<vmem>>, %arg5: memref<256x8xf32, #tpu.memory_space<vmem>>, %arg6: memref<1x1x8xf32, #tpu.memory_space<vmem>>, %arg7: memref<1x1x8xf32, #tpu.memory_space<vmem>>) attributes {dimension_semantics = [#tpu.dimension_semantics<parallel>], iteration_bounds = array<i64: 2>, scalar_prefetch = 0 : i64, scratch_operands = 0 : i64, tpu.core_type = #tpu.core_type<tc>, window_params = [{transform_indices = @transform_0, window_bounds = array<i64: 256, 4>}, {pipeline_mode = #tpu.pipeline_mode<synchronous>, transform_indices = @transform_1, window_bounds = array<i64: 1, 4>}, {pipeline_mode = #tpu.pipeline_mode<synchronous>, transform_indices = @transform_2, window_bounds = array<i64: 1, 4>}, {pipeline_mode = #tpu.pipeline_mode<synchronous>, transform_indices = @transform_3, window_bounds = array<i64: 4, 8>}, {transform_indices = @transform_4, window_bounds = array<i64: 256, 8>}, {transform_indices = @transform_5, window_bounds = array<i64: 1, 1, 8>}, {transform_indices = @transform_6, window_bounds = array<i64: 1, 1, 8>}]} {
    %c0 = arith.constant 0 : index
    %c0_0 = arith.constant 0 : index
    %0 = vector.load %arg1[%c0, %c0_0] : memref<256x4xf32, #tpu.memory_space<vmem>>, vector<256x4xf32>
    %c0_1 = arith.constant 0 : index
    %c0_2 = arith.constant 0 : index
    %1 = vector.load %arg2[%c0_1, %c0_2] : memref<1x4xf32, #tpu.memory_space<vmem>>, vector<1x4xf32>
    %2 = vector.broadcast %1 : vector<1x4xf32> to vector<256x4xf32>
    %3 = arith.mulf %0, %2 : vector<256x4xf32>
    %c0_3 = arith.constant 0 : index
    %c0_4 = arith.constant 0 : index
    %4 = vector.load %arg3[%c0_3, %c0_4] : memref<1x4xf32, #tpu.memory_space<vmem>>, vector<1x4xf32>
    %5 = vector.broadcast %4 : vector<1x4xf32> to vector<256x4xf32>
    %6 = arith.addf %3, %5 : vector<256x4xf32>
    %cst = arith.constant 0.000000e+00 : f32
    %cst_5 = arith.constant 6.000000e+00 : f32
    %7 = vector.broadcast %cst : f32 to vector<256x4xf32>
    %8 = arith.maximumf %7, %6 : vector<256x4xf32>
    %9 = vector.broadcast %cst_5 : f32 to vector<256x4xf32>
    %10 = arith.minimumf %9, %8 : vector<256x4xf32>
    %c0_6 = arith.constant 0 : index
    %c0_7 = arith.constant 0 : index
    %11 = vector.load %arg4[%c0_6, %c0_7] : memref<4x8xf32, #tpu.memory_space<vmem>>, vector<4x8xf32>
    %cst_8 = arith.constant dense<0.000000e+00> : vector<256x8xf32>
    %12 = tpu.matmul %10, %11, %cst_8 {dimension_numbers = #tpu.dot_dimension_numbers<[1], [0], [0], [1], [0, 0, 1, 1], [], []>, precision = #tpu.contract_precision<fp32>} : vector<256x4xf32>, vector<4x8xf32>, vector<256x8xf32> -> vector<256x8xf32>
    %c0_9 = arith.constant 0 : index
    %c0_10 = arith.constant 0 : index
    %13 = vector.load %arg5[%c0_9, %c0_10] : memref<256x8xf32, #tpu.memory_space<vmem>>, vector<256x8xf32>
    tpu.vector_store %arg5[%c0_9, %c0_10], %12 {strides = array<i32>} : memref<256x8xf32, #tpu.memory_space<vmem>>, vector<256x8xf32>,
    %cst_11 = arith.constant dense<0.000000e+00> : vector<8xf32>
    %14 = vector.multi_reduction <add>, %12, %cst_11 [0] : vector<256x8xf32> to vector<8xf32>
    %15 = vector.shape_cast %14 : vector<8xf32> to vector<1x8xf32>
    %c0_12 = arith.constant 0 : index
    %c0_13 = arith.constant 0 : index
    %c0_14 = arith.constant 0 : index
    %16 = vector.load %arg6[%c0_12, %c0_13, %c0_14] : memref<1x1x8xf32, #tpu.memory_space<vmem>>, vector<1x1x8xf32>
    %17 = vector.shape_cast %16 : vector<1x1x8xf32> to vector<1x8xf32>
    %18 = vector.shape_cast %15 : vector<1x8xf32> to vector<1x1x8xf32>
    tpu.vector_store %arg6[%c0_12, %c0_13, %c0_14], %18 {strides = array<i32>} : memref<1x1x8xf32, #tpu.memory_space<vmem>>, vector<1x1x8xf32>,
    %19 = arith.mulf %12, %12 : vector<256x8xf32>
    %cst_15 = arith.constant dense<0.000000e+00> : vector<8xf32>
    %20 = vector.multi_reduction <add>, %19, %cst_15 [0] : vector<256x8xf32> to vector<8xf32>
    %21 = vector.shape_cast %20 : vector<8xf32> to vector<1x8xf32>
    %c0_16 = arith.constant 0 : index
    %c0_17 = arith.constant 0 : index
    %c0_18 = arith.constant 0 : index
    %22 = vector.load %arg7[%c0_16, %c0_17, %c0_18] : memref<1x1x8xf32, #tpu.memory_space<vmem>>, vector<1x1x8xf32>
    %23 = vector.shape_cast %22 : vector<1x1x8xf32> to vector<1x8xf32>
    %24 = vector.shape_cast %21 : vector<1x8xf32> to vector<1x1x8xf32>
    tpu.vector_store %arg7[%c0_16, %c0_17, %c0_18], %24 {strides = array<i32>} : memref<1x1x8xf32, #tpu.memory_space<vmem>>, vector<1x1x8xf32>,
    return
  }
  func.func @transform_0(%arg0: i32) -> (i32, i32) {
    %c0_i32 = arith.constant 0 : i32
    %c0_i32_0 = arith.constant 0 : i32
    return %arg0, %c0_i32 : i32, i32
  }
  func.func @transform_1(%arg0: i32) -> (i32, i32) {
    %c0_i32 = arith.constant 0 : i32
    %c0_i32_0 = arith.constant 0 : i32
    %c0_i32_1 = arith.constant 0 : i32
    return %c0_i32, %c0_i32_0 : i32, i32
  }
  func.func @transform_2(%arg0: i32) -> (i32, i32) {
    %c0_i32 = arith.constant 0 : i32
    %c0_i32_0 = arith.constant 0 : i32
    %c0_i32_1 = arith.constant 0 : i32
    return %c0_i32, %c0_i32_0 : i32, i32
  }
  func.func @transform_3(%arg0: i32) -> (i32, i32) {
    %c0_i32 = arith.constant 0 : i32
    %c0_i32_0 = arith.constant 0 : i32
    %c0_i32_1 = arith.constant 0 : i32
    return %c0_i32, %c0_i32_0 : i32, i32
  }
  func.func @transform_4(%arg0: i32) -> (i32, i32) {
    %c0_i32 = arith.constant 0 : i32
    %c0_i32_0 = arith.constant 0 : i32
    return %arg0, %c0_i32 : i32, i32
  }
  func.func @transform_5(%arg0: i32) -> (i32, i32, i32) {
    %c0_i32 = arith.constant 0 : i32
    %c0_i32_0 = arith.constant 0 : i32
    %c0_i32_1 = arith.constant 0 : i32
    return %arg0, %c0_i32, %c0_i32_0 : i32, i32, i32
  }
  func.func @transform_6(%arg0: i32) -> (i32, i32, i32) {
    %c0_i32 = arith.constant 0 : i32
    %c0_i32_0 = arith.constant 0 : i32
    %c0_i32_1 = arith.constant 0 : i32
    return %arg0, %c0_i32, %c0_i32_0 : i32, i32, i32
  }
}

module attributes {stable_mosaic.version = 11 : i64} {
  func.func @_bn2_relu6_kernel(%arg0: i32, %arg1: memref<256x8xf32, #tpu.memory_space<vmem>>, %arg2: memref<1x8xf32, #tpu.memory_space<vmem>>, %arg3: memref<1x8xf32, #tpu.memory_space<vmem>>, %arg4: memref<256x8xf32, #tpu.memory_space<vmem>>) attributes {dimension_semantics = [#tpu.dimension_semantics<parallel>], iteration_bounds = array<i64: 2>, scalar_prefetch = 0 : i64, scratch_operands = 0 : i64, tpu.core_type = #tpu.core_type<tc>, window_params = [{transform_indices = @transform_0, window_bounds = array<i64: 256, 8>}, {pipeline_mode = #tpu.pipeline_mode<synchronous>, transform_indices = @transform_1, window_bounds = array<i64: 1, 8>}, {pipeline_mode = #tpu.pipeline_mode<synchronous>, transform_indices = @transform_2, window_bounds = array<i64: 1, 8>}, {transform_indices = @transform_3, window_bounds = array<i64: 256, 8>}]} {
    %c0 = arith.constant 0 : index
    %c0_0 = arith.constant 0 : index
    %0 = vector.load %arg1[%c0, %c0_0] : memref<256x8xf32, #tpu.memory_space<vmem>>, vector<256x8xf32>
    %c0_1 = arith.constant 0 : index
    %c0_2 = arith.constant 0 : index
    %1 = vector.load %arg2[%c0_1, %c0_2] : memref<1x8xf32, #tpu.memory_space<vmem>>, vector<1x8xf32>
    %2 = vector.broadcast %1 : vector<1x8xf32> to vector<256x8xf32>
    %3 = arith.mulf %0, %2 : vector<256x8xf32>
    %c0_3 = arith.constant 0 : index
    %c0_4 = arith.constant 0 : index
    %4 = vector.load %arg3[%c0_3, %c0_4] : memref<1x8xf32, #tpu.memory_space<vmem>>, vector<1x8xf32>
    %5 = vector.broadcast %4 : vector<1x8xf32> to vector<256x8xf32>
    %6 = arith.addf %3, %5 : vector<256x8xf32>
    %cst = arith.constant 0.000000e+00 : f32
    %cst_5 = arith.constant 6.000000e+00 : f32
    %7 = vector.broadcast %cst : f32 to vector<256x8xf32>
    %8 = arith.maximumf %7, %6 : vector<256x8xf32>
    %9 = vector.broadcast %cst_5 : f32 to vector<256x8xf32>
    %10 = arith.minimumf %9, %8 : vector<256x8xf32>
    %c0_6 = arith.constant 0 : index
    %c0_7 = arith.constant 0 : index
    %11 = vector.load %arg4[%c0_6, %c0_7] : memref<256x8xf32, #tpu.memory_space<vmem>>, vector<256x8xf32>
    tpu.vector_store %arg4[%c0_6, %c0_7], %10 {strides = array<i32>} : memref<256x8xf32, #tpu.memory_space<vmem>>, vector<256x8xf32>,
    return
  }
  func.func @transform_0(%arg0: i32) -> (i32, i32) {
    %c0_i32 = arith.constant 0 : i32
    %c0_i32_0 = arith.constant 0 : i32
    return %arg0, %c0_i32 : i32, i32
  }
  func.func @transform_1(%arg0: i32) -> (i32, i32) {
    %c0_i32 = arith.constant 0 : i32
    %c0_i32_0 = arith.constant 0 : i32
    %c0_i32_1 = arith.constant 0 : i32
    return %c0_i32, %c0_i32_0 : i32, i32
  }
  func.func @transform_2(%arg0: i32) -> (i32, i32) {
    %c0_i32 = arith.constant 0 : i32
    %c0_i32_0 = arith.constant 0 : i32
    %c0_i32_1 = arith.constant 0 : i32
    return %c0_i32, %c0_i32_0 : i32, i32
  }
  func.func @transform_3(%arg0: i32) -> (i32, i32) {
    %c0_i32 = arith.constant 0 : i32
    %c0_i32_0 = arith.constant 0 : i32
    return %arg0, %c0_i32 : i32, i32
  }
}

</mosaic_0001>

<llo_original>
// kernel: depthwise_separable_conv.5
$region0: #{depthwise_separable_conv.5}
  #allocation0 [shape = 'u32[]', space=smem, size = 0x4, offset = 0x4, fixed_abs, tag = 'smem constant byte address 0x4 - core index']
  #allocation1 [shape = 'u32[72,128]{1,0:T(1,128)}', space=vmem, size = 0x9000, scoped, tag = 'internal scratch']
  %s0 = inlined_call_operand.vmem [shape: f32[512,8], index: 0, kind: input, shape index: {}]
  %s1 = inlined_call_operand.vmem [shape: f32[1,8], index: 1, kind: input, shape index: {}]
  %s2 = inlined_call_operand.vmem [shape: f32[1,8], index: 2, kind: input, shape index: {}]
  %s3 = inlined_call_operand.vmem [shape: f32[512,8], index: 3, kind: output, shape index: {}]
  %s4 = sld [smem:[#allocation0]]
  $region45: #{depthwise_separable_conv.5} parent=0
    _
  %s6 = ssub.s32 1, %s4
  %s7 = scalar_select 0, %s6, %s4
  loop: start=0, step=1, limit=4
  $region2: #{depthwise_separable_conv.5} parent=0 // loop_pre_header
    _
  $region3: #{depthwise_separable_conv.5} parent=0 // loop_header
    %s9 = sphi 0, %s13
    %p10 = scmp.ge.s32.totalorder %s9, 4
    %s19 = sphi 0, %s21
    %s22 = sphi 0, %s19
    %s23 = sphi 0, %s22
    %s39 = sphi 0, %s23
    %s43 = sphi 0, %s43
    %s45 = sphi 0, %s43
    %s46 = sphi 0, %s45
    %s60 = sphi 0, %s46
    %s64 = sphi 0, %s64
    %s66 = sphi 0, %s64
    %s67 = sphi 0, %s66
    %s81 = sphi 0, %s67
    %s87 = sphi 0, %s89
    %s90 = sphi 0, %s87
    %s91 = sphi 0, %s90
    %s107 = sphi 0, %s91
  $region4: #{depthwise_separable_conv.5} parent=0 // loop_header_branch
    %12 = sbr.rel (%p10) target = $region8
  $region5: #{depthwise_separable_conv.5} parent=0 // loop_body
    %s14 = ssub.s32 %s9, 1
    %s15 = ssub.s32 %s9, 2
    %s16 = sadd.s32 %s9, 1
    %s17 = ssub.s32 %s9, %s16
    %p18 = scmp.eq.s32.totalorder %s17, 0
    %s20 = sadd.s32 %s19, 1
    %s21 = scalar_select %p18, %s19, %s20
    %p24 = pneg %p18
    %p25 = scmp.eq.s32.totalorder %s9, 1
    %p26 = por %p24, %p25
    %p27 = scmp.ne.s32.totalorder %s19, %s22
    %p28 = scmp.eq.s32.totalorder %s9, 0
    %p29 = por %p27, %p28
    %p30 = scmp.ne.s32.totalorder %s19, %s22
    %p31 = scmp.eq.s32.totalorder %s14, 1
    %p32 = por %p30, %p31
    %p33 = scmp.ne.s32.totalorder %s22, %s23
    %p34 = scmp.eq.s32.totalorder %s14, 0
    %p35 = por %p33, %p34
    %p36 = scmp.ne.s32.totalorder %s22, %s23
    %p37 = scmp.eq.s32.totalorder %s15, 1
    %p38 = por %p36, %p37
    %p40 = scmp.ne.s32.totalorder %s23, %s39
    %p41 = scmp.eq.s32.totalorder %s15, 0
    %p42 = por %p40, %p41
    %s44 = sadd.s32 %s43, 1
    %p47 = scmp.eq.s32.totalorder %s9, 1
    %p48 = scmp.ne.s32.totalorder %s43, %s45
    %p49 = scmp.eq.s32.totalorder %s9, 0
    %p50 = por %p48, %p49
    %p51 = scmp.ne.s32.totalorder %s43, %s45
    %p52 = scmp.eq.s32.totalorder %s14, 1
    %p53 = por %p51, %p52
    %p54 = scmp.ne.s32.totalorder %s45, %s46
    %p55 = scmp.eq.s32.totalorder %s14, 0
    %p56 = por %p54, %p55
    %p57 = scmp.ne.s32.totalorder %s45, %s46
    %p58 = scmp.eq.s32.totalorder %s15, 1
    %p59 = por %p57, %p58
    %p61 = scmp.ne.s32.totalorder %s46, %s60
    %p62 = scmp.eq.s32.totalorder %s15, 0
    %p63 = por %p61, %p62
    %s65 = sadd.s32 %s64, 1
    %p68 = scmp.eq.s32.totalorder %s9, 1
    %p69 = scmp.ne.s32.totalorder %s64, %s66
    %p70 = scmp.eq.s32.totalorder %s9, 0
    %p71 = por %p69, %p70
    %p72 = scmp.ne.s32.totalorder %s64, %s66
    %p73 = scmp.eq.s32.totalorder %s14, 1
    %p74 = por %p72, %p73
    %p75 = scmp.ne.s32.totalorder %s66, %s67
    %p76 = scmp.eq.s32.totalorder %s14, 0
    %p77 = por %p75, %p76
    %p78 = scmp.ne.s32.totalorder %s66, %s67
    %p79 = scmp.eq.s32.totalorder %s15, 1
    %p80 = por %p78, %p79
    %p82 = scmp.ne.s32.totalorder %s67, %s81
    %p83 = scmp.eq.s32.totalorder %s15, 0
    %p84 = por %p82, %p83
    %s85 = ssub.s32 %s9, %s16
    %p86 = scmp.eq.s32.totalorder %s85, 0
    %s88 = sadd.s32 %s87, 1
    %s89 = scalar_select %p86, %s87, %s88
    %p92 = pneg %p86
    %p93 = scmp.eq.s32.totalorder %s9, 1
    %p94 = por %p92, %p93
    %p95 = scmp.ne.s32.totalorder %s87, %s90
    %p96 = scmp.eq.s32.totalorder %s9, 0
    %p97 = por %p95, %p96
    %p98 = scmp.ne.s32.totalorder %s87, %s90
    %p99 = scmp.eq.s32.totalorder %s14, 1
    %p100 = por %p98, %p99
    %p101 = scmp.ne.s32.totalorder %s90, %s91
    %p102 = scmp.eq.s32.totalorder %s14, 0
    %p103 = por %p101, %p102
    %p104 = scmp.ne.s32.totalorder %s90, %s91
    %p105 = scmp.eq.s32.totalorder %s15, 1
    %p106 = por %p104, %p105
    %p108 = scmp.ne.s32.totalorder %s91, %s107
    %p109 = scmp.eq.s32.totalorder %s15, 0
    %p110 = por %p108, %p109
    %p111 = scmp.le.s32.totalorder 1, %s9
    %p112 = scmp.lt.s32.totalorder %s9, 3
    %p113 = pnand %p111, %p112
    %p114 = pneg %p113
    // Predicated region
    $region9: #{depthwise_separable_conv.5} parent=5 // pred_check
      _
    $region10: #{depthwise_separable_conv.5} parent=5 // pred_check_branch
      %116 = sbr.rel (%p113) target = $region12
    $region11: #{depthwise_separable_conv.5} parent=5 // pred_region
      %s117 = ssub.s32 %s9, 1
      // Predicated region
      $region13: #{depthwise_separable_conv.5} parent=11 // pred_check
        %p118 = pneg %p56
      $region14: #{depthwise_separable_conv.5} parent=11 // pred_check_branch
        %120 = sbr.rel (%p118) target = $region16
      $region15: #{depthwise_separable_conv.5} parent=11 // pred_region
        _
      $region16: #{depthwise_separable_conv.5} parent=11 // pred_fallthru
        _
      // Predicated region
      $region17: #{depthwise_separable_conv.5} parent=11 // pred_check
        %p121 = pneg %p77
      $region18: #{depthwise_separable_conv.5} parent=11 // pred_check_branch
        %123 = sbr.rel (%p121) target = $region20
      $region19: #{depthwise_separable_conv.5} parent=11 // pred_region
        _
      $region20: #{depthwise_separable_conv.5} parent=11 // pred_fallthru
        _
    $region12: #{depthwise_separable_conv.5} parent=5 // pred_fallthru
      _
    %p124 = scmp.lt.s32.totalorder %s9, 2
    // Predicated region
    $region21: #{depthwise_separable_conv.5} parent=5 // pred_check
      %p125 = pneg %p124
    $region22: #{depthwise_separable_conv.5} parent=5 // pred_check_branch
      %127 = sbr.rel (%p125) target = $region24
    $region23: #{depthwise_separable_conv.5} parent=5 // pred_region
      // Predicated region
      $region25: #{depthwise_separable_conv.5} parent=23 // pred_check
        %p128 = pneg %p29
      $region26: #{depthwise_separable_conv.5} parent=23 // pred_check_branch
        %130 = sbr.rel (%p128) target = $region28
      $region27: #{depthwise_separable_conv.5} parent=23 // pred_region
        %s131 = smul.u32 32, %s9
        %p132 = scmp.lt.s32.totalorder %s131, 63
        %s133 = scalar_select %p132, %s131, 63
        %s134 = smul.addr %s133, 8
        %s135 = scalar_lea.vmem %s0, %s134
        %s136 = smul.u32 32, %s9
      $region28: #{depthwise_separable_conv.5} parent=23 // pred_fallthru
        _
    $region24: #{depthwise_separable_conv.5} parent=5 // pred_fallthru
      _
    %p137 = scmp.le.s32.totalorder 1, %s9
    %p138 = scmp.lt.s32.totalorder %s9, 3
    %p139 = pnand %p137, %p138
    %p140 = pneg %p139
    // Predicated region
    $region29: #{depthwise_separable_conv.5} parent=5 // pred_check
      _
    $region30: #{depthwise_separable_conv.5} parent=5 // pred_check_branch
      %142 = sbr.rel (%p139) target = $region32
    $region31: #{depthwise_separable_conv.5} parent=5 // pred_region
      %s143 = ssub.s32 %s9, 1
      %s144 = smul.u32 32, %s14
      %p145 = scmp.lt.s32.totalorder %s144, 63
      %s146 = scalar_select %p145, %s144, 63
      %s147 = smul.addr %s146, 8
      %s148 = scalar_lea.vmem %s0, %s147
      %p149 = pneg %p35
      %p150 = pneg %p32
      %p151 = pneg %p56
      %p152 = pneg %p53
      %p153 = pneg %p77
      %p154 = pneg %p74
      %p155 = pneg %p103
      %p156 = pneg %p100
      %s157 = smul.u32 32, %s14
      %p158 = scmp.lt.s32.totalorder %s157, 63
      %s159 = scalar_select %p158, %s157, 63
      %s160 = smul.addr %s159, 8
      %s161 = scalar_lea.vmem %s3, %s160
      %s162 = smul.u32 32, %s14
      %p163 = scmp.lt.s32.totalorder %s162, 63
      %s164 = scalar_select %p163, %s162, 63
      %s165 = smul.addr %s164, 8
      %s166 = scalar_lea.vmem %s0, %s165
      %s167 = smul.u32 32, %s14
      %s168 = smul.u32 32, %s14
      %p169 = scmp.lt.s32.totalorder %s168, 63
      %s170 = scalar_select %p169, %s168, 63
      %s171 = smul.addr %s170, 8
      %s172 = scalar_lea.vmem %s3, %s171
      %s173 = smul.u32 32, %s14
      %v174 = vld [vmem:[%s166] sm:$0xff]
      %v175 = vld [vmem:[%s166 + $0x8] sm:$0xff]
      %v176 = vld [vmem:[%s166 + $0x10] sm:$0xff]
      %v177 = vld [vmem:[%s166 + $0x18] sm:$0xff]
      %v178 = vld [vmem:[%s166 + $0x20] sm:$0xff]
      %v179 = vld [vmem:[%s166 + $0x28] sm:$0xff]
      %v180 = vld [vmem:[%s166 + $0x30] sm:$0xff]
      %v181 = vld [vmem:[%s166 + $0x38] sm:$0xff]
      %v182 = vld [vmem:[%s166 + $0x40] sm:$0xff]
      %v183 = vld [vmem:[%s166 + $0x48] sm:$0xff]
      %v184 = vld [vmem:[%s166 + $0x50] sm:$0xff]
      %v185 = vld [vmem:[%s166 + $0x58] sm:$0xff]
      %v186 = vld [vmem:[%s166 + $0x60] sm:$0xff]
      %v187 = vld [vmem:[%s166 + $0x68] sm:$0xff]
      %v188 = vld [vmem:[%s166 + $0x70] sm:$0xff]
      %v189 = vld [vmem:[%s166 + $0x78] sm:$0xff]
      %v190 = vld [vmem:[%s166 + $0x80] sm:$0xff]
      %v191 = vld [vmem:[%s166 + $0x88] sm:$0xff]
      %v192 = vld [vmem:[%s166 + $0x90] sm:$0xff]
      %v193 = vld [vmem:[%s166 + $0x98] sm:$0xff]
      %v194 = vld [vmem:[%s166 + $0xa0] sm:$0xff]
      %v195 = vld [vmem:[%s166 + $0xa8] sm:$0xff]
      %v196 = vld [vmem:[%s166 + $0xb0] sm:$0xff]
      %v197 = vld [vmem:[%s166 + $0xb8] sm:$0xff]
      %v198 = vld [vmem:[%s166 + $0xc0] sm:$0xff]
      %v199 = vld [vmem:[%s166 + $0xc8] sm:$0xff]
      %v200 = vld [vmem:[%s166 + $0xd0] sm:$0xff]
      %v201 = vld [vmem:[%s166 + $0xd8] sm:$0xff]
      %v202 = vld [vmem:[%s166 + $0xe0] sm:$0xff]
      %v203 = vld [vmem:[%s166 + $0xe8] sm:$0xff]
      %v204 = vld [vmem:[%s166 + $0xf0] sm:$0xff]
      %v205 = vld [vmem:[%s166 + $0xf8] sm:$0xff]
      %v206 = vld [vmem:[%s1] sm:$0x1]
      %v208 = vperm.slane %v206, 0
      %v210 = vmul.f32 %v174, %v208
      %v211 = vmul.f32 %v175, %v208
      %v212 = vmul.f32 %v176, %v208
      %v213 = vmul.f32 %v177, %v208
      %v214 = vmul.f32 %v178, %v208
      %v215 = vmul.f32 %v179, %v208
      %v216 = vmul.f32 %v180, %v208
      %v217 = vmul.f32 %v181, %v208
      %v218 = vmul.f32 %v182, %v208
      %v219 = vmul.f32 %v183, %v208
      %v220 = vmul.f32 %v184, %v208
      %v221 = vmul.f32 %v185, %v208
      %v222 = vmul.f32 %v186, %v208
      %v223 = vmul.f32 %v187, %v208
      %v224 = vmul.f32 %v188, %v208
      %v225 = vmul.f32 %v189, %v208
      %v226 = vmul.f32 %v190, %v208
      %v227 = vmul.f32 %v191, %v208
      %v228 = vmul.f32 %v192, %v208
      %v229 = vmul.f32 %v193, %v208
      %v230 = vmul.f32 %v194, %v208
      %v231 = vmul.f32 %v195, %v208
      %v232 = vmul.f32 %v196, %v208
      %v233 = vmul.f32 %v197, %v208
      %v234 = vmul.f32 %v198, %v208
      %v235 = vmul.f32 %v199, %v208
      %v236 = vmul.f32 %v200, %v208
      %v237 = vmul.f32 %v201, %v208
      %v238 = vmul.f32 %v202, %v208
      %v239 = vmul.f32 %v203, %v208
      %v240 = vmul.f32 %v204, %v208
      %v241 = vmul.f32 %v205, %v208
      %v242 = vld [vmem:[%s2] sm:$0x1]
      %v244 = vperm.slane %v242, 0
      %v246 = vadd.f32 %v210, %v244
      %v247 = vadd.f32 %v211, %v244
      %v248 = vadd.f32 %v212, %v244
      %v249 = vadd.f32 %v213, %v244
      %v250 = vadd.f32 %v214, %v244
      %v251 = vadd.f32 %v215, %v244
      %v252 = vadd.f32 %v216, %v244
      %v253 = vadd.f32 %v217, %v244
      %v254 = vadd.f32 %v218, %v244
      %v255 = vadd.f32 %v219, %v244
      %v256 = vadd.f32 %v220, %v244
      %v257 = vadd.f32 %v221, %v244
      %v258 = vadd.f32 %v222, %v244
      %v259 = vadd.f32 %v223, %v244
      %v260 = vadd.f32 %v224, %v244
      %v261 = vadd.f32 %v225, %v244
      %v262 = vadd.f32 %v226, %v244
      %v263 = vadd.f32 %v227, %v244
      %v264 = vadd.f32 %v228, %v244
      %v265 = vadd.f32 %v229, %v244
      %v266 = vadd.f32 %v230, %v244
      %v267 = vadd.f32 %v231, %v244
      %v268 = vadd.f32 %v232, %v244
      %v269 = vadd.f32 %v233, %v244
      %v270 = vadd.f32 %v234, %v244
      %v271 = vadd.f32 %v235, %v244
      %v272 = vadd.f32 %v236, %v244
      %v273 = vadd.f32 %v237, %v244
      %v274 = vadd.f32 %v238, %v244
      %v275 = vadd.f32 %v239, %v244
      %v276 = vadd.f32 %v240, %v244
      %v277 = vadd.f32 %v241, %v244
      %v278 = vmax.f32 %v246, 0.0
      %v279 = vmax.f32 %v247, 0.0
      %v280 = vmax.f32 %v248, 0.0
      %v281 = vmax.f32 %v249, 0.0
      %v282 = vmax.f32 %v250, 0.0
      %v283 = vmax.f32 %v251, 0.0
      %v284 = vmax.f32 %v252, 0.0
      %v285 = vmax.f32 %v253, 0.0
      %v286 = vmax.f32 %v254, 0.0
      %v287 = vmax.f32 %v255, 0.0
      %v288 = vmax.f32 %v256, 0.0
      %v289 = vmax.f32 %v257, 0.0
      %v290 = vmax.f32 %v258, 0.0
      %v291 = vmax.f32 %v259, 0.0
      %v292 = vmax.f32 %v260, 0.0
      %v293 = vmax.f32 %v261, 0.0
      %v294 = vmax.f32 %v262, 0.0
      %v295 = vmax.f32 %v263, 0.0
      %v296 = vmax.f32 %v264, 0.0
      %v297 = vmax.f32 %v265, 0.0
      %v298 = vmax.f32 %v266, 0.0
      %v299 = vmax.f32 %v267, 0.0
      %v300 = vmax.f32 %v268, 0.0
      %v301 = vmax.f32 %v269, 0.0
      %v302 = vmax.f32 %v270, 0.0
      %v303 = vmax.f32 %v271, 0.0
      %v304 = vmax.f32 %v272, 0.0
      %v305 = vmax.f32 %v273, 0.0
      %v306 = vmax.f32 %v274, 0.0
      %v307 = vmax.f32 %v275, 0.0
      %v308 = vmax.f32 %v276, 0.0
      %v309 = vmax.f32 %v277, 0.0
      %v310 = vmin.f32 %v278, 6.0
      %v311 = vmin.f32 %v279, 6.0
      %v312 = vmin.f32 %v280, 6.0
      %v313 = vmin.f32 %v281, 6.0
      %v314 = vmin.f32 %v282, 6.0
      %v315 = vmin.f32 %v283, 6.0
      %v316 = vmin.f32 %v284, 6.0
      %v317 = vmin.f32 %v285, 6.0
      %v318 = vmin.f32 %v286, 6.0
      %v319 = vmin.f32 %v287, 6.0
      %v320 = vmin.f32 %v288, 6.0
      %v321 = vmin.f32 %v289, 6.0
      %v322 = vmin.f32 %v290, 6.0
      %v323 = vmin.f32 %v291, 6.0
      %v324 = vmin.f32 %v292, 6.0
      %v325 = vmin.f32 %v293, 6.0
      %v326 = vmin.f32 %v294, 6.0
      %v327 = vmin.f32 %v295, 6.0
      %v328 = vmin.f32 %v296, 6.0
      %v329 = vmin.f32 %v297, 6.0
      %v330 = vmin.f32 %v298, 6.0
      %v331 = vmin.f32 %v299, 6.0
      %v332 = vmin.f32 %v300, 6.0
      %v333 = vmin.f32 %v301, 6.0
      %v334 = vmin.f32 %v302, 6.0
      %v335 = vmin.f32 %v303, 6.0
      %v336 = vmin.f32 %v304, 6.0
      %v337 = vmin.f32 %v305, 6.0
      %v338 = vmin.f32 %v306, 6.0
      %v339 = vmin.f32 %v307, 6.0
      %v340 = vmin.f32 %v308, 6.0
      %v341 = vmin.f32 %v309, 6.0
      %vm342 = vcmask 64512
      %343 = vst.msk [vmem:[%s172] sm:$0xff] %vm342, %v310
      %344 = vst.msk [vmem:[%s172 + $0x8] sm:$0xff] %vm342, %v311
      %345 = vst.msk [vmem:[%s172 + $0x10] sm:$0xff] %vm342, %v312
      %346 = vst.msk [vmem:[%s172 + $0x18] sm:$0xff] %vm342, %v313
      %347 = vst.msk [vmem:[%s172 + $0x20] sm:$0xff] %vm342, %v314
      %348 = vst.msk [vmem:[%s172 + $0x28] sm:$0xff] %vm342, %v315
      %349 = vst.msk [vmem:[%s172 + $0x30] sm:$0xff] %vm342, %v316
      %350 = vst.msk [vmem:[%s172 + $0x38] sm:$0xff] %vm342, %v317
      %351 = vst.msk [vmem:[%s172 + $0x40] sm:$0xff] %vm342, %v318
      %352 = vst.msk [vmem:[%s172 + $0x48] sm:$0xff] %vm342, %v319
      %353 = vst.msk [vmem:[%s172 + $0x50] sm:$0xff] %vm342, %v320
      %354 = vst.msk [vmem:[%s172 + $0x58] sm:$0xff] %vm342, %v321
      %355 = vst.msk [vmem:[%s172 + $0x60] sm:$0xff] %vm342, %v322
      %356 = vst.msk [vmem:[%s172 + $0x68] sm:$0xff] %vm342, %v323
      %357 = vst.msk [vmem:[%s172 + $0x70] sm:$0xff] %vm342, %v324
      %358 = vst.msk [vmem:[%s172 + $0x78] sm:$0xff] %vm342, %v325
      %359 = vst.msk [vmem:[%s172 + $0x80] sm:$0xff] %vm342, %v326
      %360 = vst.msk [vmem:[%s172 + $0x88] sm:$0xff] %vm342, %v327
      %361 = vst.msk [vmem:[%s172 + $0x90] sm:$0xff] %vm342, %v328
      %362 = vst.msk [vmem:[%s172 + $0x98] sm:$0xff] %vm342, %v329
      %363 = vst.msk [vmem:[%s172 + $0xa0] sm:$0xff] %vm342, %v330
      %364 = vst.msk [vmem:[%s172 + $0xa8] sm:$0xff] %vm342, %v331
      %365 = vst.msk [vmem:[%s172 + $0xb0] sm:$0xff] %vm342, %v332
      %366 = vst.msk [vmem:[%s172 + $0xb8] sm:$0xff] %vm342, %v333
      %367 = vst.msk [vmem:[%s172 + $0xc0] sm:$0xff] %vm342, %v334
      %368 = vst.msk [vmem:[%s172 + $0xc8] sm:$0xff] %vm342, %v335
      %369 = vst.msk [vmem:[%s172 + $0xd0] sm:$0xff] %vm342, %v336
      %370 = vst.msk [vmem:[%s172 + $0xd8] sm:$0xff] %vm342, %v337
      %371 = vst.msk [vmem:[%s172 + $0xe0] sm:$0xff] %vm342, %v338
      %372 = vst.msk [vmem:[%s172 + $0xe8] sm:$0xff] %vm342, %v339
      %373 = vst.msk [vmem:[%s172 + $0xf0] sm:$0xff] %vm342, %v340
      %374 = vst.msk [vmem:[%s172 + $0xf8] sm:$0xff] %vm342, %v341
      %s375 = smul.u32 32, %s14
      %p376 = scmp.lt.s32.totalorder %s375, 63
      %s377 = scalar_select %p376, %s375, 63
      %s378 = smul.addr %s377, 8
      %s379 = scalar_lea.vmem %s3, %s378
      // Predicated region
      $region33: #{depthwise_separable_conv.5} parent=31 // pred_check
        %p380 = pneg %p100
      $region34: #{depthwise_separable_conv.5} parent=31 // pred_check_branch
        %382 = sbr.rel (%p380) target = $region36
      $region35: #{depthwise_separable_conv.5} parent=31 // pred_region
        %s383 = smul.u32 32, %s14
      $region36: #{depthwise_separable_conv.5} parent=31 // pred_fallthru
        _
    $region32: #{depthwise_separable_conv.5} parent=5 // pred_fallthru
      _
    %p384 = scmp.le.s32.totalorder 2, %s9
    // Predicated region
    $region37: #{depthwise_separable_conv.5} parent=5 // pred_check
      %p385 = pneg %p384
    $region38: #{depthwise_separable_conv.5} parent=5 // pred_check_branch
      %387 = sbr.rel (%p385) target = $region40
    $region39: #{depthwise_separable_conv.5} parent=5 // pred_region
      %s388 = ssub.s32 %s9, 2
      // Predicated region
      $region41: #{depthwise_separable_conv.5} parent=39 // pred_check
        %p389 = pneg %p106
      $region42: #{depthwise_separable_conv.5} parent=39 // pred_check_branch
        %391 = sbr.rel (%p389) target = $region44
      $region43: #{depthwise_separable_conv.5} parent=39 // pred_region
        %s392 = smul.u32 32, %s15
        %p393 = scmp.lt.s32.totalorder %s392, 63
        %s394 = scalar_select %p393, %s392, 63
        %s395 = smul.addr %s394, 8
        %s396 = scalar_lea.vmem %s3, %s395
      $region44: #{depthwise_separable_conv.5} parent=39 // pred_fallthru
        _
    $region40: #{depthwise_separable_conv.5} parent=5 // pred_fallthru
      _
  $region6: #{depthwise_separable_conv.5} parent=0 // loop_footer
    %s13 = sadd.s32 1, %s9
  $region7: #{depthwise_separable_conv.5} parent=0 // loop_footer_branch
    %8 = sbr.rel target = $region3
  $region8: #{depthwise_separable_conv.5} parent=0 // loop_exit
    _

// kernel: depthwise_separable_conv.4
$region0: #{depthwise_separable_conv.4}
  #allocation0 [shape = 'u32[]', space=smem, size = 0x4, offset = 0x4, fixed_abs, tag = 'smem constant byte address 0x4 - core index']
  #allocation1 [shape = 'u32[72,128]{1,0:T(1,128)}', space=vmem, size = 0x9000, scoped, tag = 'internal scratch']
  %s0 = inlined_call_operand.vmem [shape: f32[512,4], index: 0, kind: input, shape index: {}]
  %s1 = inlined_call_operand.vmem [shape: f32[1,4], index: 1, kind: input, shape index: {}]
  %s2 = inlined_call_operand.vmem [shape: f32[1,4], index: 2, kind: input, shape index: {}]
  %s3 = inlined_call_operand.vmem [shape: f32[4,8], index: 3, kind: input, shape index: {}]
  %s4 = inlined_call_operand.vmem [shape: f32[512,8], index: 4, kind: output, shape index: {0}]
  %s5 = inlined_call_operand.vmem [shape: f32[2,1,8], index: 5, kind: output, shape index: {1}]
  %s6 = inlined_call_operand.vmem [shape: f32[2,1,8], index: 6, kind: output, shape index: {2}]
  %7 = xla_tuple %s4, %s5, %s6
  %s8 = sld [smem:[#allocation0]]
  $region65: #{depthwise_separable_conv.4} parent=0
    _
  %s10 = ssub.s32 1, %s8
  %s11 = scalar_select 0, %s10, %s8
  loop: start=0, step=1, limit=4
  $region2: #{depthwise_separable_conv.4} parent=0 // loop_pre_header
    _
  $region3: #{depthwise_separable_conv.4} parent=0 // loop_header
    %s13 = sphi 0, %s17
    %p14 = scmp.ge.s32.totalorder %s13, 4
    %s23 = sphi 0, %s25
    %s26 = sphi 0, %s23
    %s27 = sphi 0, %s26
    %s43 = sphi 0, %s27
    %s47 = sphi 0, %s47
    %s49 = sphi 0, %s47
    %s50 = sphi 0, %s49
    %s64 = sphi 0, %s50
    %s68 = sphi 0, %s68
    %s70 = sphi 0, %s68
    %s71 = sphi 0, %s70
    %s85 = sphi 0, %s71
    %s89 = sphi 0, %s89
    %s91 = sphi 0, %s89
    %s92 = sphi 0, %s91
    %s106 = sphi 0, %s92
    %s112 = sphi 0, %s114
    %s115 = sphi 0, %s112
    %s116 = sphi 0, %s115
    %s132 = sphi 0, %s116
    %s138 = sphi 0, %s140
    %s141 = sphi 0, %s138
    %s142 = sphi 0, %s141
    %s158 = sphi 0, %s142
    %s164 = sphi 0, %s166
    %s167 = sphi 0, %s164
    %s168 = sphi 0, %s167
    %s184 = sphi 0, %s168
  $region4: #{depthwise_separable_conv.4} parent=0 // loop_header_branch
    %16 = sbr.rel (%p14) target = $region8
  $region5: #{depthwise_separable_conv.4} parent=0 // loop_body
    %s18 = ssub.s32 %s13, 1
    %s19 = ssub.s32 %s13, 2
    %s20 = sadd.s32 %s13, 1
    %s21 = ssub.s32 %s13, %s20
    %p22 = scmp.eq.s32.totalorder %s21, 0
    %s24 = sadd.s32 %s23, 1
    %s25 = scalar_select %p22, %s23, %s24
    %p28 = pneg %p22
    %p29 = scmp.eq.s32.totalorder %s13, 1
    %p30 = por %p28, %p29
    %p31 = scmp.ne.s32.totalorder %s23, %s26
    %p32 = scmp.eq.s32.totalorder %s13, 0
    %p33 = por %p31, %p32
    %p34 = scmp.ne.s32.totalorder %s23, %s26
    %p35 = scmp.eq.s32.totalorder %s18, 1
    %p36 = por %p34, %p35
    %p37 = scmp.ne.s32.totalorder %s26, %s27
    %p38 = scmp.eq.s32.totalorder %s18, 0
    %p39 = por %p37, %p38
    %p40 = scmp.ne.s32.totalorder %s26, %s27
    %p41 = scmp.eq.s32.totalorder %s19, 1
    %p42 = por %p40, %p41
    %p44 = scmp.ne.s32.totalorder %s27, %s43
    %p45 = scmp.eq.s32.totalorder %s19, 0
    %p46 = por %p44, %p45
    %s48 = sadd.s32 %s47, 1
    %p51 = scmp.eq.s32.totalorder %s13, 1
    %p52 = scmp.ne.s32.totalorder %s47, %s49
    %p53 = scmp.eq.s32.totalorder %s13, 0
    %p54 = por %p52, %p53
    %p55 = scmp.ne.s32.totalorder %s47, %s49
    %p56 = scmp.eq.s32.totalorder %s18, 1
    %p57 = por %p55, %p56
    %p58 = scmp.ne.s32.totalorder %s49, %s50
    %p59 = scmp.eq.s32.totalorder %s18, 0
    %p60 = por %p58, %p59
    %p61 = scmp.ne.s32.totalorder %s49, %s50
    %p62 = scmp.eq.s32.totalorder %s19, 1
    %p63 = por %p61, %p62
    %p65 = scmp.ne.s32.totalorder %s50, %s64
    %p66 = scmp.eq.s32.totalorder %s19, 0
    %p67 = por %p65, %p66
    %s69 = sadd.s32 %s68, 1
    %p72 = scmp.eq.s32.totalorder %s13, 1
    %p73 = scmp.ne.s32.totalorder %s68, %s70
    %p74 = scmp.eq.s32.totalorder %s13, 0
    %p75 = por %p73, %p74
    %p76 = scmp.ne.s32.totalorder %s68, %s70
    %p77 = scmp.eq.s32.totalorder %s18, 1
    %p78 = por %p76, %p77
    %p79 = scmp.ne.s32.totalorder %s70, %s71
    %p80 = scmp.eq.s32.totalorder %s18, 0
    %p81 = por %p79, %p80
    %p82 = scmp.ne.s32.totalorder %s70, %s71
    %p83 = scmp.eq.s32.totalorder %s19, 1
    %p84 = por %p82, %p83
    %p86 = scmp.ne.s32.totalorder %s71, %s85
    %p87 = scmp.eq.s32.totalorder %s19, 0
    %p88 = por %p86, %p87
    %s90 = sadd.s32 %s89, 1
    %p93 = scmp.eq.s32.totalorder %s13, 1
    %p94 = scmp.ne.s32.totalorder %s89, %s91
    %p95 = scmp.eq.s32.totalorder %s13, 0
    %p96 = por %p94, %p95
    %p97 = scmp.ne.s32.totalorder %s89, %s91
    %p98 = scmp.eq.s32.totalorder %s18, 1
    %p99 = por %p97, %p98
    %p100 = scmp.ne.s32.totalorder %s91, %s92
    %p101 = scmp.eq.s32.totalorder %s18, 0
    %p102 = por %p100, %p101
    %p103 = scmp.ne.s32.totalorder %s91, %s92
    %p104 = scmp.eq.s32.totalorder %s19, 1
    %p105 = por %p103, %p104
    %p107 = scmp.ne.s32.totalorder %s92, %s106
    %p108 = scmp.eq.s32.totalorder %s19, 0
    %p109 = por %p107, %p108
    %s110 = ssub.s32 %s13, %s20
    %p111 = scmp.eq.s32.totalorder %s110, 0
    %s113 = sadd.s32 %s112, 1
    %s114 = scalar_select %p111, %s112, %s113
    %p117 = pneg %p111
    %p118 = scmp.eq.s32.totalorder %s13, 1
    %p119 = por %p117, %p118
    %p120 = scmp.ne.s32.totalorder %s112, %s115
    %p121 = scmp.eq.s32.totalorder %s13, 0
    %p122 = por %p120, %p121
    %p123 = scmp.ne.s32.totalorder %s112, %s115
    %p124 = scmp.eq.s32.totalorder %s18, 1
    %p125 = por %p123, %p124
    %p126 = scmp.ne.s32.totalorder %s115, %s116
    %p127 = scmp.eq.s32.totalorder %s18, 0
    %p128 = por %p126, %p127
    %p129 = scmp.ne.s32.totalorder %s115, %s116
    %p130 = scmp.eq.s32.totalorder %s19, 1
    %p131 = por %p129, %p130
    %p133 = scmp.ne.s32.totalorder %s116, %s132
    %p134 = scmp.eq.s32.totalorder %s19, 0
    %p135 = por %p133, %p134
    %s136 = ssub.s32 %s13, %s20
    %p137 = scmp.eq.s32.totalorder %s136, 0
    %s139 = sadd.s32 %s138, 1
    %s140 = scalar_select %p137, %s138, %s139
    %p143 = pneg %p137
    %p144 = scmp.eq.s32.totalorder %s13, 1
    %p145 = por %p143, %p144
    %p146 = scmp.ne.s32.totalorder %s138, %s141
    %p147 = scmp.eq.s32.totalorder %s13, 0
    %p148 = por %p146, %p147
    %p149 = scmp.ne.s32.totalorder %s138, %s141
    %p150 = scmp.eq.s32.totalorder %s18, 1
    %p151 = por %p149, %p150
    %p152 = scmp.ne.s32.totalorder %s141, %s142
    %p153 = scmp.eq.s32.totalorder %s18, 0
    %p154 = por %p152, %p153
    %p155 = scmp.ne.s32.totalorder %s141, %s142
    %p156 = scmp.eq.s32.totalorder %s19, 1
    %p157 = por %p155, %p156
    %p159 = scmp.ne.s32.totalorder %s142, %s158
    %p160 = scmp.eq.s32.totalorder %s19, 0
    %p161 = por %p159, %p160
    %s162 = ssub.s32 %s13, %s20
    %p163 = scmp.eq.s32.totalorder %s162, 0
    %s165 = sadd.s32 %s164, 1
    %s166 = scalar_select %p163, %s164, %s165
    %p169 = pneg %p163
    %p170 = scmp.eq.s32.totalorder %s13, 1
    %p171 = por %p169, %p170
    %p172 = scmp.ne.s32.totalorder %s164, %s167
    %p173 = scmp.eq.s32.totalorder %s13, 0
    %p174 = por %p172, %p173
    %p175 = scmp.ne.s32.totalorder %s164, %s167
    %p176 = scmp.eq.s32.totalorder %s18, 1
    %p177 = por %p175, %p176
    %p178 = scmp.ne.s32.totalorder %s167, %s168
    %p179 = scmp.eq.s32.totalorder %s18, 0
    %p180 = por %p178, %p179
    %p181 = scmp.ne.s32.totalorder %s167, %s168
    %p182 = scmp.eq.s32.totalorder %s19, 1
    %p183 = por %p181, %p182
    %p185 = scmp.ne.s32.totalorder %s168, %s184
    %p186 = scmp.eq.s32.totalorder %s19, 0
    %p187 = por %p185, %p186
    %p188 = scmp.le.s32.totalorder 1, %s13
    %p189 = scmp.lt.s32.totalorder %s13, 3
    %p190 = pnand %p188, %p189
    %p191 = pneg %p190
    // Predicated region
    $region9: #{depthwise_separable_conv.4} parent=5 // pred_check
      _
    $region10: #{depthwise_separable_conv.4} parent=5 // pred_check_branch
      %193 = sbr.rel (%p190) target = $region12
    $region11: #{depthwise_separable_conv.4} parent=5 // pred_region
      %s194 = ssub.s32 %s13, 1
      // Predicated region
      $region13: #{depthwise_separable_conv.4} parent=11 // pred_check
        %p195 = pneg %p60
      $region14: #{depthwise_separable_conv.4} parent=11 // pred_check_branch
        %197 = sbr.rel (%p195) target = $region16
      $region15: #{depthwise_separable_conv.4} parent=11 // pred_region
        _
      $region16: #{depthwise_separable_conv.4} parent=11 // pred_fallthru
        _
      // Predicated region
      $region17: #{depthwise_separable_conv.4} parent=11 // pred_check
        %p198 = pneg %p81
      $region18: #{depthwise_separable_conv.4} parent=11 // pred_check_branch
        %200 = sbr.rel (%p198) target = $region20
      $region19: #{depthwise_separable_conv.4} parent=11 // pred_region
        _
      $region20: #{depthwise_separable_conv.4} parent=11 // pred_fallthru
        _
      // Predicated region
      $region21: #{depthwise_separable_conv.4} parent=11 // pred_check
        %p201 = pneg %p102
      $region22: #{depthwise_separable_conv.4} parent=11 // pred_check_branch
        %203 = sbr.rel (%p201) target = $region24
      $region23: #{depthwise_separable_conv.4} parent=11 // pred_region
        _
      $region24: #{depthwise_separable_conv.4} parent=11 // pred_fallthru
        _
    $region12: #{depthwise_separable_conv.4} parent=5 // pred_fallthru
      _
    %p204 = scmp.lt.s32.totalorder %s13, 2
    // Predicated region
    $region25: #{depthwise_separable_conv.4} parent=5 // pred_check
      %p205 = pneg %p204
    $region26: #{depthwise_separable_conv.4} parent=5 // pred_check_branch
      %207 = sbr.rel (%p205) target = $region28
    $region27: #{depthwise_separable_conv.4} parent=5 // pred_region
      // Predicated region
      $region29: #{depthwise_separable_conv.4} parent=27 // pred_check
        %p208 = pneg %p33
      $region30: #{depthwise_separable_conv.4} parent=27 // pred_check_branch
        %210 = sbr.rel (%p208) target = $region32
      $region31: #{depthwise_separable_conv.4} parent=27 // pred_region
        %s211 = smul.u32 32, %s13
        %p212 = scmp.lt.s32.totalorder %s211, 63
        %s213 = scalar_select %p212, %s211, 63
        %s214 = smul.addr %s213, 8
        %s215 = scalar_lea.vmem %s0, %s214
        %s216 = smul.u32 32, %s13
      $region32: #{depthwise_separable_conv.4} parent=27 // pred_fallthru
        _
    $region28: #{depthwise_separable_conv.4} parent=5 // pred_fallthru
      _
    %p217 = scmp.le.s32.totalorder 1, %s13
    %p218 = scmp.lt.s32.totalorder %s13, 3
    %p219 = pnand %p217, %p218
    %p220 = pneg %p219
    // Predicated region
    $region33: #{depthwise_separable_conv.4} parent=5 // pred_check
      _
    $region34: #{depthwise_separable_conv.4} parent=5 // pred_check_branch
      %222 = sbr.rel (%p219) target = $region36
    $region35: #{depthwise_separable_conv.4} parent=5 // pred_region
      %s223 = ssub.s32 %s13, 1
      %s224 = smul.u32 32, %s18
      %p225 = scmp.lt.s32.totalorder %s224, 63
      %s226 = scalar_select %p225, %s224, 63
      %s227 = smul.addr %s226, 8
      %s228 = scalar_lea.vmem %s0, %s227
      %p229 = pneg %p39
      %p230 = pneg %p36
      %p231 = pneg %p60
      %p232 = pneg %p57
      %p233 = pneg %p81
      %p234 = pneg %p78
      %p235 = pneg %p102
      %p236 = pneg %p99
      %p237 = pneg %p128
      %p238 = pneg %p125
      %s239 = smul.u32 32, %s18
      %p240 = scmp.lt.s32.totalorder %s239, 63
      %s241 = scalar_select %p240, %s239, 63
      %s242 = smul.addr %s241, 8
      %s243 = scalar_lea.vmem %s4, %s242
      %p244 = pneg %p154
      %p245 = pneg %p151
      %p246 = scmp.lt.s32.totalorder %s18, 1
      %s247 = scalar_select %p246, %s18, 1
      %s248 = scalar_lea.vmem %s5, %s247
      %p249 = pneg %p180
      %p250 = pneg %p177
      %p251 = scmp.lt.s32.totalorder %s18, 1
      %s252 = scalar_select %p251, %s18, 1
      %s253 = scalar_lea.vmem %s6, %s252
      %s254 = smul.u32 32, %s18
      %p255 = scmp.lt.s32.totalorder %s254, 63
      %s256 = scalar_select %p255, %s254, 63
      %s257 = smul.addr %s256, 8
      %s258 = scalar_lea.vmem %s0, %s257
      %s259 = smul.u32 32, %s18
      %s260 = smul.u32 32, %s18
      %p261 = scmp.lt.s32.totalorder %s260, 63
      %s262 = scalar_select %p261, %s260, 63
      %s263 = smul.addr %s262, 8
      %s264 = scalar_lea.vmem %s4, %s263
      %s265 = smul.u32 32, %s18
      %p266 = scmp.lt.s32.totalorder %s18, 1
      %s267 = scalar_select %p266, %s18, 1
      %s268 = scalar_lea.vmem %s5, %s267
      %p269 = scmp.lt.s32.totalorder %s18, 1
      %s270 = scalar_select %p269, %s18, 1
      %s271 = scalar_lea.vmem %s6, %s270
      %v272 = vld [vmem:[%s258] sm:$0xff]
      %v273 = vld [vmem:[%s258 + $0x8] sm:$0xff]
      %v274 = vld [vmem:[%s258 + $0x10] sm:$0xff]
      %v275 = vld [vmem:[%s258 + $0x18] sm:$0xff]
      %v276 = vld [vmem:[%s258 + $0x20] sm:$0xff]
      %v277 = vld [vmem:[%s258 + $0x28] sm:$0xff]
      %v278 = vld [vmem:[%s258 + $0x30] sm:$0xff]
      %v279 = vld [vmem:[%s258 + $0x38] sm:$0xff]
      %v280 = vld [vmem:[%s258 + $0x40] sm:$0xff]
      %v281 = vld [vmem:[%s258 + $0x48] sm:$0xff]
      %v282 = vld [vmem:[%s258 + $0x50] sm:$0xff]
      %v283 = vld [vmem:[%s258 + $0x58] sm:$0xff]
      %v284 = vld [vmem:[%s258 + $0x60] sm:$0xff]
      %v285 = vld [vmem:[%s258 + $0x68] sm:$0xff]
      %v286 = vld [vmem:[%s258 + $0x70] sm:$0xff]
      %v287 = vld [vmem:[%s258 + $0x78] sm:$0xff]
      %v288 = vld [vmem:[%s258 + $0x80] sm:$0xff]
      %v289 = vld [vmem:[%s258 + $0x88] sm:$0xff]
      %v290 = vld [vmem:[%s258 + $0x90] sm:$0xff]
      %v291 = vld [vmem:[%s258 + $0x98] sm:$0xff]
      %v292 = vld [vmem:[%s258 + $0xa0] sm:$0xff]
      %v293 = vld [vmem:[%s258 + $0xa8] sm:$0xff]
      %v294 = vld [vmem:[%s258 + $0xb0] sm:$0xff]
      %v295 = vld [vmem:[%s258 + $0xb8] sm:$0xff]
      %v296 = vld [vmem:[%s258 + $0xc0] sm:$0xff]
      %v297 = vld [vmem:[%s258 + $0xc8] sm:$0xff]
      %v298 = vld [vmem:[%s258 + $0xd0] sm:$0xff]
      %v299 = vld [vmem:[%s258 + $0xd8] sm:$0xff]
      %v300 = vld [vmem:[%s258 + $0xe0] sm:$0xff]
      %v301 = vld [vmem:[%s258 + $0xe8] sm:$0xff]
      %v302 = vld [vmem:[%s258 + $0xf0] sm:$0xff]
      %v303 = vld [vmem:[%s258 + $0xf8] sm:$0xff]
      %v304 = vld [vmem:[%s1] sm:$0x1]
      %v306 = vperm.slane %v304, 0
      %v308 = vmul.f32 %v272, %v306
      %v309 = vmul.f32 %v273, %v306
      %v310 = vmul.f32 %v274, %v306
      %v311 = vmul.f32 %v275, %v306
      %v312 = vmul.f32 %v276, %v306
      %v313 = vmul.f32 %v277, %v306
      %v314 = vmul.f32 %v278, %v306
      %v315 = vmul.f32 %v279, %v306
      %v316 = vmul.f32 %v280, %v306
      %v317 = vmul.f32 %v281, %v306
      %v318 = vmul.f32 %v282, %v306
      %v319 = vmul.f32 %v283, %v306
      %v320 = vmul.f32 %v284, %v306
      %v321 = vmul.f32 %v285, %v306
      %v322 = vmul.f32 %v286, %v306
      %v323 = vmul.f32 %v287, %v306
      %v324 = vmul.f32 %v288, %v306
      %v325 = vmul.f32 %v289, %v306
      %v326 = vmul.f32 %v290, %v306
      %v327 = vmul.f32 %v291, %v306
      %v328 = vmul.f32 %v292, %v306
      %v329 = vmul.f32 %v293, %v306
      %v330 = vmul.f32 %v294, %v306
      %v331 = vmul.f32 %v295, %v306
      %v332 = vmul.f32 %v296, %v306
      %v333 = vmul.f32 %v297, %v306
      %v334 = vmul.f32 %v298, %v306
      %v335 = vmul.f32 %v299, %v306
      %v336 = vmul.f32 %v300, %v306
      %v337 = vmul.f32 %v301, %v306
      %v338 = vmul.f32 %v302, %v306
      %v339 = vmul.f32 %v303, %v306
      %v340 = vld [vmem:[%s2] sm:$0x1]
      %v342 = vperm.slane %v340, 0
      %v344 = vadd.f32 %v308, %v342
      %v345 = vadd.f32 %v309, %v342
      %v346 = vadd.f32 %v310, %v342
      %v347 = vadd.f32 %v311, %v342
      %v348 = vadd.f32 %v312, %v342
      %v349 = vadd.f32 %v313, %v342
      %v350 = vadd.f32 %v314, %v342
      %v351 = vadd.f32 %v315, %v342
      %v352 = vadd.f32 %v316, %v342
      %v353 = vadd.f32 %v317, %v342
      %v354 = vadd.f32 %v318, %v342
      %v355 = vadd.f32 %v319, %v342
      %v356 = vadd.f32 %v320, %v342
      %v357 = vadd.f32 %v321, %v342
      %v358 = vadd.f32 %v322, %v342
      %v359 = vadd.f32 %v323, %v342
      %v360 = vadd.f32 %v324, %v342
      %v361 = vadd.f32 %v325, %v342
      %v362 = vadd.f32 %v326, %v342
      %v363 = vadd.f32 %v327, %v342
      %v364 = vadd.f32 %v328, %v342
      %v365 = vadd.f32 %v329, %v342
      %v366 = vadd.f32 %v330, %v342
      %v367 = vadd.f32 %v331, %v342
      %v368 = vadd.f32 %v332, %v342
      %v369 = vadd.f32 %v333, %v342
      %v370 = vadd.f32 %v334, %v342
      %v371 = vadd.f32 %v335, %v342
      %v372 = vadd.f32 %v336, %v342
      %v373 = vadd.f32 %v337, %v342
      %v374 = vadd.f32 %v338, %v342
      %v375 = vadd.f32 %v339, %v342
      %v376 = vmax.f32 %v344, 0.0
      %v377 = vmax.f32 %v345, 0.0
      %v378 = vmax.f32 %v346, 0.0
      %v379 = vmax.f32 %v347, 0.0
      %v380 = vmax.f32 %v348, 0.0
      %v381 = vmax.f32 %v349, 0.0
      %v382 = vmax.f32 %v350, 0.0
      %v383 = vmax.f32 %v351, 0.0
      %v384 = vmax.f32 %v352, 0.0
      %v385 = vmax.f32 %v353, 0.0
      %v386 = vmax.f32 %v354, 0.0
      %v387 = vmax.f32 %v355, 0.0
      %v388 = vmax.f32 %v356, 0.0
      %v389 = vmax.f32 %v357, 0.0
      %v390 = vmax.f32 %v358, 0.0
      %v391 = vmax.f32 %v359, 0.0
      %v392 = vmax.f32 %v360, 0.0
      %v393 = vmax.f32 %v361, 0.0
      %v394 = vmax.f32 %v362, 0.0
      %v395 = vmax.f32 %v363, 0.0
      %v396 = vmax.f32 %v364, 0.0
      %v397 = vmax.f32 %v365, 0.0
      %v398 = vmax.f32 %v366, 0.0
      %v399 = vmax.f32 %v367, 0.0
      %v400 = vmax.f32 %v368, 0.0
      %v401 = vmax.f32 %v369, 0.0
      %v402 = vmax.f32 %v370, 0.0
      %v403 = vmax.f32 %v371, 0.0
      %v404 = vmax.f32 %v372, 0.0
      %v405 = vmax.f32 %v373, 0.0
      %v406 = vmax.f32 %v374, 0.0
      %v407 = vmax.f32 %v375, 0.0
      %v408 = vmin.f32 %v376, 6.0
      %v409 = vmin.f32 %v377, 6.0
      %v410 = vmin.f32 %v378, 6.0
      %v411 = vmin.f32 %v379, 6.0
      %v412 = vmin.f32 %v380, 6.0
      %v413 = vmin.f32 %v381, 6.0
      %v414 = vmin.f32 %v382, 6.0
      %v415 = vmin.f32 %v383, 6.0
      %v416 = vmin.f32 %v384, 6.0
      %v417 = vmin.f32 %v385, 6.0
      %v418 = vmin.f32 %v386, 6.0
      %v419 = vmin.f32 %v387, 6.0
      %v420 = vmin.f32 %v388, 6.0
      %v421 = vmin.f32 %v389, 6.0
      %v422 = vmin.f32 %v390, 6.0
      %v423 = vmin.f32 %v391, 6.0
      %v424 = vmin.f32 %v392, 6.0
      %v425 = vmin.f32 %v393, 6.0
      %v426 = vmin.f32 %v394, 6.0
      %v427 = vmin.f32 %v395, 6.0
      %v428 = vmin.f32 %v396, 6.0
      %v429 = vmin.f32 %v397, 6.0
      %v430 = vmin.f32 %v398, 6.0
      %v431 = vmin.f32 %v399, 6.0
      %v432 = vmin.f32 %v400, 6.0
      %v433 = vmin.f32 %v401, 6.0
      %v434 = vmin.f32 %v402, 6.0
      %v435 = vmin.f32 %v403, 6.0
      %v436 = vmin.f32 %v404, 6.0
      %v437 = vmin.f32 %v405, 6.0
      %v438 = vmin.f32 %v406, 6.0
      %v439 = vmin.f32 %v407, 6.0
      %v440 = vld [vmem:[%s3] sm:$0xf]
      %vm441 = vcmask 31744
      %v443 = vsel %vm441, %v408, 0
      %v446 = vsel %vm441, %v409, 0
      %v449 = vsel %vm441, %v410, 0
      %v452 = vsel %vm441, %v411, 0
      %v455 = vsel %vm441, %v412, 0
      %v458 = vsel %vm441, %v413, 0
      %v461 = vsel %vm441, %v414, 0
      %v464 = vsel %vm441, %v415, 0
      %v467 = vsel %vm441, %v416, 0
      %v470 = vsel %vm441, %v417, 0
      %v473 = vsel %vm441, %v418, 0
      %v476 = vsel %vm441, %v419, 0
      %v479 = vsel %vm441, %v420, 0
      %v482 = vsel %vm441, %v421, 0
      %v485 = vsel %vm441, %v422, 0
      %v488 = vsel %vm441, %v423, 0
      %v491 = vsel %vm441, %v424, 0
      %v494 = vsel %vm441, %v425, 0
      %v497 = vsel %vm441, %v426, 0
      %v500 = vsel %vm441, %v427, 0
      %v503 = vsel %vm441, %v428, 0
      %v506 = vsel %vm441, %v429, 0
      %v509 = vsel %vm441, %v430, 0
      %v512 = vsel %vm441, %v431, 0
      %v515 = vsel %vm441, %v432, 0
      %v518 = vsel %vm441, %v433, 0
      %v521 = vsel %vm441, %v434, 0
      %v524 = vsel %vm441, %v435, 0
      %v527 = vsel %vm441, %v436, 0
      %v530 = vsel %vm441, %v437, 0
      %v533 = vsel %vm441, %v438, 0
      %v536 = vsel %vm441, %v439, 0
      %vm538 = vcmask 1043456
      %v540 = vsel %vm538, %v440, 0
      %542 = vmatpush.msra.mxu0 0.0
      %543 = vmatpush.msra.mxu0 0.0
      %544 = vmatpush.msra.mxu0 0.0
      %545 = vmatpush.msra.mxu0 0.0
      %546 = vmatpush.msra.mxu0 0.0
      %547 = vmatpush.msra.mxu0 0.0
      %548 = vmatpush.msra.mxu0 0.0
      %549 = vmatpush.msra.mxu0 0.0
      %550 = vmatpush.msra.mxu0 0.0
      %551 = vmatpush.msra.mxu0 0.0
      %552 = vmatpush.msra.mxu0 0.0
      %553 = vmatpush.msra.mxu0 0.0
      %554 = vmatpush.msra.mxu0 0.0
      %555 = vmatpush.msra.mxu0 0.0
      %556 = vmatpush.msra.mxu0 0.0
      %v557 = vand.u32 %v540, 4294901760
      %558 = vmatpush.msra.mxu0 %v557
      %v559 = vand.u32 %v443, 4294901760
      %v560 = vsub.f32 %v443, %v559
      %v561 = vand.u32 %v560, 4294901760
      %v562 = vsub.f32 %v560, %v561
      %v563 = vand.u32 %v562, 4294901760
      %564 = vmatmul.f32.gmra.mxu0 %v563
      %v565 = vpop.f32.mrf.mxu0
      %v566 = vadd.f32 0.0, %v565
      %v567 = vand.u32 %v446, 4294901760
      %v568 = vsub.f32 %v446, %v567
      %v569 = vand.u32 %v568, 4294901760
      %v570 = vsub.f32 %v568, %v569
      %v571 = vand.u32 %v570, 4294901760
      %572 = vmatmul.f32.gmra.mxu0 %v571
      %v573 = vpop.f32.mrf.mxu0
      %v574 = vadd.f32 0.0, %v573
      %v575 = vand.u32 %v449, 4294901760
      %v576 = vsub.f32 %v449, %v575
      %v577 = vand.u32 %v576, 4294901760
      %v578 = vsub.f32 %v576, %v577
      %v579 = vand.u32 %v578, 4294901760
      %580 = vmatmul.f32.gmra.mxu0 %v579
      %v581 = vpop.f32.mrf.mxu0
      %v582 = vadd.f32 0.0, %v581
      %v583 = vand.u32 %v452, 4294901760
      %v584 = vsub.f32 %v452, %v583
      %v585 = vand.u32 %v584, 4294901760
      %v586 = vsub.f32 %v584, %v585
      %v587 = vand.u32 %v586, 4294901760
      %588 = vmatmul.f32.gmra.mxu0 %v587
      %v589 = vpop.f32.mrf.mxu0
      %v590 = vadd.f32 0.0, %v589
      %v591 = vand.u32 %v455, 4294901760
      %v592 = vsub.f32 %v455, %v591
      %v593 = vand.u32 %v592, 4294901760
      %v594 = vsub.f32 %v592, %v593
      %v595 = vand.u32 %v594, 4294901760
      %596 = vmatmul.f32.gmra.mxu0 %v595
      %v597 = vpop.f32.mrf.mxu0
      %v598 = vadd.f32 0.0, %v597
      %v599 = vand.u32 %v458, 4294901760
      %v600 = vsub.f32 %v458, %v599
      %v601 = vand.u32 %v600, 4294901760
      %v602 = vsub.f32 %v600, %v601
      %v603 = vand.u32 %v602, 4294901760
      %604 = vmatmul.f32.gmra.mxu0 %v603
      %v605 = vpop.f32.mrf.mxu0
      %v606 = vadd.f32 0.0, %v605
      %v607 = vand.u32 %v461, 4294901760
      %v608 = vsub.f32 %v461, %v607
      %v609 = vand.u32 %v608, 4294901760
      %v610 = vsub.f32 %v608, %v609
      %v611 = vand.u32 %v610, 4294901760
      %612 = vmatmul.f32.gmra.mxu0 %v611
      %v613 = vpop.f32.mrf.mxu0
      %v614 = vadd.f32 0.0, %v613
      %v615 = vand.u32 %v464, 4294901760
      %v616 = vsub.f32 %v464, %v615
      %v617 = vand.u32 %v616, 4294901760
      %v618 = vsub.f32 %v616, %v617
      %v619 = vand.u32 %v618, 4294901760
      %620 = vmatmul.f32.gmra.mxu0 %v619
      %v621 = vpop.f32.mrf.mxu0
      %v622 = vadd.f32 0.0, %v621
      %v623 = vand.u32 %v467, 4294901760
      %v624 = vsub.f32 %v467, %v623
      %v625 = vand.u32 %v624, 4294901760
      %v626 = vsub.f32 %v624, %v625
      %v627 = vand.u32 %v626, 4294901760
      %628 = vmatmul.f32.gmra.mxu0 %v627
      %v629 = vpop.f32.mrf.mxu0
      %v630 = vadd.f32 0.0, %v629
      %v631 = vand.u32 %v470, 4294901760
      %v632 = vsub.f32 %v470, %v631
      %v633 = vand.u32 %v632, 4294901760
      %v634 = vsub.f32 %v632, %v633
      %v635 = vand.u32 %v634, 4294901760
      %636 = vmatmul.f32.gmra.mxu0 %v635
      %v637 = vpop.f32.mrf.mxu0
      %v638 = vadd.f32 0.0, %v637
      %v639 = vand.u32 %v473, 4294901760
      %v640 = vsub.f32 %v473, %v639
      %v641 = vand.u32 %v640, 4294901760
      %v642 = vsub.f32 %v640, %v641
      %v643 = vand.u32 %v642, 4294901760
      %644 = vmatmul.f32.gmra.mxu0 %v643
      %v645 = vpop.f32.mrf.mxu0
      %v646 = vadd.f32 0.0, %v645
      %v647 = vand.u32 %v476, 4294901760
      %v648 = vsub.f32 %v476, %v647
      %v649 = vand.u32 %v648, 4294901760
      %v650 = vsub.f32 %v648, %v649
      %v651 = vand.u32 %v650, 4294901760
      %652 = vmatmul.f32.gmra.mxu0 %v651
      %v653 = vpop.f32.mrf.mxu0
      %v654 = vadd.f32 0.0, %v653
      %v655 = vand.u32 %v479, 4294901760
      %v656 = vsub.f32 %v479, %v655
      %v657 = vand.u32 %v656, 4294901760
      %v658 = vsub.f32 %v656, %v657
      %v659 = vand.u32 %v658, 4294901760
      %660 = vmatmul.f32.gmra.mxu0 %v659
      %v661 = vpop.f32.mrf.mxu0
      %v662 = vadd.f32 0.0, %v661
      %v663 = vand.u32 %v482, 4294901760
      %v664 = vsub.f32 %v482, %v663
      %v665 = vand.u32 %v664, 4294901760
      %v666 = vsub.f32 %v664, %v665
      %v667 = vand.u32 %v666, 4294901760
      %668 = vmatmul.f32.gmra.mxu0 %v667
      %v669 = vpop.f32.mrf.mxu0
      %v670 = vadd.f32 0.0, %v669
      %v671 = vand.u32 %v485, 4294901760
      %v672 = vsub.f32 %v485, %v671
      %v673 = vand.u32 %v672, 4294901760
      %v674 = vsub.f32 %v672, %v673
      %v675 = vand.u32 %v674, 4294901760
      %676 = vmatmul.f32.gmra.mxu0 %v675
      %v677 = vpop.f32.mrf.mxu0
      %v678 = vadd.f32 0.0, %v677
      %v679 = vand.u32 %v488, 4294901760
      %v680 = vsub.f32 %v488, %v679
      %v681 = vand.u32 %v680, 4294901760
      %v682 = vsub.f32 %v680, %v681
      %v683 = vand.u32 %v682, 4294901760
      %684 = vmatmul.f32.gmra.mxu0 %v683
      %v685 = vpop.f32.mrf.mxu0
      %v686 = vadd.f32 0.0, %v685
      %v687 = vand.u32 %v491, 4294901760
      %v688 = vsub.f32 %v491, %v687
      %v689 = vand.u32 %v688, 4294901760
      %v690 = vsub.f32 %v688, %v689
      %v691 = vand.u32 %v690, 4294901760
      %692 = vmatmul.f32.gmra.mxu0 %v691
      %v693 = vpop.f32.mrf.mxu0
      %v694 = vadd.f32 0.0, %v693
      %v695 = vand.u32 %v494, 4294901760
      %v696 = vsub.f32 %v494, %v695
      %v697 = vand.u32 %v696, 4294901760
      %v698 = vsub.f32 %v696, %v697
      %v699 = vand.u32 %v698, 4294901760
      %700 = vmatmul.f32.gmra.mxu0 %v699
      %v701 = vpop.f32.mrf.mxu0
      %v702 = vadd.f32 0.0, %v701
      %v703 = vand.u32 %v497, 4294901760
      %v704 = vsub.f32 %v497, %v703
      %v705 = vand.u32 %v704, 4294901760
      %v706 = vsub.f32 %v704, %v705
      %v707 = vand.u32 %v706, 4294901760
      %708 = vmatmul.f32.gmra.mxu0 %v707
      %v709 = vpop.f32.mrf.mxu0
      %v710 = vadd.f32 0.0, %v709
      %v711 = vand.u32 %v500, 4294901760
      %v712 = vsub.f32 %v500, %v711
      %v713 = vand.u32 %v712, 4294901760
      %v714 = vsub.f32 %v712, %v713
      %v715 = vand.u32 %v714, 4294901760
      %716 = vmatmul.f32.gmra.mxu0 %v715
      %v717 = vpop.f32.mrf.mxu0
      %v718 = vadd.f32 0.0, %v717
      %v719 = vand.u32 %v503, 4294901760
      %v720 = vsub.f32 %v503, %v719
      %v721 = vand.u32 %v720, 4294901760
      %v722 = vsub.f32 %v720, %v721
      %v723 = vand.u32 %v722, 4294901760
      %724 = vmatmul.f32.gmra.mxu0 %v723
      %v725 = vpop.f32.mrf.mxu0
      %v726 = vadd.f32 0.0, %v725
      %v727 = vand.u32 %v506, 4294901760
      %v728 = vsub.f32 %v506, %v727
      %v729 = vand.u32 %v728, 4294901760
      %v730 = vsub.f32 %v728, %v729
      %v731 = vand.u32 %v730, 4294901760
      %732 = vmatmul.f32.gmra.mxu0 %v731
      %v733 = vpop.f32.mrf.mxu0
      %v734 = vadd.f32 0.0, %v733
      %v735 = vand.u32 %v509, 4294901760
      %v736 = vsub.f32 %v509, %v735
      %v737 = vand.u32 %v736, 4294901760
      %v738 = vsub.f32 %v736, %v737
      %v739 = vand.u32 %v738, 4294901760
      %740 = vmatmul.f32.gmra.mxu0 %v739
      %v741 = vpop.f32.mrf.mxu0
      %v742 = vadd.f32 0.0, %v741
      %v743 = vand.u32 %v512, 4294901760
      %v744 = vsub.f32 %v512, %v743
      %v745 = vand.u32 %v744, 4294901760
      %v746 = vsub.f32 %v744, %v745
      %v747 = vand.u32 %v746, 4294901760
      %748 = vmatmul.f32.gmra.mxu0 %v747
      %v749 = vpop.f32.mrf.mxu0
      %v750 = vadd.f32 0.0, %v749
      %v751 = vand.u32 %v515, 4294901760
      %v752 = vsub.f32 %v515, %v751
      %v753 = vand.u32 %v752, 4294901760
      %v754 = vsub.f32 %v752, %v753
      %v755 = vand.u32 %v754, 4294901760
      %756 = vmatmul.f32.gmra.mxu0 %v755
      %v757 = vpop.f32.mrf.mxu0
      %v758 = vadd.f32 0.0, %v757
      %v759 = vand.u32 %v518, 4294901760
      %v760 = vsub.f32 %v518, %v759
      %v761 = vand.u32 %v760, 4294901760
      %v762 = vsub.f32 %v760, %v761
      %v763 = vand.u32 %v762, 4294901760
      %764 = vmatmul.f32.gmra.mxu0 %v763
      %v765 = vpop.f32.mrf.mxu0
      %v766 = vadd.f32 0.0, %v765
      %v767 = vand.u32 %v521, 4294901760
      %v768 = vsub.f32 %v521, %v767
      %v769 = vand.u32 %v768, 4294901760
      %v770 = vsub.f32 %v768, %v769
      %v771 = vand.u32 %v770, 4294901760
      %772 = vmatmul.f32.gmra.mxu0 %v771
      %v773 = vpop.f32.mrf.mxu0
      %v774 = vadd.f32 0.0, %v773
      %v775 = vand.u32 %v524, 4294901760
      %v776 = vsub.f32 %v524, %v775
      %v777 = vand.u32 %v776, 4294901760
      %v778 = vsub.f32 %v776, %v777
      %v779 = vand.u32 %v778, 4294901760
      %780 = vmatmul.f32.gmra.mxu0 %v779
      %v781 = vpop.f32.mrf.mxu0
      %v782 = vadd.f32 0.0, %v781
      %v783 = vand.u32 %v527, 4294901760
      %v784 = vsub.f32 %v527, %v783
      %v785 = vand.u32 %v784, 4294901760
      %v786 = vsub.f32 %v784, %v785
      %v787 = vand.u32 %v786, 4294901760
      %788 = vmatmul.f32.gmra.mxu0 %v787
      %v789 = vpop.f32.mrf.mxu0
      %v790 = vadd.f32 0.0, %v789
      %v791 = vand.u32 %v530, 4294901760
      %v792 = vsub.f32 %v530, %v791
      %v793 = vand.u32 %v792, 4294901760
      %v794 = vsub.f32 %v792, %v793
      %v795 = vand.u32 %v794, 4294901760
      %796 = vmatmul.f32.gmra.mxu0 %v795
      %v797 = vpop.f32.mrf.mxu0
      %v798 = vadd.f32 0.0, %v797
      %v799 = vand.u32 %v533, 4294901760
      %v800 = vsub.f32 %v533, %v799
      %v801 = vand.u32 %v800, 4294901760
      %v802 = vsub.f32 %v800, %v801
      %v803 = vand.u32 %v802, 4294901760
      %804 = vmatmul.f32.gmra.mxu0 %v803
      %v805 = vpop.f32.mrf.mxu0
      %v806 = vadd.f32 0.0, %v805
      %v807 = vand.u32 %v536, 4294901760
      %v808 = vsub.f32 %v536, %v807
      %v809 = vand.u32 %v808, 4294901760
      %v810 = vsub.f32 %v808, %v809
      %v811 = vand.u32 %v810, 4294901760
      %812 = vmatmul.f32.gmra.mxu0 %v811
      %v813 = vpop.f32.mrf.mxu0
      %v814 = vadd.f32 0.0, %v813
      %815 = vdwg.mxu0
      %816 = vmatpush.msra.mxu0 0.0
      %817 = vmatpush.msra.mxu0 0.0
      %818 = vmatpush.msra.mxu0 0.0
      %819 = vmatpush.msra.mxu0 0.0
      %820 = vmatpush.msra.mxu0 0.0
      %821 = vmatpush.msra.mxu0 0.0
      %822 = vmatpush.msra.mxu0 0.0
      %823 = vmatpush.msra.mxu0 0.0
      %824 = vmatpush.msra.mxu0 0.0
      %825 = vmatpush.msra.mxu0 0.0
      %826 = vmatpush.msra.mxu0 0.0
      %827 = vmatpush.msra.mxu0 0.0
      %828 = vmatpush.msra.mxu0 0.0
      %829 = vmatpush.msra.mxu0 0.0
      %830 = vmatpush.msra.mxu0 0.0
      %v831 = vand.u32 %v540, 4294901760
      %v832 = vsub.f32 %v540, %v831
      %v833 = vand.u32 %v832, 4294901760
      %v834 = vsub.f32 %v832, %v833
      %v835 = vand.u32 %v834, 4294901760
      %836 = vmatpush.msra.mxu0 %v835
      %v837 = vand.u32 %v443, 4294901760
      %838 = vmatmul.f32.gmra.mxu0 %v837
      %v839 = vpop.f32.mrf.mxu0
      %v840 = vadd.f32 %v566, %v839
      %v841 = vand.u32 %v446, 4294901760
      %842 = vmatmul.f32.gmra.mxu0 %v841
      %v843 = vpop.f32.mrf.mxu0
      %v844 = vadd.f32 %v574, %v843
      %v845 = vand.u32 %v449, 4294901760
      %846 = vmatmul.f32.gmra.mxu0 %v845
      %v847 = vpop.f32.mrf.mxu0
      %v848 = vadd.f32 %v582, %v847
      %v849 = vand.u32 %v452, 4294901760
      %850 = vmatmul.f32.gmra.mxu0 %v849
      %v851 = vpop.f32.mrf.mxu0
      %v852 = vadd.f32 %v590, %v851
      %v853 = vand.u32 %v455, 4294901760
      %854 = vmatmul.f32.gmra.mxu0 %v853
      %v855 = vpop.f32.mrf.mxu0
      %v856 = vadd.f32 %v598, %v855
      %v857 = vand.u32 %v458, 4294901760
      %858 = vmatmul.f32.gmra.mxu0 %v857
      %v859 = vpop.f32.mrf.mxu0
      %v860 = vadd.f32 %v606, %v859
      %v861 = vand.u32 %v461, 4294901760
      %862 = vmatmul.f32.gmra.mxu0 %v861
      %v863 = vpop.f32.mrf.mxu0
      %v864 = vadd.f32 %v614, %v863
      %v865 = vand.u32 %v464, 4294901760
      %866 = vmatmul.f32.gmra.mxu0 %v865
      %v867 = vpop.f32.mrf.mxu0
      %v868 = vadd.f32 %v622, %v867
      %v869 = vand.u32 %v467, 4294901760
      %870 = vmatmul.f32.gmra.mxu0 %v869
      %v871 = vpop.f32.mrf.mxu0
      %v872 = vadd.f32 %v630, %v871
      %v873 = vand.u32 %v470, 4294901760
      %874 = vmatmul.f32.gmra.mxu0 %v873
      %v875 = vpop.f32.mrf.mxu0
      %v876 = vadd.f32 %v638, %v875
      %v877 = vand.u32 %v473, 4294901760
      %878 = vmatmul.f32.gmra.mxu0 %v877
      %v879 = vpop.f32.mrf.mxu0
      %v880 = vadd.f32 %v646, %v879
      %v881 = vand.u32 %v476, 4294901760
      %882 = vmatmul.f32.gmra.mxu0 %v881
      %v883 = vpop.f32.mrf.mxu0
      %v884 = vadd.f32 %v654, %v883
      %v885 = vand.u32 %v479, 4294901760
      %886 = vmatmul.f32.gmra.mxu0 %v885
      %v887 = vpop.f32.mrf.mxu0
      %v888 = vadd.f32 %v662, %v887
      %v889 = vand.u32 %v482, 4294901760
      %890 = vmatmul.f32.gmra.mxu0 %v889
      %v891 = vpop.f32.mrf.mxu0
      %v892 = vadd.f32 %v670, %v891
      %v893 = vand.u32 %v485, 4294901760
      %894 = vmatmul.f32.gmra.mxu0 %v893
      %v895 = vpop.f32.mrf.mxu0
      %v896 = vadd.f32 %v678, %v895
      %v897 = vand.u32 %v488, 4294901760
      %898 = vmatmul.f32.gmra.mxu0 %v897
      %v899 = vpop.f32.mrf.mxu0
      %v900 = vadd.f32 %v686, %v899
      %v901 = vand.u32 %v491, 4294901760
      %902 = vmatmul.f32.gmra.mxu0 %v901
      %v903 = vpop.f32.mrf.mxu0
      %v904 = vadd.f32 %v694, %v903
      %v905 = vand.u32 %v494, 4294901760
      %906 = vmatmul.f32.gmra.mxu0 %v905
      %v907 = vpop.f32.mrf.mxu0
      %v908 = vadd.f32 %v702, %v907
      %v909 = vand.u32 %v497, 4294901760
      %910 = vmatmul.f32.gmra.mxu0 %v909
      %v911 = vpop.f32.mrf.mxu0
      %v912 = vadd.f32 %v710, %v911
      %v913 = vand.u32 %v500, 4294901760
      %914 = vmatmul.f32.gmra.mxu0 %v913
      %v915 = vpop.f32.mrf.mxu0
      %v916 = vadd.f32 %v718, %v915
      %v917 = vand.u32 %v503, 4294901760
      %918 = vmatmul.f32.gmra.mxu0 %v917
      %v919 = vpop.f32.mrf.mxu0
      %v920 = vadd.f32 %v726, %v919
      %v921 = vand.u32 %v506, 4294901760
      %922 = vmatmul.f32.gmra.mxu0 %v921
      %v923 = vpop.f32.mrf.mxu0
      %v924 = vadd.f32 %v734, %v923
      %v925 = vand.u32 %v509, 4294901760
      %926 = vmatmul.f32.gmra.mxu0 %v925
      %v927 = vpop.f32.mrf.mxu0
      %v928 = vadd.f32 %v742, %v927
      %v929 = vand.u32 %v512, 4294901760
      %930 = vmatmul.f32.gmra.mxu0 %v929
      %v931 = vpop.f32.mrf.mxu0
      %v932 = vadd.f32 %v750, %v931
      %v933 = vand.u32 %v515, 4294901760
      %934 = vmatmul.f32.gmra.mxu0 %v933
      %v935 = vpop.f32.mrf.mxu0
      %v936 = vadd.f32 %v758, %v935
      %v937 = vand.u32 %v518, 4294901760
      %938 = vmatmul.f32.gmra.mxu0 %v937
      %v939 = vpop.f32.mrf.mxu0
      %v940 = vadd.f32 %v766, %v939
      %v941 = vand.u32 %v521, 4294901760
      %942 = vmatmul.f32.gmra.mxu0 %v941
      %v943 = vpop.f32.mrf.mxu0
      %v944 = vadd.f32 %v774, %v943
      %v945 = vand.u32 %v524, 4294901760
      %946 = vmatmul.f32.gmra.mxu0 %v945
      %v947 = vpop.f32.mrf.mxu0
      %v948 = vadd.f32 %v782, %v947
      %v949 = vand.u32 %v527, 4294901760
      %950 = vmatmul.f32.gmra.mxu0 %v949
      %v951 = vpop.f32.mrf.mxu0
      %v952 = vadd.f32 %v790, %v951
      %v953 = vand.u32 %v530, 4294901760
      %954 = vmatmul.f32.gmra.mxu0 %v953
      %v955 = vpop.f32.mrf.mxu0
      %v956 = vadd.f32 %v798, %v955
      %v957 = vand.u32 %v533, 4294901760
      %958 = vmatmul.f32.gmra.mxu0 %v957
      %v959 = vpop.f32.mrf.mxu0
      %v960 = vadd.f32 %v806, %v959
      %v961 = vand.u32 %v536, 4294901760
      %962 = vmatmul.f32.gmra.mxu0 %v961
      %v963 = vpop.f32.mrf.mxu0
      %v964 = vadd.f32 %v814, %v963
      %965 = vdwg.mxu0
      %966 = vmatpush.msra.mxu0 0.0
      %967 = vmatpush.msra.mxu0 0.0
      %968 = vmatpush.msra.mxu0 0.0
      %969 = vmatpush.msra.mxu0 0.0
      %970 = vmatpush.msra.mxu0 0.0
      %971 = vmatpush.msra.mxu0 0.0
      %972 = vmatpush.msra.mxu0 0.0
      %973 = vmatpush.msra.mxu0 0.0
      %974 = vmatpush.msra.mxu0 0.0
      %975 = vmatpush.msra.mxu0 0.0
      %976 = vmatpush.msra.mxu0 0.0
      %977 = vmatpush.msra.mxu0 0.0
      %978 = vmatpush.msra.mxu0 0.0
      %979 = vmatpush.msra.mxu0 0.0
      %980 = vmatpush.msra.mxu0 0.0
      %v981 = vand.u32 %v540, 4294901760
      %v982 = vsub.f32 %v540, %v981
      %983 = vmatpush.msra.mxu0 %v982
      %v984 = vand.u32 %v443, 4294901760
      %v985 = vsub.f32 %v443, %v984
      %986 = vmatmul.f32.gmra.mxu0 %v985
      %v987 = vpop.f32.mrf.mxu0
      %v988 = vadd.f32 %v840, %v987
      %v989 = vand.u32 %v446, 4294901760
      %v990 = vsub.f32 %v446, %v989
      %991 = vmatmul.f32.gmra.mxu0 %v990
      %v992 = vpop.f32.mrf.mxu0
      %v993 = vadd.f32 %v844, %v992
      %v994 = vand.u32 %v449, 4294901760
      %v995 = vsub.f32 %v449, %v994
      %996 = vmatmul.f32.gmra.mxu0 %v995
      %v997 = vpop.f32.mrf.mxu0
      %v998 = vadd.f32 %v848, %v997
      %v999 = vand.u32 %v452, 4294901760
      %v1000 = vsub.f32 %v452, %v999
      %1001 = vmatmul.f32.gmra.mxu0 %v1000
      %v1002 = vpop.f32.mrf.mxu0
      %v1003 = vadd.f32 %v852, %v1002
      %v1004 = vand.u32 %v455, 4294901760
      %v1005 = vsub.f32 %v455, %v1004
      %1006 = vmatmul.f32.gmra.mxu0 %v1005
      %v1007 = vpop.f32.mrf.mxu0
      %v1008 = vadd.f32 %v856, %v1007
      %v1009 = vand.u32 %v458, 4294901760
      %v1010 = vsub.f32 %v458, %v1009
      %1011 = vmatmul.f32.gmra.mxu0 %v1010
      %v1012 = vpop.f32.mrf.mxu0
      %v1013 = vadd.f32 %v860, %v1012
      %v1014 = vand.u32 %v461, 4294901760
      %v1015 = vsub.f32 %v461, %v1014
      %1016 = vmatmul.f32.gmra.mxu0 %v1015
      %v1017 = vpop.f32.mrf.mxu0
      %v1018 = vadd.f32 %v864, %v1017
      %v1019 = vand.u32 %v464, 4294901760
      %v1020 = vsub.f32 %v464, %v1019
      %1021 = vmatmul.f32.gmra.mxu0 %v1020
      %v1022 = vpop.f32.mrf.mxu0
      %v1023 = vadd.f32 %v868, %v1022
      %v1024 = vand.u32 %v467, 4294901760
      %v1025 = vsub.f32 %v467, %v1024
      %1026 = vmatmul.f32.gmra.mxu0 %v1025
      %v1027 = vpop.f32.mrf.mxu0
      %v1028 = vadd.f32 %v872, %v1027
      %v1029 = vand.u32 %v470, 4294901760
      %v1030 = vsub.f32 %v470, %v1029
      %1031 = vmatmul.f32.gmra.mxu0 %v1030
      %v1032 = vpop.f32.mrf.mxu0
      %v1033 = vadd.f32 %v876, %v1032
      %v1034 = vand.u32 %v473, 4294901760
      %v1035 = vsub.f32 %v473, %v1034
      %1036 = vmatmul.f32.gmra.mxu0 %v1035
      %v1037 = vpop.f32.mrf.mxu0
      %v1038 = vadd.f32 %v880, %v1037
      %v1039 = vand.u32 %v476, 4294901760
      %v1040 = vsub.f32 %v476, %v1039
      %1041 = vmatmul.f32.gmra.mxu0 %v1040
      %v1042 = vpop.f32.mrf.mxu0
      %v1043 = vadd.f32 %v884, %v1042
      %v1044 = vand.u32 %v479, 4294901760
      %v1045 = vsub.f32 %v479, %v1044
      %1046 = vmatmul.f32.gmra.mxu0 %v1045
      %v1047 = vpop.f32.mrf.mxu0
      %v1048 = vadd.f32 %v888, %v1047
      %v1049 = vand.u32 %v482, 4294901760
      %v1050 = vsub.f32 %v482, %v1049
      %1051 = vmatmul.f32.gmra.mxu0 %v1050
      %v1052 = vpop.f32.mrf.mxu0
      %v1053 = vadd.f32 %v892, %v1052
      %v1054 = vand.u32 %v485, 4294901760
      %v1055 = vsub.f32 %v485, %v1054
      %1056 = vmatmul.f32.gmra.mxu0 %v1055
      %v1057 = vpop.f32.mrf.mxu0
      %v1058 = vadd.f32 %v896, %v1057
      %v1059 = vand.u32 %v488, 4294901760
      %v1060 = vsub.f32 %v488, %v1059
      %1061 = vmatmul.f32.gmra.mxu0 %v1060
      %v1062 = vpop.f32.mrf.mxu0
      %v1063 = vadd.f32 %v900, %v1062
      %v1064 = vand.u32 %v491, 4294901760
      %v1065 = vsub.f32 %v491, %v1064
      %1066 = vmatmul.f32.gmra.mxu0 %v1065
      %v1067 = vpop.f32.mrf.mxu0
      %v1068 = vadd.f32 %v904, %v1067
      %v1069 = vand.u32 %v494, 4294901760
      %v1070 = vsub.f32 %v494, %v1069
      %1071 = vmatmul.f32.gmra.mxu0 %v1070
      %v1072 = vpop.f32.mrf.mxu0
      %v1073 = vadd.f32 %v908, %v1072
      %v1074 = vand.u32 %v497, 4294901760
      %v1075 = vsub.f32 %v497, %v1074
      %1076 = vmatmul.f32.gmra.mxu0 %v1075
      %v1077 = vpop.f32.mrf.mxu0
      %v1078 = vadd.f32 %v912, %v1077
      %v1079 = vand.u32 %v500, 4294901760
      %v1080 = vsub.f32 %v500, %v1079
      %1081 = vmatmul.f32.gmra.mxu0 %v1080
      %v1082 = vpop.f32.mrf.mxu0
      %v1083 = vadd.f32 %v916, %v1082
      %v1084 = vand.u32 %v503, 4294901760
      %v1085 = vsub.f32 %v503, %v1084
      %1086 = vmatmul.f32.gmra.mxu0 %v1085
      %v1087 = vpop.f32.mrf.mxu0
      %v1088 = vadd.f32 %v920, %v1087
      %v1089 = vand.u32 %v506, 4294901760
      %v1090 = vsub.f32 %v506, %v1089
      %1091 = vmatmul.f32.gmra.mxu0 %v1090
      %v1092 = vpop.f32.mrf.mxu0
      %v1093 = vadd.f32 %v924, %v1092
      %v1094 = vand.u32 %v509, 4294901760
      %v1095 = vsub.f32 %v509, %v1094
      %1096 = vmatmul.f32.gmra.mxu0 %v1095
      %v1097 = vpop.f32.mrf.mxu0
      %v1098 = vadd.f32 %v928, %v1097
      %v1099 = vand.u32 %v512, 4294901760
      %v1100 = vsub.f32 %v512, %v1099
      %1101 = vmatmul.f32.gmra.mxu0 %v1100
      %v1102 = vpop.f32.mrf.mxu0
      %v1103 = vadd.f32 %v932, %v1102
      %v1104 = vand.u32 %v515, 4294901760
      %v1105 = vsub.f32 %v515, %v1104
      %1106 = vmatmul.f32.gmra.mxu0 %v1105
      %v1107 = vpop.f32.mrf.mxu0
      %v1108 = vadd.f32 %v936, %v1107
      %v1109 = vand.u32 %v518, 4294901760
      %v1110 = vsub.f32 %v518, %v1109
      %1111 = vmatmul.f32.gmra.mxu0 %v1110
      %v1112 = vpop.f32.mrf.mxu0
      %v1113 = vadd.f32 %v940, %v1112
      %v1114 = vand.u32 %v521, 4294901760
      %v1115 = vsub.f32 %v521, %v1114
      %1116 = vmatmul.f32.gmra.mxu0 %v1115
      %v1117 = vpop.f32.mrf.mxu0
      %v1118 = vadd.f32 %v944, %v1117
      %v1119 = vand.u32 %v524, 4294901760
      %v1120 = vsub.f32 %v524, %v1119
      %1121 = vmatmul.f32.gmra.mxu0 %v1120
      %v1122 = vpop.f32.mrf.mxu0
      %v1123 = vadd.f32 %v948, %v1122
      %v1124 = vand.u32 %v527, 4294901760
      %v1125 = vsub.f32 %v527, %v1124
      %1126 = vmatmul.f32.gmra.mxu0 %v1125
      %v1127 = vpop.f32.mrf.mxu0
      %v1128 = vadd.f32 %v952, %v1127
      %v1129 = vand.u32 %v530, 4294901760
      %v1130 = vsub.f32 %v530, %v1129
      %1131 = vmatmul.f32.gmra.mxu0 %v1130
      %v1132 = vpop.f32.mrf.mxu0
      %v1133 = vadd.f32 %v956, %v1132
      %v1134 = vand.u32 %v533, 4294901760
      %v1135 = vsub.f32 %v533, %v1134
      %1136 = vmatmul.f32.gmra.mxu0 %v1135
      %v1137 = vpop.f32.mrf.mxu0
      %v1138 = vadd.f32 %v960, %v1137
      %v1139 = vand.u32 %v536, 4294901760
      %v1140 = vsub.f32 %v536, %v1139
      %1141 = vmatmul.f32.gmra.mxu0 %v1140
      %v1142 = vpop.f32.mrf.mxu0
      %v1143 = vadd.f32 %v964, %v1142
      %1144 = vdwg.mxu0
      %1145 = vmatpush.msra.mxu0 0.0
      %1146 = vmatpush.msra.mxu0 0.0
      %1147 = vmatpush.msra.mxu0 0.0
      %1148 = vmatpush.msra.mxu0 0.0
      %1149 = vmatpush.msra.mxu0 0.0
      %1150 = vmatpush.msra.mxu0 0.0
      %1151 = vmatpush.msra.mxu0 0.0
      %1152 = vmatpush.msra.mxu0 0.0
      %1153 = vmatpush.msra.mxu0 0.0
      %1154 = vmatpush.msra.mxu0 0.0
      %1155 = vmatpush.msra.mxu0 0.0
      %1156 = vmatpush.msra.mxu0 0.0
      %1157 = vmatpush.msra.mxu0 0.0
      %1158 = vmatpush.msra.mxu0 0.0
      %1159 = vmatpush.msra.mxu0 0.0
      %v1160 = vand.u32 %v540, 4294901760
      %1161 = vmatpush.msra.mxu0 %v1160
      %v1162 = vand.u32 %v443, 4294901760
      %v1163 = vsub.f32 %v443, %v1162
      %v1164 = vand.u32 %v1163, 4294901760
      %1165 = vmatmul.f32.gmra.mxu0 %v1164
      %v1166 = vpop.f32.mrf.mxu0
      %v1167 = vadd.f32 %v988, %v1166
      %v1168 = vand.u32 %v446, 4294901760
      %v1169 = vsub.f32 %v446, %v1168
      %v1170 = vand.u32 %v1169, 4294901760
      %1171 = vmatmul.f32.gmra.mxu0 %v1170
      %v1172 = vpop.f32.mrf.mxu0
      %v1173 = vadd.f32 %v993, %v1172
      %v1174 = vand.u32 %v449, 4294901760
      %v1175 = vsub.f32 %v449, %v1174
      %v1176 = vand.u32 %v1175, 4294901760
      %1177 = vmatmul.f32.gmra.mxu0 %v1176
      %v1178 = vpop.f32.mrf.mxu0
      %v1179 = vadd.f32 %v998, %v1178
      %v1180 = vand.u32 %v452, 4294901760
      %v1181 = vsub.f32 %v452, %v1180
      %v1182 = vand.u32 %v1181, 4294901760
      %1183 = vmatmul.f32.gmra.mxu0 %v1182
      %v1184 = vpop.f32.mrf.mxu0
      %v1185 = vadd.f32 %v1003, %v1184
      %v1186 = vand.u32 %v455, 4294901760
      %v1187 = vsub.f32 %v455, %v1186
      %v1188 = vand.u32 %v1187, 4294901760
      %1189 = vmatmul.f32.gmra.mxu0 %v1188
      %v1190 = vpop.f32.mrf.mxu0
      %v1191 = vadd.f32 %v1008, %v1190
      %v1192 = vand.u32 %v458, 4294901760
      %v1193 = vsub.f32 %v458, %v1192
      %v1194 = vand.u32 %v1193, 4294901760
      %1195 = vmatmul.f32.gmra.mxu0 %v1194
      %v1196 = vpop.f32.mrf.mxu0
      %v1197 = vadd.f32 %v1013, %v1196
      %v1198 = vand.u32 %v461, 4294901760
      %v1199 = vsub.f32 %v461, %v1198
      %v1200 = vand.u32 %v1199, 4294901760
      %1201 = vmatmul.f32.gmra.mxu0 %v1200
      %v1202 = vpop.f32.mrf.mxu0
      %v1203 = vadd.f32 %v1018, %v1202
      %v1204 = vand.u32 %v464, 4294901760
      %v1205 = vsub.f32 %v464, %v1204
      %v1206 = vand.u32 %v1205, 4294901760
      %1207 = vmatmul.f32.gmra.mxu0 %v1206
      %v1208 = vpop.f32.mrf.mxu0
      %v1209 = vadd.f32 %v1023, %v1208
      %v1210 = vand.u32 %v467, 4294901760
      %v1211 = vsub.f32 %v467, %v1210
      %v1212 = vand.u32 %v1211, 4294901760
      %1213 = vmatmul.f32.gmra.mxu0 %v1212
      %v1214 = vpop.f32.mrf.mxu0
      %v1215 = vadd.f32 %v1028, %v1214
      %v1216 = vand.u32 %v470, 4294901760
      %v1217 = vsub.f32 %v470, %v1216
      %v1218 = vand.u32 %v1217, 4294901760
      %1219 = vmatmul.f32.gmra.mxu0 %v1218
      %v1220 = vpop.f32.mrf.mxu0
      %v1221 = vadd.f32 %v1033, %v1220
      %v1222 = vand.u32 %v473, 4294901760
      %v1223 = vsub.f32 %v473, %v1222
      %v1224 = vand.u32 %v1223, 4294901760
      %1225 = vmatmul.f32.gmra.mxu0 %v1224
      %v1226 = vpop.f32.mrf.mxu0
      %v1227 = vadd.f32 %v1038, %v1226
      %v1228 = vand.u32 %v476, 4294901760
      %v1229 = vsub.f32 %v476, %v1228
      %v1230 = vand.u32 %v1229, 4294901760
      %1231 = vmatmul.f32.gmra.mxu0 %v1230
      %v1232 = vpop.f32.mrf.mxu0
      %v1233 = vadd.f32 %v1043, %v1232
      %v1234 = vand.u32 %v479, 4294901760
      %v1235 = vsub.f32 %v479, %v1234
      %v1236 = vand.u32 %v1235, 4294901760
      %1237 = vmatmul.f32.gmra.mxu0 %v1236
      %v1238 = vpop.f32.mrf.mxu0
      %v1239 = vadd.f32 %v1048, %v1238
      %v1240 = vand.u32 %v482, 4294901760
      %v1241 = vsub.f32 %v482, %v1240
      %v1242 = vand.u32 %v1241, 4294901760
      %1243 = vmatmul.f32.gmra.mxu0 %v1242
      %v1244 = vpop.f32.mrf.mxu0
      %v1245 = vadd.f32 %v1053, %v1244
      %v1246 = vand.u32 %v485, 4294901760
      %v1247 = vsub.f32 %v485, %v1246
      %v1248 = vand.u32 %v1247, 4294901760
      %1249 = vmatmul.f32.gmra.mxu0 %v1248
      %v1250 = vpop.f32.mrf.mxu0
      %v1251 = vadd.f32 %v1058, %v1250
      %v1252 = vand.u32 %v488, 4294901760
      %v1253 = vsub.f32 %v488, %v1252
      %v1254 = vand.u32 %v1253, 4294901760
      %1255 = vmatmul.f32.gmra.mxu0 %v1254
      %v1256 = vpop.f32.mrf.mxu0
      %v1257 = vadd.f32 %v1063, %v1256
      %v1258 = vand.u32 %v491, 4294901760
      %v1259 = vsub.f32 %v491, %v1258
      %v1260 = vand.u32 %v1259, 4294901760
      %1261 = vmatmul.f32.gmra.mxu0 %v1260
      %v1262 = vpop.f32.mrf.mxu0
      %v1263 = vadd.f32 %v1068, %v1262
      %v1264 = vand.u32 %v494, 4294901760
      %v1265 = vsub.f32 %v494, %v1264
      %v1266 = vand.u32 %v1265, 4294901760
      %1267 = vmatmul.f32.gmra.mxu0 %v1266
      %v1268 = vpop.f32.mrf.mxu0
      %v1269 = vadd.f32 %v1073, %v1268
      %v1270 = vand.u32 %v497, 4294901760
      %v1271 = vsub.f32 %v497, %v1270
      %v1272 = vand.u32 %v1271, 4294901760
      %1273 = vmatmul.f32.gmra.mxu0 %v1272
      %v1274 = vpop.f32.mrf.mxu0
      %v1275 = vadd.f32 %v1078, %v1274
      %v1276 = vand.u32 %v500, 4294901760
      %v1277 = vsub.f32 %v500, %v1276
      %v1278 = vand.u32 %v1277, 4294901760
      %1279 = vmatmul.f32.gmra.mxu0 %v1278
      %v1280 = vpop.f32.mrf.mxu0
      %v1281 = vadd.f32 %v1083, %v1280
      %v1282 = vand.u32 %v503, 4294901760
      %v1283 = vsub.f32 %v503, %v1282
      %v1284 = vand.u32 %v1283, 4294901760
      %1285 = vmatmul.f32.gmra.mxu0 %v1284
      %v1286 = vpop.f32.mrf.mxu0
      %v1287 = vadd.f32 %v1088, %v1286
      %v1288 = vand.u32 %v506, 4294901760
      %v1289 = vsub.f32 %v506, %v1288
      %v1290 = vand.u32 %v1289, 4294901760
      %1291 = vmatmul.f32.gmra.mxu0 %v1290
      %v1292 = vpop.f32.mrf.mxu0
      %v1293 = vadd.f32 %v1093, %v1292
      %v1294 = vand.u32 %v509, 4294901760
      %v1295 = vsub.f32 %v509, %v1294
      %v1296 = vand.u32 %v1295, 4294901760
      %1297 = vmatmul.f32.gmra.mxu0 %v1296
      %v1298 = vpop.f32.mrf.mxu0
      %v1299 = vadd.f32 %v1098, %v1298
      %v1300 = vand.u32 %v512, 4294901760
      %v1301 = vsub.f32 %v512, %v1300
      %v1302 = vand.u32 %v1301, 4294901760
      %1303 = vmatmul.f32.gmra.mxu0 %v1302
      %v1304 = vpop.f32.mrf.mxu0
      %v1305 = vadd.f32 %v1103, %v1304
      %v1306 = vand.u32 %v515, 4294901760
      %v1307 = vsub.f32 %v515, %v1306
      %v1308 = vand.u32 %v1307, 4294901760
      %1309 = vmatmul.f32.gmra.mxu0 %v1308
      %v1310 = vpop.f32.mrf.mxu0
      %v1311 = vadd.f32 %v1108, %v1310
      %v1312 = vand.u32 %v518, 4294901760
      %v1313 = vsub.f32 %v518, %v1312
      %v1314 = vand.u32 %v1313, 4294901760
      %1315 = vmatmul.f32.gmra.mxu0 %v1314
      %v1316 = vpop.f32.mrf.mxu0
      %v1317 = vadd.f32 %v1113, %v1316
      %v1318 = vand.u32 %v521, 4294901760
      %v1319 = vsub.f32 %v521, %v1318
      %v1320 = vand.u32 %v1319, 4294901760
      %1321 = vmatmul.f32.gmra.mxu0 %v1320
      %v1322 = vpop.f32.mrf.mxu0
      %v1323 = vadd.f32 %v1118, %v1322
      %v1324 = vand.u32 %v524, 4294901760
      %v1325 = vsub.f32 %v524, %v1324
      %v1326 = vand.u32 %v1325, 4294901760
      %1327 = vmatmul.f32.gmra.mxu0 %v1326
      %v1328 = vpop.f32.mrf.mxu0
      %v1329 = vadd.f32 %v1123, %v1328
      %v1330 = vand.u32 %v527, 4294901760
      %v1331 = vsub.f32 %v527, %v1330
      %v1332 = vand.u32 %v1331, 4294901760
      %1333 = vmatmul.f32.gmra.mxu0 %v1332
      %v1334 = vpop.f32.mrf.mxu0
      %v1335 = vadd.f32 %v1128, %v1334
      %v1336 = vand.u32 %v530, 4294901760
      %v1337 = vsub.f32 %v530, %v1336
      %v1338 = vand.u32 %v1337, 4294901760
      %1339 = vmatmul.f32.gmra.mxu0 %v1338
      %v1340 = vpop.f32.mrf.mxu0
      %v1341 = vadd.f32 %v1133, %v1340
      %v1342 = vand.u32 %v533, 4294901760
      %v1343 = vsub.f32 %v533, %v1342
      %v1344 = vand.u32 %v1343, 4294901760
      %1345 = vmatmul.f32.gmra.mxu0 %v1344
      %v1346 = vpop.f32.mrf.mxu0
      %v1347 = vadd.f32 %v1138, %v1346
      %v1348 = vand.u32 %v536, 4294901760
      %v1349 = vsub.f32 %v536, %v1348
      %v1350 = vand.u32 %v1349, 4294901760
      %1351 = vmatmul.f32.gmra.mxu0 %v1350
      %v1352 = vpop.f32.mrf.mxu0
      %v1353 = vadd.f32 %v1143, %v1352
      %1354 = vdwg.mxu0
      %1355 = vmatpush.msra.mxu0 0.0
      %1356 = vmatpush.msra.mxu0 0.0
      %1357 = vmatpush.msra.mxu0 0.0
      %1358 = vmatpush.msra.mxu0 0.0
      %1359 = vmatpush.msra.mxu0 0.0
      %1360 = vmatpush.msra.mxu0 0.0
      %1361 = vmatpush.msra.mxu0 0.0
      %1362 = vmatpush.msra.mxu0 0.0
      %1363 = vmatpush.msra.mxu0 0.0
      %1364 = vmatpush.msra.mxu0 0.0
      %1365 = vmatpush.msra.mxu0 0.0
      %1366 = vmatpush.msra.mxu0 0.0
      %1367 = vmatpush.msra.mxu0 0.0
      %1368 = vmatpush.msra.mxu0 0.0
      %1369 = vmatpush.msra.mxu0 0.0
      %v1370 = vand.u32 %v540, 4294901760
      %v1371 = vsub.f32 %v540, %v1370
      %v1372 = vand.u32 %v1371, 4294901760
      %1373 = vmatpush.msra.mxu0 %v1372
      %v1374 = vand.u32 %v443, 4294901760
      %1375 = vmatmul.f32.gmra.mxu0 %v1374
      %v1376 = vpop.f32.mrf.mxu0
      %v1377 = vadd.f32 %v1167, %v1376
      %v1378 = vand.u32 %v446, 4294901760
      %1379 = vmatmul.f32.gmra.mxu0 %v1378
      %v1380 = vpop.f32.mrf.mxu0
      %v1381 = vadd.f32 %v1173, %v1380
      %v1382 = vand.u32 %v449, 4294901760
      %1383 = vmatmul.f32.gmra.mxu0 %v1382
      %v1384 = vpop.f32.mrf.mxu0
      %v1385 = vadd.f32 %v1179, %v1384
      %v1386 = vand.u32 %v452, 4294901760
      %1387 = vmatmul.f32.gmra.mxu0 %v1386
      %v1388 = vpop.f32.mrf.mxu0
      %v1389 = vadd.f32 %v1185, %v1388
      %v1390 = vand.u32 %v455, 4294901760
      %1391 = vmatmul.f32.gmra.mxu0 %v1390
      %v1392 = vpop.f32.mrf.mxu0
      %v1393 = vadd.f32 %v1191, %v1392
      %v1394 = vand.u32 %v458, 4294901760
      %1395 = vmatmul.f32.gmra.mxu0 %v1394
      %v1396 = vpop.f32.mrf.mxu0
      %v1397 = vadd.f32 %v1197, %v1396
      %v1398 = vand.u32 %v461, 4294901760
      %1399 = vmatmul.f32.gmra.mxu0 %v1398
      %v1400 = vpop.f32.mrf.mxu0
      %v1401 = vadd.f32 %v1203, %v1400
      %v1402 = vand.u32 %v464, 4294901760
      %1403 = vmatmul.f32.gmra.mxu0 %v1402
      %v1404 = vpop.f32.mrf.mxu0
      %v1405 = vadd.f32 %v1209, %v1404
      %v1406 = vand.u32 %v467, 4294901760
      %1407 = vmatmul.f32.gmra.mxu0 %v1406
      %v1408 = vpop.f32.mrf.mxu0
      %v1409 = vadd.f32 %v1215, %v1408
      %v1410 = vand.u32 %v470, 4294901760
      %1411 = vmatmul.f32.gmra.mxu0 %v1410
      %v1412 = vpop.f32.mrf.mxu0
      %v1413 = vadd.f32 %v1221, %v1412
      %v1414 = vand.u32 %v473, 4294901760
      %1415 = vmatmul.f32.gmra.mxu0 %v1414
      %v1416 = vpop.f32.mrf.mxu0
      %v1417 = vadd.f32 %v1227, %v1416
      %v1418 = vand.u32 %v476, 4294901760
      %1419 = vmatmul.f32.gmra.mxu0 %v1418
      %v1420 = vpop.f32.mrf.mxu0
      %v1421 = vadd.f32 %v1233, %v1420
      %v1422 = vand.u32 %v479, 4294901760
      %1423 = vmatmul.f32.gmra.mxu0 %v1422
      %v1424 = vpop.f32.mrf.mxu0
      %v1425 = vadd.f32 %v1239, %v1424
      %v1426 = vand.u32 %v482, 4294901760
      %1427 = vmatmul.f32.gmra.mxu0 %v1426
      %v1428 = vpop.f32.mrf.mxu0
      %v1429 = vadd.f32 %v1245, %v1428
      %v1430 = vand.u32 %v485, 4294901760
      %1431 = vmatmul.f32.gmra.mxu0 %v1430
      %v1432 = vpop.f32.mrf.mxu0
      %v1433 = vadd.f32 %v1251, %v1432
      %v1434 = vand.u32 %v488, 4294901760
      %1435 = vmatmul.f32.gmra.mxu0 %v1434
      %v1436 = vpop.f32.mrf.mxu0
      %v1437 = vadd.f32 %v1257, %v1436
      %v1438 = vand.u32 %v491, 4294901760
      %1439 = vmatmul.f32.gmra.mxu0 %v1438
      %v1440 = vpop.f32.mrf.mxu0
      %v1441 = vadd.f32 %v1263, %v1440
      %v1442 = vand.u32 %v494, 4294901760
      %1443 = vmatmul.f32.gmra.mxu0 %v1442
      %v1444 = vpop.f32.mrf.mxu0
      %v1445 = vadd.f32 %v1269, %v1444
      %v1446 = vand.u32 %v497, 4294901760
      %1447 = vmatmul.f32.gmra.mxu0 %v1446
      %v1448 = vpop.f32.mrf.mxu0
      %v1449 = vadd.f32 %v1275, %v1448
      %v1450 = vand.u32 %v500, 4294901760
      %1451 = vmatmul.f32.gmra.mxu0 %v1450
      %v1452 = vpop.f32.mrf.mxu0
      %v1453 = vadd.f32 %v1281, %v1452
      %v1454 = vand.u32 %v503, 4294901760
      %1455 = vmatmul.f32.gmra.mxu0 %v1454
      %v1456 = vpop.f32.mrf.mxu0
      %v1457 = vadd.f32 %v1287, %v1456
      %v1458 = vand.u32 %v506, 4294901760
      %1459 = vmatmul.f32.gmra.mxu0 %v1458
      %v1460 = vpop.f32.mrf.mxu0
      %v1461 = vadd.f32 %v1293, %v1460
      %v1462 = vand.u32 %v509, 4294901760
      %1463 = vmatmul.f32.gmra.mxu0 %v1462
      %v1464 = vpop.f32.mrf.mxu0
      %v1465 = vadd.f32 %v1299, %v1464
      %v1466 = vand.u32 %v512, 4294901760
      %1467 = vmatmul.f32.gmra.mxu0 %v1466
      %v1468 = vpop.f32.mrf.mxu0
      %v1469 = vadd.f32 %v1305, %v1468
      %v1470 = vand.u32 %v515, 4294901760
      %1471 = vmatmul.f32.gmra.mxu0 %v1470
      %v1472 = vpop.f32.mrf.mxu0
      %v1473 = vadd.f32 %v1311, %v1472
      %v1474 = vand.u32 %v518, 4294901760
      %1475 = vmatmul.f32.gmra.mxu0 %v1474
      %v1476 = vpop.f32.mrf.mxu0
      %v1477 = vadd.f32 %v1317, %v1476
      %v1478 = vand.u32 %v521, 4294901760
      %1479 = vmatmul.f32.gmra.mxu0 %v1478
      %v1480 = vpop.f32.mrf.mxu0
      %v1481 = vadd.f32 %v1323, %v1480
      %v1482 = vand.u32 %v524, 4294901760
      %1483 = vmatmul.f32.gmra.mxu0 %v1482
      %v1484 = vpop.f32.mrf.mxu0
      %v1485 = vadd.f32 %v1329, %v1484
      %v1486 = vand.u32 %v527, 4294901760
      %1487 = vmatmul.f32.gmra.mxu0 %v1486
      %v1488 = vpop.f32.mrf.mxu0
      %v1489 = vadd.f32 %v1335, %v1488
      %v1490 = vand.u32 %v530, 4294901760
      %1491 = vmatmul.f32.gmra.mxu0 %v1490
      %v1492 = vpop.f32.mrf.mxu0
      %v1493 = vadd.f32 %v1341, %v1492
      %v1494 = vand.u32 %v533, 4294901760
      %1495 = vmatmul.f32.gmra.mxu0 %v1494
      %v1496 = vpop.f32.mrf.mxu0
      %v1497 = vadd.f32 %v1347, %v1496
      %v1498 = vand.u32 %v536, 4294901760
      %1499 = vmatmul.f32.gmra.mxu0 %v1498
      %v1500 = vpop.f32.mrf.mxu0
      %v1501 = vadd.f32 %v1353, %v1500
      %1502 = vdwg.mxu0
      %1503 = vmatpush.msra.mxu0 0.0
      %1504 = vmatpush.msra.mxu0 0.0
      %1505 = vmatpush.msra.mxu0 0.0
      %1506 = vmatpush.msra.mxu0 0.0
      %1507 = vmatpush.msra.mxu0 0.0
      %1508 = vmatpush.msra.mxu0 0.0
      %1509 = vmatpush.msra.mxu0 0.0
      %1510 = vmatpush.msra.mxu0 0.0
      %1511 = vmatpush.msra.mxu0 0.0
      %1512 = vmatpush.msra.mxu0 0.0
      %1513 = vmatpush.msra.mxu0 0.0
      %1514 = vmatpush.msra.mxu0 0.0
      %1515 = vmatpush.msra.mxu0 0.0
      %1516 = vmatpush.msra.mxu0 0.0
      %1517 = vmatpush.msra.mxu0 0.0
      %v1518 = vand.u32 %v540, 4294901760
      %1519 = vmatpush.msra.mxu0 %v1518
      %v1520 = vand.u32 %v443, 4294901760
      %1521 = vmatmul.f32.gmra.mxu0 %v1520
      %v1522 = vpop.f32.mrf.mxu0
      %v1523 = vadd.f32 %v1377, %v1522
      %v1524 = vand.u32 %v446, 4294901760
      %1525 = vmatmul.f32.gmra.mxu0 %v1524
      %v1526 = vpop.f32.mrf.mxu0
      %v1527 = vadd.f32 %v1381, %v1526
      %v1528 = vand.u32 %v449, 4294901760
      %1529 = vmatmul.f32.gmra.mxu0 %v1528
      %v1530 = vpop.f32.mrf.mxu0
      %v1531 = vadd.f32 %v1385, %v1530
      %v1532 = vand.u32 %v452, 4294901760
      %1533 = vmatmul.f32.gmra.mxu0 %v1532
      %v1534 = vpop.f32.mrf.mxu0
      %v1535 = vadd.f32 %v1389, %v1534
      %v1536 = vand.u32 %v455, 4294901760
      %1537 = vmatmul.f32.gmra.mxu0 %v1536
      %v1538 = vpop.f32.mrf.mxu0
      %v1539 = vadd.f32 %v1393, %v1538
      %v1540 = vand.u32 %v458, 4294901760
      %1541 = vmatmul.f32.gmra.mxu0 %v1540
      %v1542 = vpop.f32.mrf.mxu0
      %v1543 = vadd.f32 %v1397, %v1542
      %v1544 = vand.u32 %v461, 4294901760
      %1545 = vmatmul.f32.gmra.mxu0 %v1544
      %v1546 = vpop.f32.mrf.mxu0
      %v1547 = vadd.f32 %v1401, %v1546
      %v1548 = vand.u32 %v464, 4294901760
      %1549 = vmatmul.f32.gmra.mxu0 %v1548
      %v1550 = vpop.f32.mrf.mxu0
      %v1551 = vadd.f32 %v1405, %v1550
      %v1552 = vand.u32 %v467, 4294901760
      %1553 = vmatmul.f32.gmra.mxu0 %v1552
      %v1554 = vpop.f32.mrf.mxu0
      %v1555 = vadd.f32 %v1409, %v1554
      %v1556 = vand.u32 %v470, 4294901760
      %1557 = vmatmul.f32.gmra.mxu0 %v1556
      %v1558 = vpop.f32.mrf.mxu0
      %v1559 = vadd.f32 %v1413, %v1558
      %v1560 = vand.u32 %v473, 4294901760
      %1561 = vmatmul.f32.gmra.mxu0 %v1560
      %v1562 = vpop.f32.mrf.mxu0
      %v1563 = vadd.f32 %v1417, %v1562
      %v1564 = vand.u32 %v476, 4294901760
      %1565 = vmatmul.f32.gmra.mxu0 %v1564
      %v1566 = vpop.f32.mrf.mxu0
      %v1567 = vadd.f32 %v1421, %v1566
      %v1568 = vand.u32 %v479, 4294901760
      %1569 = vmatmul.f32.gmra.mxu0 %v1568
      %v1570 = vpop.f32.mrf.mxu0
      %v1571 = vadd.f32 %v1425, %v1570
      %v1572 = vand.u32 %v482, 4294901760
      %1573 = vmatmul.f32.gmra.mxu0 %v1572
      %v1574 = vpop.f32.mrf.mxu0
      %v1575 = vadd.f32 %v1429, %v1574
      %v1576 = vand.u32 %v485, 4294901760
      %1577 = vmatmul.f32.gmra.mxu0 %v1576
      %v1578 = vpop.f32.mrf.mxu0
      %v1579 = vadd.f32 %v1433, %v1578
      %v1580 = vand.u32 %v488, 4294901760
      %1581 = vmatmul.f32.gmra.mxu0 %v1580
      %v1582 = vpop.f32.mrf.mxu0
      %v1583 = vadd.f32 %v1437, %v1582
      %v1584 = vand.u32 %v491, 4294901760
      %1585 = vmatmul.f32.gmra.mxu0 %v1584
      %v1586 = vpop.f32.mrf.mxu0
      %v1587 = vadd.f32 %v1441, %v1586
      %v1588 = vand.u32 %v494, 4294901760
      %1589 = vmatmul.f32.gmra.mxu0 %v1588
      %v1590 = vpop.f32.mrf.mxu0
      %v1591 = vadd.f32 %v1445, %v1590
      %v1592 = vand.u32 %v497, 4294901760
      %1593 = vmatmul.f32.gmra.mxu0 %v1592
      %v1594 = vpop.f32.mrf.mxu0
      %v1595 = vadd.f32 %v1449, %v1594
      %v1596 = vand.u32 %v500, 4294901760
      %1597 = vmatmul.f32.gmra.mxu0 %v1596
      %v1598 = vpop.f32.mrf.mxu0
      %v1599 = vadd.f32 %v1453, %v1598
      %v1600 = vand.u32 %v503, 4294901760
      %1601 = vmatmul.f32.gmra.mxu0 %v1600
      %v1602 = vpop.f32.mrf.mxu0
      %v1603 = vadd.f32 %v1457, %v1602
      %v1604 = vand.u32 %v506, 4294901760
      %1605 = vmatmul.f32.gmra.mxu0 %v1604
      %v1606 = vpop.f32.mrf.mxu0
      %v1607 = vadd.f32 %v1461, %v1606
      %v1608 = vand.u32 %v509, 4294901760
      %1609 = vmatmul.f32.gmra.mxu0 %v1608
      %v1610 = vpop.f32.mrf.mxu0
      %v1611 = vadd.f32 %v1465, %v1610
      %v1612 = vand.u32 %v512, 4294901760
      %1613 = vmatmul.f32.gmra.mxu0 %v1612
      %v1614 = vpop.f32.mrf.mxu0
      %v1615 = vadd.f32 %v1469, %v1614
      %v1616 = vand.u32 %v515, 4294901760
      %1617 = vmatmul.f32.gmra.mxu0 %v1616
      %v1618 = vpop.f32.mrf.mxu0
      %v1619 = vadd.f32 %v1473, %v1618
      %v1620 = vand.u32 %v518, 4294901760
      %1621 = vmatmul.f32.gmra.mxu0 %v1620
      %v1622 = vpop.f32.mrf.mxu0
      %v1623 = vadd.f32 %v1477, %v1622
      %v1624 = vand.u32 %v521, 4294901760
      %1625 = vmatmul.f32.gmra.mxu0 %v1624
      %v1626 = vpop.f32.mrf.mxu0
      %v1627 = vadd.f32 %v1481, %v1626
      %v1628 = vand.u32 %v524, 4294901760
      %1629 = vmatmul.f32.gmra.mxu0 %v1628
      %v1630 = vpop.f32.mrf.mxu0
      %v1631 = vadd.f32 %v1485, %v1630
      %v1632 = vand.u32 %v527, 4294901760
      %1633 = vmatmul.f32.gmra.mxu0 %v1632
      %v1634 = vpop.f32.mrf.mxu0
      %v1635 = vadd.f32 %v1489, %v1634
      %v1636 = vand.u32 %v530, 4294901760
      %1637 = vmatmul.f32.gmra.mxu0 %v1636
      %v1638 = vpop.f32.mrf.mxu0
      %v1639 = vadd.f32 %v1493, %v1638
      %v1640 = vand.u32 %v533, 4294901760
      %1641 = vmatmul.f32.gmra.mxu0 %v1640
      %v1642 = vpop.f32.mrf.mxu0
      %v1643 = vadd.f32 %v1497, %v1642
      %v1644 = vand.u32 %v536, 4294901760
      %1645 = vmatmul.f32.gmra.mxu0 %v1644
      %v1646 = vpop.f32.mrf.mxu0
      %v1647 = vadd.f32 %v1501, %v1646
      %1648 = vdwg.mxu0
      %vm1649 = vcmask 64512
      %1650 = vst.msk [vmem:[%s264] sm:$0xff] %vm1649, %v1523
      %1651 = vst.msk [vmem:[%s264 + $0x8] sm:$0xff] %vm1649, %v1527
      %1652 = vst.msk [vmem:[%s264 + $0x10] sm:$0xff] %vm1649, %v1531
      %1653 = vst.msk [vmem:[%s264 + $0x18] sm:$0xff] %vm1649, %v1535
      %1654 = vst.msk [vmem:[%s264 + $0x20] sm:$0xff] %vm1649, %v1539
      %1655 = vst.msk [vmem:[%s264 + $0x28] sm:$0xff] %vm1649, %v1543
      %1656 = vst.msk [vmem:[%s264 + $0x30] sm:$0xff] %vm1649, %v1547
      %1657 = vst.msk [vmem:[%s264 + $0x38] sm:$0xff] %vm1649, %v1551
      %1658 = vst.msk [vmem:[%s264 + $0x40] sm:$0xff] %vm1649, %v1555
      %1659 = vst.msk [vmem:[%s264 + $0x48] sm:$0xff] %vm1649, %v1559
      %1660 = vst.msk [vmem:[%s264 + $0x50] sm:$0xff] %vm1649, %v1563
      %1661 = vst.msk [vmem:[%s264 + $0x58] sm:$0xff] %vm1649, %v1567
      %1662 = vst.msk [vmem:[%s264 + $0x60] sm:$0xff] %vm1649, %v1571
      %1663 = vst.msk [vmem:[%s264 + $0x68] sm:$0xff] %vm1649, %v1575
      %1664 = vst.msk [vmem:[%s264 + $0x70] sm:$0xff] %vm1649, %v1579
      %1665 = vst.msk [vmem:[%s264 + $0x78] sm:$0xff] %vm1649, %v1583
      %1666 = vst.msk [vmem:[%s264 + $0x80] sm:$0xff] %vm1649, %v1587
      %1667 = vst.msk [vmem:[%s264 + $0x88] sm:$0xff] %vm1649, %v1591
      %1668 = vst.msk [vmem:[%s264 + $0x90] sm:$0xff] %vm1649, %v1595
      %1669 = vst.msk [vmem:[%s264 + $0x98] sm:$0xff] %vm1649, %v1599
      %1670 = vst.msk [vmem:[%s264 + $0xa0] sm:$0xff] %vm1649, %v1603
      %1671 = vst.msk [vmem:[%s264 + $0xa8] sm:$0xff] %vm1649, %v1607
      %1672 = vst.msk [vmem:[%s264 + $0xb0] sm:$0xff] %vm1649, %v1611
      %1673 = vst.msk [vmem:[%s264 + $0xb8] sm:$0xff] %vm1649, %v1615
      %1674 = vst.msk [vmem:[%s264 + $0xc0] sm:$0xff] %vm1649, %v1619
      %1675 = vst.msk [vmem:[%s264 + $0xc8] sm:$0xff] %vm1649, %v1623
      %1676 = vst.msk [vmem:[%s264 + $0xd0] sm:$0xff] %vm1649, %v1627
      %1677 = vst.msk [vmem:[%s264 + $0xd8] sm:$0xff] %vm1649, %v1631
      %1678 = vst.msk [vmem:[%s264 + $0xe0] sm:$0xff] %vm1649, %v1635
      %1679 = vst.msk [vmem:[%s264 + $0xe8] sm:$0xff] %vm1649, %v1639
      %1680 = vst.msk [vmem:[%s264 + $0xf0] sm:$0xff] %vm1649, %v1643
      %1681 = vst.msk [vmem:[%s264 + $0xf8] sm:$0xff] %vm1649, %v1647
      %v1682 = vsel %vm1649, %v1523, 0.0
      %v1683 = vsel %vm1649, %v1527, 0.0
      %v1684 = vadd.f32 %v1682, %v1683
      %v1685 = vsel %vm1649, %v1531, 0.0
      %v1686 = vadd.f32 %v1684, %v1685
      %v1687 = vsel %vm1649, %v1535, 0.0
      %v1688 = vadd.f32 %v1686, %v1687
      %v1689 = vsel %vm1649, %v1539, 0.0
      %v1690 = vadd.f32 %v1688, %v1689
      %v1691 = vsel %vm1649, %v1543, 0.0
      %v1692 = vadd.f32 %v1690, %v1691
      %v1693 = vsel %vm1649, %v1547, 0.0
      %v1694 = vadd.f32 %v1692, %v1693
      %v1695 = vsel %vm1649, %v1551, 0.0
      %v1696 = vadd.f32 %v1694, %v1695
      %v1697 = vsel %vm1649, %v1555, 0.0
      %v1698 = vadd.f32 %v1696, %v1697
      %v1699 = vsel %vm1649, %v1559, 0.0
      %v1700 = vadd.f32 %v1698, %v1699
      %v1701 = vsel %vm1649, %v1563, 0.0
      %v1702 = vadd.f32 %v1700, %v1701
      %v1703 = vsel %vm1649, %v1567, 0.0
      %v1704 = vadd.f32 %v1702, %v1703
      %v1705 = vsel %vm1649, %v1571, 0.0
      %v1706 = vadd.f32 %v1704, %v1705
      %v1707 = vsel %vm1649, %v1575, 0.0
      %v1708 = vadd.f32 %v1706, %v1707
      %v1709 = vsel %vm1649, %v1579, 0.0
      %v1710 = vadd.f32 %v1708, %v1709
      %v1711 = vsel %vm1649, %v1583, 0.0
      %v1712 = vadd.f32 %v1710, %v1711
      %v1713 = vsel %vm1649, %v1587, 0.0
      %v1714 = vadd.f32 %v1712, %v1713
      %v1715 = vsel %vm1649, %v1591, 0.0
      %v1716 = vadd.f32 %v1714, %v1715
      %v1717 = vsel %vm1649, %v1595, 0.0
      %v1718 = vadd.f32 %v1716, %v1717
      %v1719 = vsel %vm1649, %v1599, 0.0
      %v1720 = vadd.f32 %v1718, %v1719
      %v1721 = vsel %vm1649, %v1603, 0.0
      %v1722 = vadd.f32 %v1720, %v1721
      %v1723 = vsel %vm1649, %v1607, 0.0
      %v1724 = vadd.f32 %v1722, %v1723
      %v1725 = vsel %vm1649, %v1611, 0.0
      %v1726 = vadd.f32 %v1724, %v1725
      %v1727 = vsel %vm1649, %v1615, 0.0
      %v1728 = vadd.f32 %v1726, %v1727
      %v1729 = vsel %vm1649, %v1619, 0.0
      %v1730 = vadd.f32 %v1728, %v1729
      %v1731 = vsel %vm1649, %v1623, 0.0
      %v1732 = vadd.f32 %v1730, %v1731
      %v1733 = vsel %vm1649, %v1627, 0.0
      %v1734 = vadd.f32 %v1732, %v1733
      %v1735 = vsel %vm1649, %v1631, 0.0
      %v1736 = vadd.f32 %v1734, %v1735
      %v1737 = vsel %vm1649, %v1635, 0.0
      %v1738 = vadd.f32 %v1736, %v1737
      %v1739 = vsel %vm1649, %v1639, 0.0
      %v1740 = vadd.f32 %v1738, %v1739
      %v1741 = vsel %vm1649, %v1643, 0.0
      %v1742 = vadd.f32 %v1740, %v1741
      %v1743 = vsel %vm1649, %v1647, 0.0
      %v1744 = vadd.f32 %v1742, %v1743
      %v1745 = vrot.slane %v1744, 4
      %v1746 = vadd.f32 %v1744, %v1745
      %v1747 = vrot.slane %v1746, 2
      %v1748 = vadd.f32 %v1746, %v1747
      %v1749 = vrot.slane %v1748, 1
      %v1750 = vadd.f32 %v1748, %v1749
      %vm1751 = vcmask 57344
      %1752 = vst.msk [vmem:[%s268] sm:$0x1] %vm1751, %v1750
      %v1753 = vmul.f32 %v1523, %v1523
      %v1754 = vmul.f32 %v1527, %v1527
      %v1755 = vmul.f32 %v1531, %v1531
      %v1756 = vmul.f32 %v1535, %v1535
      %v1757 = vmul.f32 %v1539, %v1539
      %v1758 = vmul.f32 %v1543, %v1543
      %v1759 = vmul.f32 %v1547, %v1547
      %v1760 = vmul.f32 %v1551, %v1551
      %v1761 = vmul.f32 %v1555, %v1555
      %v1762 = vmul.f32 %v1559, %v1559
      %v1763 = vmul.f32 %v1563, %v1563
      %v1764 = vmul.f32 %v1567, %v1567
      %v1765 = vmul.f32 %v1571, %v1571
      %v1766 = vmul.f32 %v1575, %v1575
      %v1767 = vmul.f32 %v1579, %v1579
      %v1768 = vmul.f32 %v1583, %v1583
      %v1769 = vmul.f32 %v1587, %v1587
      %v1770 = vmul.f32 %v1591, %v1591
      %v1771 = vmul.f32 %v1595, %v1595
      %v1772 = vmul.f32 %v1599, %v1599
      %v1773 = vmul.f32 %v1603, %v1603
      %v1774 = vmul.f32 %v1607, %v1607
      %v1775 = vmul.f32 %v1611, %v1611
      %v1776 = vmul.f32 %v1615, %v1615
      %v1777 = vmul.f32 %v1619, %v1619
      %v1778 = vmul.f32 %v1623, %v1623
      %v1779 = vmul.f32 %v1627, %v1627
      %v1780 = vmul.f32 %v1631, %v1631
      %v1781 = vmul.f32 %v1635, %v1635
      %v1782 = vmul.f32 %v1639, %v1639
      %v1783 = vmul.f32 %v1643, %v1643
      %v1784 = vmul.f32 %v1647, %v1647
      %v1785 = vsel %vm1649, %v1753, 0.0
      %v1786 = vsel %vm1649, %v1754, 0.0
      %v1787 = vadd.f32 %v1785, %v1786
      %v1788 = vsel %vm1649, %v1755, 0.0
      %v1789 = vadd.f32 %v1787, %v1788
      %v1790 = vsel %vm1649, %v1756, 0.0
      %v1791 = vadd.f32 %v1789, %v1790
      %v1792 = vsel %vm1649, %v1757, 0.0
      %v1793 = vadd.f32 %v1791, %v1792
      %v1794 = vsel %vm1649, %v1758, 0.0
      %v1795 = vadd.f32 %v1793, %v1794
      %v1796 = vsel %vm1649, %v1759, 0.0
      %v1797 = vadd.f32 %v1795, %v1796
      %v1798 = vsel %vm1649, %v1760, 0.0
      %v1799 = vadd.f32 %v1797, %v1798
      %v1800 = vsel %vm1649, %v1761, 0.0
      %v1801 = vadd.f32 %v1799, %v1800
      %v1802 = vsel %vm1649, %v1762, 0.0
      %v1803 = vadd.f32 %v1801, %v1802
      %v1804 = vsel %vm1649, %v1763, 0.0
      %v1805 = vadd.f32 %v1803, %v1804
      %v1806 = vsel %vm1649, %v1764, 0.0
      %v1807 = vadd.f32 %v1805, %v1806
      %v1808 = vsel %vm1649, %v1765, 0.0
      %v1809 = vadd.f32 %v1807, %v1808
      %v1810 = vsel %vm1649, %v1766, 0.0
      %v1811 = vadd.f32 %v1809, %v1810
      %v1812 = vsel %vm1649, %v1767, 0.0
      %v1813 = vadd.f32 %v1811, %v1812
      %v1814 = vsel %vm1649, %v1768, 0.0
      %v1815 = vadd.f32 %v1813, %v1814
      %v1816 = vsel %vm1649, %v1769, 0.0
      %v1817 = vadd.f32 %v1815, %v1816
      %v1818 = vsel %vm1649, %v1770, 0.0
      %v1819 = vadd.f32 %v1817, %v1818
      %v1820 = vsel %vm1649, %v1771, 0.0
      %v1821 = vadd.f32 %v1819, %v1820
      %v1822 = vsel %vm1649, %v1772, 0.0
      %v1823 = vadd.f32 %v1821, %v1822
      %v1824 = vsel %vm1649, %v1773, 0.0
      %v1825 = vadd.f32 %v1823, %v1824
      %v1826 = vsel %vm1649, %v1774, 0.0
      %v1827 = vadd.f32 %v1825, %v1826
      %v1828 = vsel %vm1649, %v1775, 0.0
      %v1829 = vadd.f32 %v1827, %v1828
      %v1830 = vsel %vm1649, %v1776, 0.0
      %v1831 = vadd.f32 %v1829, %v1830
      %v1832 = vsel %vm1649, %v1777, 0.0
      %v1833 = vadd.f32 %v1831, %v1832
      %v1834 = vsel %vm1649, %v1778, 0.0
      %v1835 = vadd.f32 %v1833, %v1834
      %v1836 = vsel %vm1649, %v1779, 0.0
      %v1837 = vadd.f32 %v1835, %v1836
      %v1838 = vsel %vm1649, %v1780, 0.0
      %v1839 = vadd.f32 %v1837, %v1838
      %v1840 = vsel %vm1649, %v1781, 0.0
      %v1841 = vadd.f32 %v1839, %v1840
      %v1842 = vsel %vm1649, %v1782, 0.0
      %v1843 = vadd.f32 %v1841, %v1842
      %v1844 = vsel %vm1649, %v1783, 0.0
      %v1845 = vadd.f32 %v1843, %v1844
      %v1846 = vsel %vm1649, %v1784, 0.0
      %v1847 = vadd.f32 %v1845, %v1846
      %v1848 = vrot.slane %v1847, 4
      %v1849 = vadd.f32 %v1847, %v1848
      %v1850 = vrot.slane %v1849, 2
      %v1851 = vadd.f32 %v1849, %v1850
      %v1852 = vrot.slane %v1851, 1
      %v1853 = vadd.f32 %v1851, %v1852
      %1854 = vst.msk [vmem:[%s271] sm:$0x1] %vm1751, %v1853
      %s1855 = smul.u32 32, %s18
      %p1856 = scmp.lt.s32.totalorder %s1855, 63
      %s1857 = scalar_select %p1856, %s1855, 63
      %s1858 = smul.addr %s1857, 8
      %s1859 = scalar_lea.vmem %s4, %s1858
      %p1860 = scmp.lt.s32.totalorder %s18, 1
      %s1861 = scalar_select %p1860, %s18, 1
      %s1862 = scalar_lea.vmem %s5, %s1861
      %p1863 = scmp.lt.s32.totalorder %s18, 1
      %s1864 = scalar_select %p1863, %s18, 1
      %s1865 = scalar_lea.vmem %s6, %s1864
      // Predicated region
      $region37: #{depthwise_separable_conv.4} parent=35 // pred_check
        %p1866 = pneg %p125
      $region38: #{depthwise_separable_conv.4} parent=35 // pred_check_branch
        %1868 = sbr.rel (%p1866) target = $region40
      $region39: #{depthwise_separable_conv.4} parent=35 // pred_region
        %s1869 = smul.u32 32, %s18
      $region40: #{depthwise_separable_conv.4} parent=35 // pred_fallthru
        _
      // Predicated region
      $region41: #{depthwise_separable_conv.4} parent=35 // pred_check
        %p1870 = pneg %p151
      $region42: #{depthwise_separable_conv.4} parent=35 // pred_check_branch
        %1872 = sbr.rel (%p1870) target = $region44
      $region43: #{depthwise_separable_conv.4} parent=35 // pred_region
        _
      $region44: #{depthwise_separable_conv.4} parent=35 // pred_fallthru
        _
      // Predicated region
      $region45: #{depthwise_separable_conv.4} parent=35 // pred_check
        %p1873 = pneg %p177
      $region46: #{depthwise_separable_conv.4} parent=35 // pred_check_branch
        %1875 = sbr.rel (%p1873) target = $region48
      $region47: #{depthwise_separable_conv.4} parent=35 // pred_region
        _
      $region48: #{depthwise_separable_conv.4} parent=35 // pred_fallthru
        _
    $region36: #{depthwise_separable_conv.4} parent=5 // pred_fallthru
      _
    %p1876 = scmp.le.s32.totalorder 2, %s13
    // Predicated region
    $region49: #{depthwise_separable_conv.4} parent=5 // pred_check
      %p1877 = pneg %p1876
    $region50: #{depthwise_separable_conv.4} parent=5 // pred_check_branch
      %1879 = sbr.rel (%p1877) target = $region52
    $region51: #{depthwise_separable_conv.4} parent=5 // pred_region
      %s1880 = ssub.s32 %s13, 2
      // Predicated region
      $region53: #{depthwise_separable_conv.4} parent=51 // pred_check
        %p1881 = pneg %p131
      $region54: #{depthwise_separable_conv.4} parent=51 // pred_check_branch
        %1883 = sbr.rel (%p1881) target = $region56
      $region55: #{depthwise_separable_conv.4} parent=51 // pred_region
        %s1884 = smul.u32 32, %s19
        %p1885 = scmp.lt.s32.totalorder %s1884, 63
        %s1886 = scalar_select %p1885, %s1884, 63
        %s1887 = smul.addr %s1886, 8
        %s1888 = scalar_lea.vmem %s4, %s1887
      $region56: #{depthwise_separable_conv.4} parent=51 // pred_fallthru
        _
      // Predicated region
      $region57: #{depthwise_separable_conv.4} parent=51 // pred_check
        %p1889 = pneg %p157
      $region58: #{depthwise_separable_conv.4} parent=51 // pred_check_branch
        %1891 = sbr.rel (%p1889) target = $region60
      $region59: #{depthwise_separable_conv.4} parent=51 // pred_region
        %p1892 = scmp.lt.s32.totalorder %s19, 1
        %s1893 = scalar_select %p1892, %s19, 1
        %s1894 = scalar_lea.vmem %s5, %s1893
      $region60: #{depthwise_separable_conv.4} parent=51 // pred_fallthru
        _
      // Predicated region
      $region61: #{depthwise_separable_conv.4} parent=51 // pred_check
        %p1895 = pneg %p183
      $region62: #{depthwise_separable_conv.4} parent=51 // pred_check_branch
        %1897 = sbr.rel (%p1895) target = $region64
      $region63: #{depthwise_separable_conv.4} parent=51 // pred_region
        %p1898 = scmp.lt.s32.totalorder %s19, 1
        %s1899 = scalar_select %p1898, %s19, 1
        %s1900 = scalar_lea.vmem %s6, %s1899
      $region64: #{depthwise_separable_conv.4} parent=51 // pred_fallthru
        _
    $region52: #{depthwise_separable_conv.4} parent=5 // pred_fallthru
      _
  $region6: #{depthwise_separable_conv.4} parent=0 // loop_footer
    %s17 = sadd.s32 1, %s13
  $region7: #{depthwise_separable_conv.4} parent=0 // loop_footer_branch
    %12 = sbr.rel target = $region3
  $region8: #{depthwise_separable_conv.4} parent=0 // loop_exit
    _

// kernel: depthwise_separable_conv.3
$region0: #{depthwise_separable_conv.3}
  #allocation0 [shape = 'u32[]', space=smem, size = 0x4, offset = 0x4, fixed_abs, tag = 'smem constant byte address 0x4 - core index']
  #allocation1 [shape = 'u32[72,128]{1,0:T(1,128)}', space=vmem, size = 0x9000, scoped, tag = 'internal scratch']
  %s0 = inlined_call_operand.vmem [shape: f32[2,18,18,4], index: 0, kind: input, shape index: {}]
  %s1 = inlined_call_operand.vmem [shape: f32[9,4], index: 1, kind: input, shape index: {}]
  %s2 = inlined_call_operand.vmem [shape: f32[2,256,4], index: 2, kind: output, shape index: {0}]
  %s3 = inlined_call_operand.vmem [shape: f32[2,1,4], index: 3, kind: output, shape index: {1}]
  %s4 = inlined_call_operand.vmem [shape: f32[2,1,4], index: 4, kind: output, shape index: {2}]
  %5 = xla_tuple %s2, %s3, %s4
  %s6 = sld [smem:[#allocation0]]
  $region57: #{depthwise_separable_conv.3} parent=0
    _
  %s8 = ssub.s32 1, %s6
  %s9 = scalar_select 0, %s8, %s6
  loop: start=0, step=1, limit=4
  $region2: #{depthwise_separable_conv.3} parent=0 // loop_pre_header
    _
  $region3: #{depthwise_separable_conv.3} parent=0 // loop_header
    %s11 = sphi 0, %s15
    %p12 = scmp.ge.s32.totalorder %s11, 4
    %s21 = sphi 0, %s23
    %s24 = sphi 0, %s21
    %s25 = sphi 0, %s24
    %s41 = sphi 0, %s25
    %s45 = sphi 0, %s45
    %s47 = sphi 0, %s45
    %s48 = sphi 0, %s47
    %s62 = sphi 0, %s48
    %s68 = sphi 0, %s70
    %s71 = sphi 0, %s68
    %s72 = sphi 0, %s71
    %s88 = sphi 0, %s72
    %s94 = sphi 0, %s96
    %s97 = sphi 0, %s94
    %s98 = sphi 0, %s97
    %s114 = sphi 0, %s98
    %s120 = sphi 0, %s122
    %s123 = sphi 0, %s120
    %s124 = sphi 0, %s123
    %s140 = sphi 0, %s124
  $region4: #{depthwise_separable_conv.3} parent=0 // loop_header_branch
    %14 = sbr.rel (%p12) target = $region8
  $region5: #{depthwise_separable_conv.3} parent=0 // loop_body
    %s16 = ssub.s32 %s11, 1
    %s17 = ssub.s32 %s11, 2
    %s18 = sadd.s32 %s11, 1
    %s19 = ssub.s32 %s11, %s18
    %p20 = scmp.eq.s32.totalorder %s19, 0
    %s22 = sadd.s32 %s21, 1
    %s23 = scalar_select %p20, %s21, %s22
    %p26 = pneg %p20
    %p27 = scmp.eq.s32.totalorder %s11, 1
    %p28 = por %p26, %p27
    %p29 = scmp.ne.s32.totalorder %s21, %s24
    %p30 = scmp.eq.s32.totalorder %s11, 0
    %p31 = por %p29, %p30
    %p32 = scmp.ne.s32.totalorder %s21, %s24
    %p33 = scmp.eq.s32.totalorder %s16, 1
    %p34 = por %p32, %p33
    %p35 = scmp.ne.s32.totalorder %s24, %s25
    %p36 = scmp.eq.s32.totalorder %s16, 0
    %p37 = por %p35, %p36
    %p38 = scmp.ne.s32.totalorder %s24, %s25
    %p39 = scmp.eq.s32.totalorder %s17, 1
    %p40 = por %p38, %p39
    %p42 = scmp.ne.s32.totalorder %s25, %s41
    %p43 = scmp.eq.s32.totalorder %s17, 0
    %p44 = por %p42, %p43
    %s46 = sadd.s32 %s45, 1
    %p49 = scmp.eq.s32.totalorder %s11, 1
    %p50 = scmp.ne.s32.totalorder %s45, %s47
    %p51 = scmp.eq.s32.totalorder %s11, 0
    %p52 = por %p50, %p51
    %p53 = scmp.ne.s32.totalorder %s45, %s47
    %p54 = scmp.eq.s32.totalorder %s16, 1
    %p55 = por %p53, %p54
    %p56 = scmp.ne.s32.totalorder %s47, %s48
    %p57 = scmp.eq.s32.totalorder %s16, 0
    %p58 = por %p56, %p57
    %p59 = scmp.ne.s32.totalorder %s47, %s48
    %p60 = scmp.eq.s32.totalorder %s17, 1
    %p61 = por %p59, %p60
    %p63 = scmp.ne.s32.totalorder %s48, %s62
    %p64 = scmp.eq.s32.totalorder %s17, 0
    %p65 = por %p63, %p64
    %s66 = ssub.s32 %s11, %s18
    %p67 = scmp.eq.s32.totalorder %s66, 0
    %s69 = sadd.s32 %s68, 1
    %s70 = scalar_select %p67, %s68, %s69
    %p73 = pneg %p67
    %p74 = scmp.eq.s32.totalorder %s11, 1
    %p75 = por %p73, %p74
    %p76 = scmp.ne.s32.totalorder %s68, %s71
    %p77 = scmp.eq.s32.totalorder %s11, 0
    %p78 = por %p76, %p77
    %p79 = scmp.ne.s32.totalorder %s68, %s71
    %p80 = scmp.eq.s32.totalorder %s16, 1
    %p81 = por %p79, %p80
    %p82 = scmp.ne.s32.totalorder %s71, %s72
    %p83 = scmp.eq.s32.totalorder %s16, 0
    %p84 = por %p82, %p83
    %p85 = scmp.ne.s32.totalorder %s71, %s72
    %p86 = scmp.eq.s32.totalorder %s17, 1
    %p87 = por %p85, %p86
    %p89 = scmp.ne.s32.totalorder %s72, %s88
    %p90 = scmp.eq.s32.totalorder %s17, 0
    %p91 = por %p89, %p90
    %s92 = ssub.s32 %s11, %s18
    %p93 = scmp.eq.s32.totalorder %s92, 0
    %s95 = sadd.s32 %s94, 1
    %s96 = scalar_select %p93, %s94, %s95
    %p99 = pneg %p93
    %p100 = scmp.eq.s32.totalorder %s11, 1
    %p101 = por %p99, %p100
    %p102 = scmp.ne.s32.totalorder %s94, %s97
    %p103 = scmp.eq.s32.totalorder %s11, 0
    %p104 = por %p102, %p103
    %p105 = scmp.ne.s32.totalorder %s94, %s97
    %p106 = scmp.eq.s32.totalorder %s16, 1
    %p107 = por %p105, %p106
    %p108 = scmp.ne.s32.totalorder %s97, %s98
    %p109 = scmp.eq.s32.totalorder %s16, 0
    %p110 = por %p108, %p109
    %p111 = scmp.ne.s32.totalorder %s97, %s98
    %p112 = scmp.eq.s32.totalorder %s17, 1
    %p113 = por %p111, %p112
    %p115 = scmp.ne.s32.totalorder %s98, %s114
    %p116 = scmp.eq.s32.totalorder %s17, 0
    %p117 = por %p115, %p116
    %s118 = ssub.s32 %s11, %s18
    %p119 = scmp.eq.s32.totalorder %s118, 0
    %s121 = sadd.s32 %s120, 1
    %s122 = scalar_select %p119, %s120, %s121
    %p125 = pneg %p119
    %p126 = scmp.eq.s32.totalorder %s11, 1
    %p127 = por %p125, %p126
    %p128 = scmp.ne.s32.totalorder %s120, %s123
    %p129 = scmp.eq.s32.totalorder %s11, 0
    %p130 = por %p128, %p129
    %p131 = scmp.ne.s32.totalorder %s120, %s123
    %p132 = scmp.eq.s32.totalorder %s16, 1
    %p133 = por %p131, %p132
    %p134 = scmp.ne.s32.totalorder %s123, %s124
    %p135 = scmp.eq.s32.totalorder %s16, 0
    %p136 = por %p134, %p135
    %p137 = scmp.ne.s32.totalorder %s123, %s124
    %p138 = scmp.eq.s32.totalorder %s17, 1
    %p139 = por %p137, %p138
    %p141 = scmp.ne.s32.totalorder %s124, %s140
    %p142 = scmp.eq.s32.totalorder %s17, 0
    %p143 = por %p141, %p142
    %p144 = scmp.le.s32.totalorder 1, %s11
    %p145 = scmp.lt.s32.totalorder %s11, 3
    %p146 = pnand %p144, %p145
    %p147 = pneg %p146
    // Predicated region
    $region9: #{depthwise_separable_conv.3} parent=5 // pred_check
      _
    $region10: #{depthwise_separable_conv.3} parent=5 // pred_check_branch
      %149 = sbr.rel (%p146) target = $region12
    $region11: #{depthwise_separable_conv.3} parent=5 // pred_region
      %s150 = ssub.s32 %s11, 1
      // Predicated region
      $region13: #{depthwise_separable_conv.3} parent=11 // pred_check
        %p151 = pneg %p58
      $region14: #{depthwise_separable_conv.3} parent=11 // pred_check_branch
        %153 = sbr.rel (%p151) target = $region16
      $region15: #{depthwise_separable_conv.3} parent=11 // pred_region
        _
      $region16: #{depthwise_separable_conv.3} parent=11 // pred_fallthru
        _
    $region12: #{depthwise_separable_conv.3} parent=5 // pred_fallthru
      _
    %p154 = scmp.lt.s32.totalorder %s11, 2
    // Predicated region
    $region17: #{depthwise_separable_conv.3} parent=5 // pred_check
      %p155 = pneg %p154
    $region18: #{depthwise_separable_conv.3} parent=5 // pred_check_branch
      %157 = sbr.rel (%p155) target = $region20
    $region19: #{depthwise_separable_conv.3} parent=5 // pred_region
      // Predicated region
      $region21: #{depthwise_separable_conv.3} parent=19 // pred_check
        %p158 = pneg %p31
      $region22: #{depthwise_separable_conv.3} parent=19 // pred_check_branch
        %160 = sbr.rel (%p158) target = $region24
      $region23: #{depthwise_separable_conv.3} parent=19 // pred_region
        %p161 = scmp.lt.s32.totalorder %s11, 1
        %s162 = scalar_select %p161, %s11, 1
        %s163 = smul.addr %s162, 54
        %s164 = smul.addr %s163, 8
        %s165 = scalar_lea.vmem %s0, %s164
      $region24: #{depthwise_separable_conv.3} parent=19 // pred_fallthru
        _
    $region20: #{depthwise_separable_conv.3} parent=5 // pred_fallthru
      _
    %p166 = scmp.le.s32.totalorder 1, %s11
    %p167 = scmp.lt.s32.totalorder %s11, 3
    %p168 = pnand %p166, %p167
    %p169 = pneg %p168
    // Predicated region
    $region25: #{depthwise_separable_conv.3} parent=5 // pred_check
      _
    $region26: #{depthwise_separable_conv.3} parent=5 // pred_check_branch
      %171 = sbr.rel (%p168) target = $region28
    $region27: #{depthwise_separable_conv.3} parent=5 // pred_region
      %s172 = ssub.s32 %s11, 1
      %p173 = scmp.lt.s32.totalorder %s16, 1
      %s174 = scalar_select %p173, %s16, 1
      %s175 = smul.addr %s174, 54
      %s176 = smul.addr %s175, 8
      %s177 = scalar_lea.vmem %s0, %s176
      %p178 = pneg %p37
      %p179 = pneg %p34
      %p180 = pneg %p58
      %p181 = pneg %p55
      %p182 = pneg %p84
      %p183 = pneg %p81
      %p184 = scmp.lt.s32.totalorder %s16, 1
      %s185 = scalar_select %p184, %s16, 1
      %s186 = smul.addr %s185, 32
      %s187 = smul.addr %s186, 8
      %s188 = scalar_lea.vmem %s2, %s187
      %p189 = pneg %p110
      %p190 = pneg %p107
      %p191 = scmp.lt.s32.totalorder %s16, 1
      %s192 = scalar_select %p191, %s16, 1
      %s193 = scalar_lea.vmem %s3, %s192
      %p194 = pneg %p136
      %p195 = pneg %p133
      %p196 = scmp.lt.s32.totalorder %s16, 1
      %s197 = scalar_select %p196, %s16, 1
      %s198 = scalar_lea.vmem %s4, %s197
      %p199 = scmp.lt.s32.totalorder %s16, 1
      %s200 = scalar_select %p199, %s16, 1
      %s201 = smul.addr %s200, 54
      %s202 = smul.addr %s201, 8
      %s203 = scalar_lea.vmem %s0, %s202
      %p204 = scmp.lt.s32.totalorder %s16, 1
      %s205 = scalar_select %p204, %s16, 1
      %s206 = smul.addr %s205, 32
      %s207 = smul.addr %s206, 8
      %s208 = scalar_lea.vmem %s2, %s207
      %p209 = scmp.lt.s32.totalorder %s16, 1
      %s210 = scalar_select %p209, %s16, 1
      %s211 = scalar_lea.vmem %s3, %s210
      %p212 = scmp.lt.s32.totalorder %s16, 1
      %s213 = scalar_select %p212, %s16, 1
      %s214 = scalar_lea.vmem %s4, %s213
      %v215 = vld [vmem:[%s203] sm:$0xff]
      %v216 = vld [vmem:[%s203 + $0x8] sm:$0xff]
      %v217 = vld [vmem:[%s203 + $0x10] sm:$0x3]
      %v218 = vld [vmem:[%s203 + $0x18] sm:$0xff]
      %v219 = vld [vmem:[%s203 + $0x20] sm:$0xff]
      %v220 = vld [vmem:[%s203 + $0x28] sm:$0x3]
      %v221 = vld [vmem:[%s203 + $0x30] sm:$0xff]
      %v222 = vld [vmem:[%s203 + $0x38] sm:$0xff]
      %v223 = vld [vmem:[%s203 + $0x40] sm:$0x3]
      %v224 = vld [vmem:[%s203 + $0x48] sm:$0xff]
      %v225 = vld [vmem:[%s203 + $0x50] sm:$0xff]
      %v226 = vld [vmem:[%s203 + $0x58] sm:$0x3]
      %v227 = vld [vmem:[%s203 + $0x60] sm:$0xff]
      %v228 = vld [vmem:[%s203 + $0x68] sm:$0xff]
      %v229 = vld [vmem:[%s203 + $0x70] sm:$0x3]
      %v230 = vld [vmem:[%s203 + $0x78] sm:$0xff]
      %v231 = vld [vmem:[%s203 + $0x80] sm:$0xff]
      %v232 = vld [vmem:[%s203 + $0x88] sm:$0x3]
      %v233 = vld [vmem:[%s203 + $0x90] sm:$0xff]
      %v234 = vld [vmem:[%s203 + $0x98] sm:$0xff]
      %v235 = vld [vmem:[%s203 + $0xa0] sm:$0x3]
      %v236 = vld [vmem:[%s203 + $0xa8] sm:$0xff]
      %v237 = vld [vmem:[%s203 + $0xb0] sm:$0xff]
      %v238 = vld [vmem:[%s203 + $0xb8] sm:$0x3]
      %v239 = vld [vmem:[%s203 + $0xc0] sm:$0xff]
      %v240 = vld [vmem:[%s203 + $0xc8] sm:$0xff]
      %v241 = vld [vmem:[%s203 + $0xd0] sm:$0x3]
      %v242 = vld [vmem:[%s203 + $0xd8] sm:$0xff]
      %v243 = vld [vmem:[%s203 + $0xe0] sm:$0xff]
      %v244 = vld [vmem:[%s203 + $0xe8] sm:$0x3]
      %v245 = vld [vmem:[%s203 + $0xf0] sm:$0xff]
      %v246 = vld [vmem:[%s203 + $0xf8] sm:$0xff]
      %v247 = vld [vmem:[%s203 + $0x100] sm:$0x3]
      %v248 = vld [vmem:[%s203 + $0x108] sm:$0xff]
      %v249 = vld [vmem:[%s203 + $0x110] sm:$0xff]
      %v250 = vld [vmem:[%s203 + $0x118] sm:$0x3]
      %v251 = vld [vmem:[%s203 + $0x120] sm:$0xff]
      %v252 = vld [vmem:[%s203 + $0x128] sm:$0xff]
      %v253 = vld [vmem:[%s203 + $0x130] sm:$0x3]
      %v254 = vld [vmem:[%s203 + $0x138] sm:$0xff]
      %v255 = vld [vmem:[%s203 + $0x140] sm:$0xff]
      %v256 = vld [vmem:[%s203 + $0x148] sm:$0x3]
      %v257 = vld [vmem:[%s203 + $0x150] sm:$0xff]
      %v258 = vld [vmem:[%s203 + $0x158] sm:$0xff]
      %v259 = vld [vmem:[%s203 + $0x160] sm:$0x3]
      %v260 = vld [vmem:[%s203 + $0x168] sm:$0xff]
      %v261 = vld [vmem:[%s203 + $0x170] sm:$0xff]
      %v262 = vld [vmem:[%s203 + $0x178] sm:$0x3]
      %v263 = vld [vmem:[%s203 + $0x180] sm:$0xff]
      %v264 = vld [vmem:[%s203 + $0x188] sm:$0xff]
      %v265 = vld [vmem:[%s203 + $0x190] sm:$0x3]
      %v266 = vld [vmem:[%s203 + $0x198] sm:$0xff]
      %v267 = vld [vmem:[%s203 + $0x1a0] sm:$0xff]
      %v268 = vld [vmem:[%s203 + $0x1a8] sm:$0x3]
      %v269 = vld [vmem:[%s1] sm:$0xff]
      %v270 = vld [vmem:[%s1 + $0x8] sm:$0x1]
      %v271 = vperm.slane %v269, 0
      %v272 = vmul.f32 %v215, %v271
      %v273 = vmul.f32 %v216, %v271
      %v274 = vmul.f32 %v218, %v271
      %v275 = vmul.f32 %v219, %v271
      %v276 = vmul.f32 %v221, %v271
      %v277 = vmul.f32 %v222, %v271
      %v278 = vmul.f32 %v224, %v271
      %v279 = vmul.f32 %v225, %v271
      %v280 = vmul.f32 %v227, %v271
      %v281 = vmul.f32 %v228, %v271
      %v282 = vmul.f32 %v230, %v271
      %v283 = vmul.f32 %v231, %v271
      %v284 = vmul.f32 %v233, %v271
      %v285 = vmul.f32 %v234, %v271
      %v286 = vmul.f32 %v236, %v271
      %v287 = vmul.f32 %v237, %v271
      %v288 = vmul.f32 %v239, %v271
      %v289 = vmul.f32 %v240, %v271
      %v290 = vmul.f32 %v242, %v271
      %v291 = vmul.f32 %v243, %v271
      %v292 = vmul.f32 %v245, %v271
      %v293 = vmul.f32 %v246, %v271
      %v294 = vmul.f32 %v248, %v271
      %v295 = vmul.f32 %v249, %v271
      %v296 = vmul.f32 %v251, %v271
      %v297 = vmul.f32 %v252, %v271
      %v298 = vmul.f32 %v254, %v271
      %v299 = vmul.f32 %v255, %v271
      %v300 = vmul.f32 %v257, %v271
      %v301 = vmul.f32 %v258, %v271
      %v302 = vmul.f32 %v260, %v271
      %v303 = vmul.f32 %v261, %v271
      %v304 = vadd.f32 %v272, 0.0
      %v305 = vadd.f32 %v273, 0.0
      %v306 = vadd.f32 %v274, 0.0
      %v307 = vadd.f32 %v275, 0.0
      %v308 = vadd.f32 %v276, 0.0
      %v309 = vadd.f32 %v277, 0.0
      %v310 = vadd.f32 %v278, 0.0
      %v311 = vadd.f32 %v279, 0.0
      %v312 = vadd.f32 %v280, 0.0
      %v313 = vadd.f32 %v281, 0.0
      %v314 = vadd.f32 %v282, 0.0
      %v315 = vadd.f32 %v283, 0.0
      %v316 = vadd.f32 %v284, 0.0
      %v317 = vadd.f32 %v285, 0.0
      %v318 = vadd.f32 %v286, 0.0
      %v319 = vadd.f32 %v287, 0.0
      %v320 = vadd.f32 %v288, 0.0
      %v321 = vadd.f32 %v289, 0.0
      %v322 = vadd.f32 %v290, 0.0
      %v323 = vadd.f32 %v291, 0.0
      %v324 = vadd.f32 %v292, 0.0
      %v325 = vadd.f32 %v293, 0.0
      %v326 = vadd.f32 %v294, 0.0
      %v327 = vadd.f32 %v295, 0.0
      %v328 = vadd.f32 %v296, 0.0
      %v329 = vadd.f32 %v297, 0.0
      %v330 = vadd.f32 %v298, 0.0
      %v331 = vadd.f32 %v299, 0.0
      %v332 = vadd.f32 %v300, 0.0
      %v333 = vadd.f32 %v301, 0.0
      %v334 = vadd.f32 %v302, 0.0
      %v335 = vadd.f32 %v303, 0.0
      %v336 = vperm.slane %v269, 1
      %v337 = vmul.f32 %v215, %v336
      %v338 = vmul.f32 %v216, %v336
      %v339 = vmul.f32 %v217, %v336
      %v340 = vmul.f32 %v218, %v336
      %v341 = vmul.f32 %v219, %v336
      %v342 = vmul.f32 %v220, %v336
      %v343 = vmul.f32 %v221, %v336
      %v344 = vmul.f32 %v222, %v336
      %v345 = vmul.f32 %v223, %v336
      %v346 = vmul.f32 %v224, %v336
      %v347 = vmul.f32 %v225, %v336
      %v348 = vmul.f32 %v226, %v336
      %v349 = vmul.f32 %v227, %v336
      %v350 = vmul.f32 %v228, %v336
      %v351 = vmul.f32 %v229, %v336
      %v352 = vmul.f32 %v230, %v336
      %v353 = vmul.f32 %v231, %v336
      %v354 = vmul.f32 %v232, %v336
      %v355 = vmul.f32 %v233, %v336
      %v356 = vmul.f32 %v234, %v336
      %v357 = vmul.f32 %v235, %v336
      %v358 = vmul.f32 %v236, %v336
      %v359 = vmul.f32 %v237, %v336
      %v360 = vmul.f32 %v238, %v336
      %v361 = vmul.f32 %v239, %v336
      %v362 = vmul.f32 %v240, %v336
      %v363 = vmul.f32 %v241, %v336
      %v364 = vmul.f32 %v242, %v336
      %v365 = vmul.f32 %v243, %v336
      %v366 = vmul.f32 %v244, %v336
      %v367 = vmul.f32 %v245, %v336
      %v368 = vmul.f32 %v246, %v336
      %v369 = vmul.f32 %v247, %v336
      %v370 = vmul.f32 %v248, %v336
      %v371 = vmul.f32 %v249, %v336
      %v372 = vmul.f32 %v250, %v336
      %v373 = vmul.f32 %v251, %v336
      %v374 = vmul.f32 %v252, %v336
      %v375 = vmul.f32 %v253, %v336
      %v376 = vmul.f32 %v254, %v336
      %v377 = vmul.f32 %v255, %v336
      %v378 = vmul.f32 %v256, %v336
      %v379 = vmul.f32 %v257, %v336
      %v380 = vmul.f32 %v258, %v336
      %v381 = vmul.f32 %v259, %v336
      %v382 = vmul.f32 %v260, %v336
      %v383 = vmul.f32 %v261, %v336
      %v384 = vmul.f32 %v262, %v336
      %vm433 = vcmask 1046528
      %v434 = vrot.slane %v337, 1
      %v435 = vrot.slane %v338, 1
      %v436 = vsel %vm433, %v434, %v435
      %v437 = vrot.slane %v339, 1
      %v438 = vsel %vm433, %v435, %v437
      %v439 = vrot.slane %v340, 1
      %v440 = vrot.slane %v341, 1
      %v441 = vsel %vm433, %v439, %v440
      %v442 = vrot.slane %v342, 1
      %v443 = vsel %vm433, %v440, %v442
      %v444 = vrot.slane %v343, 1
      %v445 = vrot.slane %v344, 1
      %v446 = vsel %vm433, %v444, %v445
      %v447 = vrot.slane %v345, 1
      %v448 = vsel %vm433, %v445, %v447
      %v449 = vrot.slane %v346, 1
      %v450 = vrot.slane %v347, 1
      %v451 = vsel %vm433, %v449, %v450
      %v452 = vrot.slane %v348, 1
      %v453 = vsel %vm433, %v450, %v452
      %v454 = vrot.slane %v349, 1
      %v455 = vrot.slane %v350, 1
      %v456 = vsel %vm433, %v454, %v455
      %v457 = vrot.slane %v351, 1
      %v458 = vsel %vm433, %v455, %v457
      %v459 = vrot.slane %v352, 1
      %v460 = vrot.slane %v353, 1
      %v461 = vsel %vm433, %v459, %v460
      %v462 = vrot.slane %v354, 1
      %v463 = vsel %vm433, %v460, %v462
      %v464 = vrot.slane %v355, 1
      %v465 = vrot.slane %v356, 1
      %v466 = vsel %vm433, %v464, %v465
      %v467 = vrot.slane %v357, 1
      %v468 = vsel %vm433, %v465, %v467
      %v469 = vrot.slane %v358, 1
      %v470 = vrot.slane %v359, 1
      %v471 = vsel %vm433, %v469, %v470
      %v472 = vrot.slane %v360, 1
      %v473 = vsel %vm433, %v470, %v472
      %v474 = vrot.slane %v361, 1
      %v475 = vrot.slane %v362, 1
      %v476 = vsel %vm433, %v474, %v475
      %v477 = vrot.slane %v363, 1
      %v478 = vsel %vm433, %v475, %v477
      %v479 = vrot.slane %v364, 1
      %v480 = vrot.slane %v365, 1
      %v481 = vsel %vm433, %v479, %v480
      %v482 = vrot.slane %v366, 1
      %v483 = vsel %vm433, %v480, %v482
      %v484 = vrot.slane %v367, 1
      %v485 = vrot.slane %v368, 1
      %v486 = vsel %vm433, %v484, %v485
      %v487 = vrot.slane %v369, 1
      %v488 = vsel %vm433, %v485, %v487
      %v489 = vrot.slane %v370, 1
      %v490 = vrot.slane %v371, 1
      %v491 = vsel %vm433, %v489, %v490
      %v492 = vrot.slane %v372, 1
      %v493 = vsel %vm433, %v490, %v492
      %v494 = vrot.slane %v373, 1
      %v495 = vrot.slane %v374, 1
      %v496 = vsel %vm433, %v494, %v495
      %v497 = vrot.slane %v375, 1
      %v498 = vsel %vm433, %v495, %v497
      %v499 = vrot.slane %v376, 1
      %v500 = vrot.slane %v377, 1
      %v501 = vsel %vm433, %v499, %v500
      %v502 = vrot.slane %v378, 1
      %v503 = vsel %vm433, %v500, %v502
      %v504 = vrot.slane %v379, 1
      %v505 = vrot.slane %v380, 1
      %v506 = vsel %vm433, %v504, %v505
      %v507 = vrot.slane %v381, 1
      %v508 = vsel %vm433, %v505, %v507
      %v509 = vrot.slane %v382, 1
      %v510 = vrot.slane %v383, 1
      %v511 = vsel %vm433, %v509, %v510
      %v512 = vrot.slane %v384, 1
      %v513 = vsel %vm433, %v510, %v512
      %v546 = vadd.f32 %v304, %v436
      %v547 = vadd.f32 %v305, %v438
      %v548 = vadd.f32 %v306, %v441
      %v549 = vadd.f32 %v307, %v443
      %v550 = vadd.f32 %v308, %v446
      %v551 = vadd.f32 %v309, %v448
      %v552 = vadd.f32 %v310, %v451
      %v553 = vadd.f32 %v311, %v453
      %v554 = vadd.f32 %v312, %v456
      %v555 = vadd.f32 %v313, %v458
      %v556 = vadd.f32 %v314, %v461
      %v557 = vadd.f32 %v315, %v463
      %v558 = vadd.f32 %v316, %v466
      %v559 = vadd.f32 %v317, %v468
      %v560 = vadd.f32 %v318, %v471
      %v561 = vadd.f32 %v319, %v473
      %v562 = vadd.f32 %v320, %v476
      %v563 = vadd.f32 %v321, %v478
      %v564 = vadd.f32 %v322, %v481
      %v565 = vadd.f32 %v323, %v483
      %v566 = vadd.f32 %v324, %v486
      %v567 = vadd.f32 %v325, %v488
      %v568 = vadd.f32 %v326, %v491
      %v569 = vadd.f32 %v327, %v493
      %v570 = vadd.f32 %v328, %v496
      %v571 = vadd.f32 %v329, %v498
      %v572 = vadd.f32 %v330, %v501
      %v573 = vadd.f32 %v331, %v503
      %v574 = vadd.f32 %v332, %v506
      %v575 = vadd.f32 %v333, %v508
      %v576 = vadd.f32 %v334, %v511
      %v577 = vadd.f32 %v335, %v513
      %v578 = vperm.slane %v269, 2
      %v579 = vmul.f32 %v215, %v578
      %v580 = vmul.f32 %v216, %v578
      %v581 = vmul.f32 %v217, %v578
      %v582 = vmul.f32 %v218, %v578
      %v583 = vmul.f32 %v219, %v578
      %v584 = vmul.f32 %v220, %v578
      %v585 = vmul.f32 %v221, %v578
      %v586 = vmul.f32 %v222, %v578
      %v587 = vmul.f32 %v223, %v578
      %v588 = vmul.f32 %v224, %v578
      %v589 = vmul.f32 %v225, %v578
      %v590 = vmul.f32 %v226, %v578
      %v591 = vmul.f32 %v227, %v578
      %v592 = vmul.f32 %v228, %v578
      %v593 = vmul.f32 %v229, %v578
      %v594 = vmul.f32 %v230, %v578
      %v595 = vmul.f32 %v231, %v578
      %v596 = vmul.f32 %v232, %v578
      %v597 = vmul.f32 %v233, %v578
      %v598 = vmul.f32 %v234, %v578
      %v599 = vmul.f32 %v235, %v578
      %v600 = vmul.f32 %v236, %v578
      %v601 = vmul.f32 %v237, %v578
      %v602 = vmul.f32 %v238, %v578
      %v603 = vmul.f32 %v239, %v578
      %v604 = vmul.f32 %v240, %v578
      %v605 = vmul.f32 %v241, %v578
      %v606 = vmul.f32 %v242, %v578
      %v607 = vmul.f32 %v243, %v578
      %v608 = vmul.f32 %v244, %v578
      %v609 = vmul.f32 %v245, %v578
      %v610 = vmul.f32 %v246, %v578
      %v611 = vmul.f32 %v247, %v578
      %v612 = vmul.f32 %v248, %v578
      %v613 = vmul.f32 %v249, %v578
      %v614 = vmul.f32 %v250, %v578
      %v615 = vmul.f32 %v251, %v578
      %v616 = vmul.f32 %v252, %v578
      %v617 = vmul.f32 %v253, %v578
      %v618 = vmul.f32 %v254, %v578
      %v619 = vmul.f32 %v255, %v578
      %v620 = vmul.f32 %v256, %v578
      %v621 = vmul.f32 %v257, %v578
      %v622 = vmul.f32 %v258, %v578
      %v623 = vmul.f32 %v259, %v578
      %v624 = vmul.f32 %v260, %v578
      %v625 = vmul.f32 %v261, %v578
      %v626 = vmul.f32 %v262, %v578
      %vm675 = vcmask 1045504
      %v676 = vrot.slane %v579, 2
      %v677 = vrot.slane %v580, 2
      %v678 = vsel %vm675, %v676, %v677
      %v679 = vrot.slane %v581, 2
      %v680 = vsel %vm675, %v677, %v679
      %v681 = vrot.slane %v582, 2
      %v682 = vrot.slane %v583, 2
      %v683 = vsel %vm675, %v681, %v682
      %v684 = vrot.slane %v584, 2
      %v685 = vsel %vm675, %v682, %v684
      %v686 = vrot.slane %v585, 2
      %v687 = vrot.slane %v586, 2
      %v688 = vsel %vm675, %v686, %v687
      %v689 = vrot.slane %v587, 2
      %v690 = vsel %vm675, %v687, %v689
      %v691 = vrot.slane %v588, 2
      %v692 = vrot.slane %v589, 2
      %v693 = vsel %vm675, %v691, %v692
      %v694 = vrot.slane %v590, 2
      %v695 = vsel %vm675, %v692, %v694
      %v696 = vrot.slane %v591, 2
      %v697 = vrot.slane %v592, 2
      %v698 = vsel %vm675, %v696, %v697
      %v699 = vrot.slane %v593, 2
      %v700 = vsel %vm675, %v697, %v699
      %v701 = vrot.slane %v594, 2
      %v702 = vrot.slane %v595, 2
      %v703 = vsel %vm675, %v701, %v702
      %v704 = vrot.slane %v596, 2
      %v705 = vsel %vm675, %v702, %v704
      %v706 = vrot.slane %v597, 2
      %v707 = vrot.slane %v598, 2
      %v708 = vsel %vm675, %v706, %v707
      %v709 = vrot.slane %v599, 2
      %v710 = vsel %vm675, %v707, %v709
      %v711 = vrot.slane %v600, 2
      %v712 = vrot.slane %v601, 2
      %v713 = vsel %vm675, %v711, %v712
      %v714 = vrot.slane %v602, 2
      %v715 = vsel %vm675, %v712, %v714
      %v716 = vrot.slane %v603, 2
      %v717 = vrot.slane %v604, 2
      %v718 = vsel %vm675, %v716, %v717
      %v719 = vrot.slane %v605, 2
      %v720 = vsel %vm675, %v717, %v719
      %v721 = vrot.slane %v606, 2
      %v722 = vrot.slane %v607, 2
      %v723 = vsel %vm675, %v721, %v722
      %v724 = vrot.slane %v608, 2
      %v725 = vsel %vm675, %v722, %v724
      %v726 = vrot.slane %v609, 2
      %v727 = vrot.slane %v610, 2
      %v728 = vsel %vm675, %v726, %v727
      %v729 = vrot.slane %v611, 2
      %v730 = vsel %vm675, %v727, %v729
      %v731 = vrot.slane %v612, 2
      %v732 = vrot.slane %v613, 2
      %v733 = vsel %vm675, %v731, %v732
      %v734 = vrot.slane %v614, 2
      %v735 = vsel %vm675, %v732, %v734
      %v736 = vrot.slane %v615, 2
      %v737 = vrot.slane %v616, 2
      %v738 = vsel %vm675, %v736, %v737
      %v739 = vrot.slane %v617, 2
      %v740 = vsel %vm675, %v737, %v739
      %v741 = vrot.slane %v618, 2
      %v742 = vrot.slane %v619, 2
      %v743 = vsel %vm675, %v741, %v742
      %v744 = vrot.slane %v620, 2
      %v745 = vsel %vm675, %v742, %v744
      %v746 = vrot.slane %v621, 2
      %v747 = vrot.slane %v622, 2
      %v748 = vsel %vm675, %v746, %v747
      %v749 = vrot.slane %v623, 2
      %v750 = vsel %vm675, %v747, %v749
      %v751 = vrot.slane %v624, 2
      %v752 = vrot.slane %v625, 2
      %v753 = vsel %vm675, %v751, %v752
      %v754 = vrot.slane %v626, 2
      %v755 = vsel %vm675, %v752, %v754
      %v788 = vadd.f32 %v546, %v678
      %v789 = vadd.f32 %v547, %v680
      %v790 = vadd.f32 %v548, %v683
      %v791 = vadd.f32 %v549, %v685
      %v792 = vadd.f32 %v550, %v688
      %v793 = vadd.f32 %v551, %v690
      %v794 = vadd.f32 %v552, %v693
      %v795 = vadd.f32 %v553, %v695
      %v796 = vadd.f32 %v554, %v698
      %v797 = vadd.f32 %v555, %v700
      %v798 = vadd.f32 %v556, %v703
      %v799 = vadd.f32 %v557, %v705
      %v800 = vadd.f32 %v558, %v708
      %v801 = vadd.f32 %v559, %v710
      %v802 = vadd.f32 %v560, %v713
      %v803 = vadd.f32 %v561, %v715
      %v804 = vadd.f32 %v562, %v718
      %v805 = vadd.f32 %v563, %v720
      %v806 = vadd.f32 %v564, %v723
      %v807 = vadd.f32 %v565, %v725
      %v808 = vadd.f32 %v566, %v728
      %v809 = vadd.f32 %v567, %v730
      %v810 = vadd.f32 %v568, %v733
      %v811 = vadd.f32 %v569, %v735
      %v812 = vadd.f32 %v570, %v738
      %v813 = vadd.f32 %v571, %v740
      %v814 = vadd.f32 %v572, %v743
      %v815 = vadd.f32 %v573, %v745
      %v816 = vadd.f32 %v574, %v748
      %v817 = vadd.f32 %v575, %v750
      %v818 = vadd.f32 %v576, %v753
      %v819 = vadd.f32 %v577, %v755
      %v820 = vperm.slane %v269, 3
      %v821 = vmul.f32 %v218, %v820
      %v822 = vmul.f32 %v219, %v820
      %v823 = vmul.f32 %v221, %v820
      %v824 = vmul.f32 %v222, %v820
      %v825 = vmul.f32 %v224, %v820
      %v826 = vmul.f32 %v225, %v820
      %v827 = vmul.f32 %v227, %v820
      %v828 = vmul.f32 %v228, %v820
      %v829 = vmul.f32 %v230, %v820
      %v830 = vmul.f32 %v231, %v820
      %v831 = vmul.f32 %v233, %v820
      %v832 = vmul.f32 %v234, %v820
      %v833 = vmul.f32 %v236, %v820
      %v834 = vmul.f32 %v237, %v820
      %v835 = vmul.f32 %v239, %v820
      %v836 = vmul.f32 %v240, %v820
      %v837 = vmul.f32 %v242, %v820
      %v838 = vmul.f32 %v243, %v820
      %v839 = vmul.f32 %v245, %v820
      %v840 = vmul.f32 %v246, %v820
      %v841 = vmul.f32 %v248, %v820
      %v842 = vmul.f32 %v249, %v820
      %v843 = vmul.f32 %v251, %v820
      %v844 = vmul.f32 %v252, %v820
      %v845 = vmul.f32 %v254, %v820
      %v846 = vmul.f32 %v255, %v820
      %v847 = vmul.f32 %v257, %v820
      %v848 = vmul.f32 %v258, %v820
      %v849 = vmul.f32 %v260, %v820
      %v850 = vmul.f32 %v261, %v820
      %v851 = vmul.f32 %v263, %v820
      %v852 = vmul.f32 %v264, %v820
      %v853 = vadd.f32 %v788, %v821
      %v854 = vadd.f32 %v789, %v822
      %v855 = vadd.f32 %v790, %v823
      %v856 = vadd.f32 %v791, %v824
      %v857 = vadd.f32 %v792, %v825
      %v858 = vadd.f32 %v793, %v826
      %v859 = vadd.f32 %v794, %v827
      %v860 = vadd.f32 %v795, %v828
      %v861 = vadd.f32 %v796, %v829
      %v862 = vadd.f32 %v797, %v830
      %v863 = vadd.f32 %v798, %v831
      %v864 = vadd.f32 %v799, %v832
      %v865 = vadd.f32 %v800, %v833
      %v866 = vadd.f32 %v801, %v834
      %v867 = vadd.f32 %v802, %v835
      %v868 = vadd.f32 %v803, %v836
      %v869 = vadd.f32 %v804, %v837
      %v870 = vadd.f32 %v805, %v838
      %v871 = vadd.f32 %v806, %v839
      %v872 = vadd.f32 %v807, %v840
      %v873 = vadd.f32 %v808, %v841
      %v874 = vadd.f32 %v809, %v842
      %v875 = vadd.f32 %v810, %v843
      %v876 = vadd.f32 %v811, %v844
      %v877 = vadd.f32 %v812, %v845
      %v878 = vadd.f32 %v813, %v846
      %v879 = vadd.f32 %v814, %v847
      %v880 = vadd.f32 %v815, %v848
      %v881 = vadd.f32 %v816, %v849
      %v882 = vadd.f32 %v817, %v850
      %v883 = vadd.f32 %v818, %v851
      %v884 = vadd.f32 %v819, %v852
      %v885 = vperm.slane %v269, 4
      %v886 = vmul.f32 %v218, %v885
      %v887 = vmul.f32 %v219, %v885
      %v888 = vmul.f32 %v220, %v885
      %v889 = vmul.f32 %v221, %v885
      %v890 = vmul.f32 %v222, %v885
      %v891 = vmul.f32 %v223, %v885
      %v892 = vmul.f32 %v224, %v885
      %v893 = vmul.f32 %v225, %v885
      %v894 = vmul.f32 %v226, %v885
      %v895 = vmul.f32 %v227, %v885
      %v896 = vmul.f32 %v228, %v885
      %v897 = vmul.f32 %v229, %v885
      %v898 = vmul.f32 %v230, %v885
      %v899 = vmul.f32 %v231, %v885
      %v900 = vmul.f32 %v232, %v885
      %v901 = vmul.f32 %v233, %v885
      %v902 = vmul.f32 %v234, %v885
      %v903 = vmul.f32 %v235, %v885
      %v904 = vmul.f32 %v236, %v885
      %v905 = vmul.f32 %v237, %v885
      %v906 = vmul.f32 %v238, %v885
      %v907 = vmul.f32 %v239, %v885
      %v908 = vmul.f32 %v240, %v885
      %v909 = vmul.f32 %v241, %v885
      %v910 = vmul.f32 %v242, %v885
      %v911 = vmul.f32 %v243, %v885
      %v912 = vmul.f32 %v244, %v885
      %v913 = vmul.f32 %v245, %v885
      %v914 = vmul.f32 %v246, %v885
      %v915 = vmul.f32 %v247, %v885
      %v916 = vmul.f32 %v248, %v885
      %v917 = vmul.f32 %v249, %v885
      %v918 = vmul.f32 %v250, %v885
      %v919 = vmul.f32 %v251, %v885
      %v920 = vmul.f32 %v252, %v885
      %v921 = vmul.f32 %v253, %v885
      %v922 = vmul.f32 %v254, %v885
      %v923 = vmul.f32 %v255, %v885
      %v924 = vmul.f32 %v256, %v885
      %v925 = vmul.f32 %v257, %v885
      %v926 = vmul.f32 %v258, %v885
      %v927 = vmul.f32 %v259, %v885
      %v928 = vmul.f32 %v260, %v885
      %v929 = vmul.f32 %v261, %v885
      %v930 = vmul.f32 %v262, %v885
      %v931 = vmul.f32 %v263, %v885
      %v932 = vmul.f32 %v264, %v885
      %v933 = vmul.f32 %v265, %v885
      %v982 = vrot.slane %v886, 1
      %v983 = vrot.slane %v887, 1
      %v984 = vsel %vm433, %v982, %v983
      %v985 = vrot.slane %v888, 1
      %v986 = vsel %vm433, %v983, %v985
      %v987 = vrot.slane %v889, 1
      %v988 = vrot.slane %v890, 1
      %v989 = vsel %vm433, %v987, %v988
      %v990 = vrot.slane %v891, 1
      %v991 = vsel %vm433, %v988, %v990
      %v992 = vrot.slane %v892, 1
      %v993 = vrot.slane %v893, 1
      %v994 = vsel %vm433, %v992, %v993
      %v995 = vrot.slane %v894, 1
      %v996 = vsel %vm433, %v993, %v995
      %v997 = vrot.slane %v895, 1
      %v998 = vrot.slane %v896, 1
      %v999 = vsel %vm433, %v997, %v998
      %v1000 = vrot.slane %v897, 1
      %v1001 = vsel %vm433, %v998, %v1000
      %v1002 = vrot.slane %v898, 1
      %v1003 = vrot.slane %v899, 1
      %v1004 = vsel %vm433, %v1002, %v1003
      %v1005 = vrot.slane %v900, 1
      %v1006 = vsel %vm433, %v1003, %v1005
      %v1007 = vrot.slane %v901, 1
      %v1008 = vrot.slane %v902, 1
      %v1009 = vsel %vm433, %v1007, %v1008
      %v1010 = vrot.slane %v903, 1
      %v1011 = vsel %vm433, %v1008, %v1010
      %v1012 = vrot.slane %v904, 1
      %v1013 = vrot.slane %v905, 1
      %v1014 = vsel %vm433, %v1012, %v1013
      %v1015 = vrot.slane %v906, 1
      %v1016 = vsel %vm433, %v1013, %v1015
      %v1017 = vrot.slane %v907, 1
      %v1018 = vrot.slane %v908, 1
      %v1019 = vsel %vm433, %v1017, %v1018
      %v1020 = vrot.slane %v909, 1
      %v1021 = vsel %vm433, %v1018, %v1020
      %v1022 = vrot.slane %v910, 1
      %v1023 = vrot.slane %v911, 1
      %v1024 = vsel %vm433, %v1022, %v1023
      %v1025 = vrot.slane %v912, 1
      %v1026 = vsel %vm433, %v1023, %v1025
      %v1027 = vrot.slane %v913, 1
      %v1028 = vrot.slane %v914, 1
      %v1029 = vsel %vm433, %v1027, %v1028
      %v1030 = vrot.slane %v915, 1
      %v1031 = vsel %vm433, %v1028, %v1030
      %v1032 = vrot.slane %v916, 1
      %v1033 = vrot.slane %v917, 1
      %v1034 = vsel %vm433, %v1032, %v1033
      %v1035 = vrot.slane %v918, 1
      %v1036 = vsel %vm433, %v1033, %v1035
      %v1037 = vrot.slane %v919, 1
      %v1038 = vrot.slane %v920, 1
      %v1039 = vsel %vm433, %v1037, %v1038
      %v1040 = vrot.slane %v921, 1
      %v1041 = vsel %vm433, %v1038, %v1040
      %v1042 = vrot.slane %v922, 1
      %v1043 = vrot.slane %v923, 1
      %v1044 = vsel %vm433, %v1042, %v1043
      %v1045 = vrot.slane %v924, 1
      %v1046 = vsel %vm433, %v1043, %v1045
      %v1047 = vrot.slane %v925, 1
      %v1048 = vrot.slane %v926, 1
      %v1049 = vsel %vm433, %v1047, %v1048
      %v1050 = vrot.slane %v927, 1
      %v1051 = vsel %vm433, %v1048, %v1050
      %v1052 = vrot.slane %v928, 1
      %v1053 = vrot.slane %v929, 1
      %v1054 = vsel %vm433, %v1052, %v1053
      %v1055 = vrot.slane %v930, 1
      %v1056 = vsel %vm433, %v1053, %v1055
      %v1057 = vrot.slane %v931, 1
      %v1058 = vrot.slane %v932, 1
      %v1059 = vsel %vm433, %v1057, %v1058
      %v1060 = vrot.slane %v933, 1
      %v1061 = vsel %vm433, %v1058, %v1060
      %v1094 = vadd.f32 %v853, %v984
      %v1095 = vadd.f32 %v854, %v986
      %v1096 = vadd.f32 %v855, %v989
      %v1097 = vadd.f32 %v856, %v991
      %v1098 = vadd.f32 %v857, %v994
      %v1099 = vadd.f32 %v858, %v996
      %v1100 = vadd.f32 %v859, %v999
      %v1101 = vadd.f32 %v860, %v1001
      %v1102 = vadd.f32 %v861, %v1004
      %v1103 = vadd.f32 %v862, %v1006
      %v1104 = vadd.f32 %v863, %v1009
      %v1105 = vadd.f32 %v864, %v1011
      %v1106 = vadd.f32 %v865, %v1014
      %v1107 = vadd.f32 %v866, %v1016
      %v1108 = vadd.f32 %v867, %v1019
      %v1109 = vadd.f32 %v868, %v1021
      %v1110 = vadd.f32 %v869, %v1024
      %v1111 = vadd.f32 %v870, %v1026
      %v1112 = vadd.f32 %v871, %v1029
      %v1113 = vadd.f32 %v872, %v1031
      %v1114 = vadd.f32 %v873, %v1034
      %v1115 = vadd.f32 %v874, %v1036
      %v1116 = vadd.f32 %v875, %v1039
      %v1117 = vadd.f32 %v876, %v1041
      %v1118 = vadd.f32 %v877, %v1044
      %v1119 = vadd.f32 %v878, %v1046
      %v1120 = vadd.f32 %v879, %v1049
      %v1121 = vadd.f32 %v880, %v1051
      %v1122 = vadd.f32 %v881, %v1054
      %v1123 = vadd.f32 %v882, %v1056
      %v1124 = vadd.f32 %v883, %v1059
      %v1125 = vadd.f32 %v884, %v1061
      %v1126 = vperm.slane %v269, 5
      %v1127 = vmul.f32 %v218, %v1126
      %v1128 = vmul.f32 %v219, %v1126
      %v1129 = vmul.f32 %v220, %v1126
      %v1130 = vmul.f32 %v221, %v1126
      %v1131 = vmul.f32 %v222, %v1126
      %v1132 = vmul.f32 %v223, %v1126
      %v1133 = vmul.f32 %v224, %v1126
      %v1134 = vmul.f32 %v225, %v1126
      %v1135 = vmul.f32 %v226, %v1126
      %v1136 = vmul.f32 %v227, %v1126
      %v1137 = vmul.f32 %v228, %v1126
      %v1138 = vmul.f32 %v229, %v1126
      %v1139 = vmul.f32 %v230, %v1126
      %v1140 = vmul.f32 %v231, %v1126
      %v1141 = vmul.f32 %v232, %v1126
      %v1142 = vmul.f32 %v233, %v1126
      %v1143 = vmul.f32 %v234, %v1126
      %v1144 = vmul.f32 %v235, %v1126
      %v1145 = vmul.f32 %v236, %v1126
      %v1146 = vmul.f32 %v237, %v1126
      %v1147 = vmul.f32 %v238, %v1126
      %v1148 = vmul.f32 %v239, %v1126
      %v1149 = vmul.f32 %v240, %v1126
      %v1150 = vmul.f32 %v241, %v1126
      %v1151 = vmul.f32 %v242, %v1126
      %v1152 = vmul.f32 %v243, %v1126
      %v1153 = vmul.f32 %v244, %v1126
      %v1154 = vmul.f32 %v245, %v1126
      %v1155 = vmul.f32 %v246, %v1126
      %v1156 = vmul.f32 %v247, %v1126
      %v1157 = vmul.f32 %v248, %v1126
      %v1158 = vmul.f32 %v249, %v1126
      %v1159 = vmul.f32 %v250, %v1126
      %v1160 = vmul.f32 %v251, %v1126
      %v1161 = vmul.f32 %v252, %v1126
      %v1162 = vmul.f32 %v253, %v1126
      %v1163 = vmul.f32 %v254, %v1126
      %v1164 = vmul.f32 %v255, %v1126
      %v1165 = vmul.f32 %v256, %v1126
      %v1166 = vmul.f32 %v257, %v1126
      %v1167 = vmul.f32 %v258, %v1126
      %v1168 = vmul.f32 %v259, %v1126
      %v1169 = vmul.f32 %v260, %v1126
      %v1170 = vmul.f32 %v261, %v1126
      %v1171 = vmul.f32 %v262, %v1126
      %v1172 = vmul.f32 %v263, %v1126
      %v1173 = vmul.f32 %v264, %v1126
      %v1174 = vmul.f32 %v265, %v1126
      %v1223 = vrot.slane %v1127, 2
      %v1224 = vrot.slane %v1128, 2
      %v1225 = vsel %vm675, %v1223, %v1224
      %v1226 = vrot.slane %v1129, 2
      %v1227 = vsel %vm675, %v1224, %v1226
      %v1228 = vrot.slane %v1130, 2
      %v1229 = vrot.slane %v1131, 2
      %v1230 = vsel %vm675, %v1228, %v1229
      %v1231 = vrot.slane %v1132, 2
      %v1232 = vsel %vm675, %v1229, %v1231
      %v1233 = vrot.slane %v1133, 2
      %v1234 = vrot.slane %v1134, 2
      %v1235 = vsel %vm675, %v1233, %v1234
      %v1236 = vrot.slane %v1135, 2
      %v1237 = vsel %vm675, %v1234, %v1236
      %v1238 = vrot.slane %v1136, 2
      %v1239 = vrot.slane %v1137, 2
      %v1240 = vsel %vm675, %v1238, %v1239
      %v1241 = vrot.slane %v1138, 2
      %v1242 = vsel %vm675, %v1239, %v1241
      %v1243 = vrot.slane %v1139, 2
      %v1244 = vrot.slane %v1140, 2
      %v1245 = vsel %vm675, %v1243, %v1244
      %v1246 = vrot.slane %v1141, 2
      %v1247 = vsel %vm675, %v1244, %v1246
      %v1248 = vrot.slane %v1142, 2
      %v1249 = vrot.slane %v1143, 2
      %v1250 = vsel %vm675, %v1248, %v1249
      %v1251 = vrot.slane %v1144, 2
      %v1252 = vsel %vm675, %v1249, %v1251
      %v1253 = vrot.slane %v1145, 2
      %v1254 = vrot.slane %v1146, 2
      %v1255 = vsel %vm675, %v1253, %v1254
      %v1256 = vrot.slane %v1147, 2
      %v1257 = vsel %vm675, %v1254, %v1256
      %v1258 = vrot.slane %v1148, 2
      %v1259 = vrot.slane %v1149, 2
      %v1260 = vsel %vm675, %v1258, %v1259
      %v1261 = vrot.slane %v1150, 2
      %v1262 = vsel %vm675, %v1259, %v1261
      %v1263 = vrot.slane %v1151, 2
      %v1264 = vrot.slane %v1152, 2
      %v1265 = vsel %vm675, %v1263, %v1264
      %v1266 = vrot.slane %v1153, 2
      %v1267 = vsel %vm675, %v1264, %v1266
      %v1268 = vrot.slane %v1154, 2
      %v1269 = vrot.slane %v1155, 2
      %v1270 = vsel %vm675, %v1268, %v1269
      %v1271 = vrot.slane %v1156, 2
      %v1272 = vsel %vm675, %v1269, %v1271
      %v1273 = vrot.slane %v1157, 2
      %v1274 = vrot.slane %v1158, 2
      %v1275 = vsel %vm675, %v1273, %v1274
      %v1276 = vrot.slane %v1159, 2
      %v1277 = vsel %vm675, %v1274, %v1276
      %v1278 = vrot.slane %v1160, 2
      %v1279 = vrot.slane %v1161, 2
      %v1280 = vsel %vm675, %v1278, %v1279
      %v1281 = vrot.slane %v1162, 2
      %v1282 = vsel %vm675, %v1279, %v1281
      %v1283 = vrot.slane %v1163, 2
      %v1284 = vrot.slane %v1164, 2
      %v1285 = vsel %vm675, %v1283, %v1284
      %v1286 = vrot.slane %v1165, 2
      %v1287 = vsel %vm675, %v1284, %v1286
      %v1288 = vrot.slane %v1166, 2
      %v1289 = vrot.slane %v1167, 2
      %v1290 = vsel %vm675, %v1288, %v1289
      %v1291 = vrot.slane %v1168, 2
      %v1292 = vsel %vm675, %v1289, %v1291
      %v1293 = vrot.slane %v1169, 2
      %v1294 = vrot.slane %v1170, 2
      %v1295 = vsel %vm675, %v1293, %v1294
      %v1296 = vrot.slane %v1171, 2
      %v1297 = vsel %vm675, %v1294, %v1296
      %v1298 = vrot.slane %v1172, 2
      %v1299 = vrot.slane %v1173, 2
      %v1300 = vsel %vm675, %v1298, %v1299
      %v1301 = vrot.slane %v1174, 2
      %v1302 = vsel %vm675, %v1299, %v1301
      %v1335 = vadd.f32 %v1094, %v1225
      %v1336 = vadd.f32 %v1095, %v1227
      %v1337 = vadd.f32 %v1096, %v1230
      %v1338 = vadd.f32 %v1097, %v1232
      %v1339 = vadd.f32 %v1098, %v1235
      %v1340 = vadd.f32 %v1099, %v1237
      %v1341 = vadd.f32 %v1100, %v1240
      %v1342 = vadd.f32 %v1101, %v1242
      %v1343 = vadd.f32 %v1102, %v1245
      %v1344 = vadd.f32 %v1103, %v1247
      %v1345 = vadd.f32 %v1104, %v1250
      %v1346 = vadd.f32 %v1105, %v1252
      %v1347 = vadd.f32 %v1106, %v1255
      %v1348 = vadd.f32 %v1107, %v1257
      %v1349 = vadd.f32 %v1108, %v1260
      %v1350 = vadd.f32 %v1109, %v1262
      %v1351 = vadd.f32 %v1110, %v1265
      %v1352 = vadd.f32 %v1111, %v1267
      %v1353 = vadd.f32 %v1112, %v1270
      %v1354 = vadd.f32 %v1113, %v1272
      %v1355 = vadd.f32 %v1114, %v1275
      %v1356 = vadd.f32 %v1115, %v1277
      %v1357 = vadd.f32 %v1116, %v1280
      %v1358 = vadd.f32 %v1117, %v1282
      %v1359 = vadd.f32 %v1118, %v1285
      %v1360 = vadd.f32 %v1119, %v1287
      %v1361 = vadd.f32 %v1120, %v1290
      %v1362 = vadd.f32 %v1121, %v1292
      %v1363 = vadd.f32 %v1122, %v1295
      %v1364 = vadd.f32 %v1123, %v1297
      %v1365 = vadd.f32 %v1124, %v1300
      %v1366 = vadd.f32 %v1125, %v1302
      %v1367 = vperm.slane %v269, 6
      %v1368 = vmul.f32 %v221, %v1367
      %v1369 = vmul.f32 %v222, %v1367
      %v1370 = vmul.f32 %v224, %v1367
      %v1371 = vmul.f32 %v225, %v1367
      %v1372 = vmul.f32 %v227, %v1367
      %v1373 = vmul.f32 %v228, %v1367
      %v1374 = vmul.f32 %v230, %v1367
      %v1375 = vmul.f32 %v231, %v1367
      %v1376 = vmul.f32 %v233, %v1367
      %v1377 = vmul.f32 %v234, %v1367
      %v1378 = vmul.f32 %v236, %v1367
      %v1379 = vmul.f32 %v237, %v1367
      %v1380 = vmul.f32 %v239, %v1367
      %v1381 = vmul.f32 %v240, %v1367
      %v1382 = vmul.f32 %v242, %v1367
      %v1383 = vmul.f32 %v243, %v1367
      %v1384 = vmul.f32 %v245, %v1367
      %v1385 = vmul.f32 %v246, %v1367
      %v1386 = vmul.f32 %v248, %v1367
      %v1387 = vmul.f32 %v249, %v1367
      %v1388 = vmul.f32 %v251, %v1367
      %v1389 = vmul.f32 %v252, %v1367
      %v1390 = vmul.f32 %v254, %v1367
      %v1391 = vmul.f32 %v255, %v1367
      %v1392 = vmul.f32 %v257, %v1367
      %v1393 = vmul.f32 %v258, %v1367
      %v1394 = vmul.f32 %v260, %v1367
      %v1395 = vmul.f32 %v261, %v1367
      %v1396 = vmul.f32 %v263, %v1367
      %v1397 = vmul.f32 %v264, %v1367
      %v1398 = vmul.f32 %v266, %v1367
      %v1399 = vmul.f32 %v267, %v1367
      %v1400 = vadd.f32 %v1335, %v1368
      %v1401 = vadd.f32 %v1336, %v1369
      %v1402 = vadd.f32 %v1337, %v1370
      %v1403 = vadd.f32 %v1338, %v1371
      %v1404 = vadd.f32 %v1339, %v1372
      %v1405 = vadd.f32 %v1340, %v1373
      %v1406 = vadd.f32 %v1341, %v1374
      %v1407 = vadd.f32 %v1342, %v1375
      %v1408 = vadd.f32 %v1343, %v1376
      %v1409 = vadd.f32 %v1344, %v1377
      %v1410 = vadd.f32 %v1345, %v1378
      %v1411 = vadd.f32 %v1346, %v1379
      %v1412 = vadd.f32 %v1347, %v1380
      %v1413 = vadd.f32 %v1348, %v1381
      %v1414 = vadd.f32 %v1349, %v1382
      %v1415 = vadd.f32 %v1350, %v1383
      %v1416 = vadd.f32 %v1351, %v1384
      %v1417 = vadd.f32 %v1352, %v1385
      %v1418 = vadd.f32 %v1353, %v1386
      %v1419 = vadd.f32 %v1354, %v1387
      %v1420 = vadd.f32 %v1355, %v1388
      %v1421 = vadd.f32 %v1356, %v1389
      %v1422 = vadd.f32 %v1357, %v1390
      %v1423 = vadd.f32 %v1358, %v1391
      %v1424 = vadd.f32 %v1359, %v1392
      %v1425 = vadd.f32 %v1360, %v1393
      %v1426 = vadd.f32 %v1361, %v1394
      %v1427 = vadd.f32 %v1362, %v1395
      %v1428 = vadd.f32 %v1363, %v1396
      %v1429 = vadd.f32 %v1364, %v1397
      %v1430 = vadd.f32 %v1365, %v1398
      %v1431 = vadd.f32 %v1366, %v1399
      %v1432 = vperm.slane %v269, 7
      %v1433 = vmul.f32 %v221, %v1432
      %v1434 = vmul.f32 %v222, %v1432
      %v1435 = vmul.f32 %v223, %v1432
      %v1436 = vmul.f32 %v224, %v1432
      %v1437 = vmul.f32 %v225, %v1432
      %v1438 = vmul.f32 %v226, %v1432
      %v1439 = vmul.f32 %v227, %v1432
      %v1440 = vmul.f32 %v228, %v1432
      %v1441 = vmul.f32 %v229, %v1432
      %v1442 = vmul.f32 %v230, %v1432
      %v1443 = vmul.f32 %v231, %v1432
      %v1444 = vmul.f32 %v232, %v1432
      %v1445 = vmul.f32 %v233, %v1432
      %v1446 = vmul.f32 %v234, %v1432
      %v1447 = vmul.f32 %v235, %v1432
      %v1448 = vmul.f32 %v236, %v1432
      %v1449 = vmul.f32 %v237, %v1432
      %v1450 = vmul.f32 %v238, %v1432
      %v1451 = vmul.f32 %v239, %v1432
      %v1452 = vmul.f32 %v240, %v1432
      %v1453 = vmul.f32 %v241, %v1432
      %v1454 = vmul.f32 %v242, %v1432
      %v1455 = vmul.f32 %v243, %v1432
      %v1456 = vmul.f32 %v244, %v1432
      %v1457 = vmul.f32 %v245, %v1432
      %v1458 = vmul.f32 %v246, %v1432
      %v1459 = vmul.f32 %v247, %v1432
      %v1460 = vmul.f32 %v248, %v1432
      %v1461 = vmul.f32 %v249, %v1432
      %v1462 = vmul.f32 %v250, %v1432
      %v1463 = vmul.f32 %v251, %v1432
      %v1464 = vmul.f32 %v252, %v1432
      %v1465 = vmul.f32 %v253, %v1432
      %v1466 = vmul.f32 %v254, %v1432
      %v1467 = vmul.f32 %v255, %v1432
      %v1468 = vmul.f32 %v256, %v1432
      %v1469 = vmul.f32 %v257, %v1432
      %v1470 = vmul.f32 %v258, %v1432
      %v1471 = vmul.f32 %v259, %v1432
      %v1472 = vmul.f32 %v260, %v1432
      %v1473 = vmul.f32 %v261, %v1432
      %v1474 = vmul.f32 %v262, %v1432
      %v1475 = vmul.f32 %v263, %v1432
      %v1476 = vmul.f32 %v264, %v1432
      %v1477 = vmul.f32 %v265, %v1432
      %v1478 = vmul.f32 %v266, %v1432
      %v1479 = vmul.f32 %v267, %v1432
      %v1480 = vmul.f32 %v268, %v1432
      %v1529 = vrot.slane %v1433, 1
      %v1530 = vrot.slane %v1434, 1
      %v1531 = vsel %vm433, %v1529, %v1530
      %v1532 = vrot.slane %v1435, 1
      %v1533 = vsel %vm433, %v1530, %v1532
      %v1534 = vrot.slane %v1436, 1
      %v1535 = vrot.slane %v1437, 1
      %v1536 = vsel %vm433, %v1534, %v1535
      %v1537 = vrot.slane %v1438, 1
      %v1538 = vsel %vm433, %v1535, %v1537
      %v1539 = vrot.slane %v1439, 1
      %v1540 = vrot.slane %v1440, 1
      %v1541 = vsel %vm433, %v1539, %v1540
      %v1542 = vrot.slane %v1441, 1
      %v1543 = vsel %vm433, %v1540, %v1542
      %v1544 = vrot.slane %v1442, 1
      %v1545 = vrot.slane %v1443, 1
      %v1546 = vsel %vm433, %v1544, %v1545
      %v1547 = vrot.slane %v1444, 1
      %v1548 = vsel %vm433, %v1545, %v1547
      %v1549 = vrot.slane %v1445, 1
      %v1550 = vrot.slane %v1446, 1
      %v1551 = vsel %vm433, %v1549, %v1550
      %v1552 = vrot.slane %v1447, 1
      %v1553 = vsel %vm433, %v1550, %v1552
      %v1554 = vrot.slane %v1448, 1
      %v1555 = vrot.slane %v1449, 1
      %v1556 = vsel %vm433, %v1554, %v1555
      %v1557 = vrot.slane %v1450, 1
      %v1558 = vsel %vm433, %v1555, %v1557
      %v1559 = vrot.slane %v1451, 1
      %v1560 = vrot.slane %v1452, 1
      %v1561 = vsel %vm433, %v1559, %v1560
      %v1562 = vrot.slane %v1453, 1
      %v1563 = vsel %vm433, %v1560, %v1562
      %v1564 = vrot.slane %v1454, 1
      %v1565 = vrot.slane %v1455, 1
      %v1566 = vsel %vm433, %v1564, %v1565
      %v1567 = vrot.slane %v1456, 1
      %v1568 = vsel %vm433, %v1565, %v1567
      %v1569 = vrot.slane %v1457, 1
      %v1570 = vrot.slane %v1458, 1
      %v1571 = vsel %vm433, %v1569, %v1570
      %v1572 = vrot.slane %v1459, 1
      %v1573 = vsel %vm433, %v1570, %v1572
      %v1574 = vrot.slane %v1460, 1
      %v1575 = vrot.slane %v1461, 1
      %v1576 = vsel %vm433, %v1574, %v1575
      %v1577 = vrot.slane %v1462, 1
      %v1578 = vsel %vm433, %v1575, %v1577
      %v1579 = vrot.slane %v1463, 1
      %v1580 = vrot.slane %v1464, 1
      %v1581 = vsel %vm433, %v1579, %v1580
      %v1582 = vrot.slane %v1465, 1
      %v1583 = vsel %vm433, %v1580, %v1582
      %v1584 = vrot.slane %v1466, 1
      %v1585 = vrot.slane %v1467, 1
      %v1586 = vsel %vm433, %v1584, %v1585
      %v1587 = vrot.slane %v1468, 1
      %v1588 = vsel %vm433, %v1585, %v1587
      %v1589 = vrot.slane %v1469, 1
      %v1590 = vrot.slane %v1470, 1
      %v1591 = vsel %vm433, %v1589, %v1590
      %v1592 = vrot.slane %v1471, 1
      %v1593 = vsel %vm433, %v1590, %v1592
      %v1594 = vrot.slane %v1472, 1
      %v1595 = vrot.slane %v1473, 1
      %v1596 = vsel %vm433, %v1594, %v1595
      %v1597 = vrot.slane %v1474, 1
      %v1598 = vsel %vm433, %v1595, %v1597
      %v1599 = vrot.slane %v1475, 1
      %v1600 = vrot.slane %v1476, 1
      %v1601 = vsel %vm433, %v1599, %v1600
      %v1602 = vrot.slane %v1477, 1
      %v1603 = vsel %vm433, %v1600, %v1602
      %v1604 = vrot.slane %v1478, 1
      %v1605 = vrot.slane %v1479, 1
      %v1606 = vsel %vm433, %v1604, %v1605
      %v1607 = vrot.slane %v1480, 1
      %v1608 = vsel %vm433, %v1605, %v1607
      %v1641 = vadd.f32 %v1400, %v1531
      %v1642 = vadd.f32 %v1401, %v1533
      %v1643 = vadd.f32 %v1402, %v1536
      %v1644 = vadd.f32 %v1403, %v1538
      %v1645 = vadd.f32 %v1404, %v1541
      %v1646 = vadd.f32 %v1405, %v1543
      %v1647 = vadd.f32 %v1406, %v1546
      %v1648 = vadd.f32 %v1407, %v1548
      %v1649 = vadd.f32 %v1408, %v1551
      %v1650 = vadd.f32 %v1409, %v1553
      %v1651 = vadd.f32 %v1410, %v1556
      %v1652 = vadd.f32 %v1411, %v1558
      %v1653 = vadd.f32 %v1412, %v1561
      %v1654 = vadd.f32 %v1413, %v1563
      %v1655 = vadd.f32 %v1414, %v1566
      %v1656 = vadd.f32 %v1415, %v1568
      %v1657 = vadd.f32 %v1416, %v1571
      %v1658 = vadd.f32 %v1417, %v1573
      %v1659 = vadd.f32 %v1418, %v1576
      %v1660 = vadd.f32 %v1419, %v1578
      %v1661 = vadd.f32 %v1420, %v1581
      %v1662 = vadd.f32 %v1421, %v1583
      %v1663 = vadd.f32 %v1422, %v1586
      %v1664 = vadd.f32 %v1423, %v1588
      %v1665 = vadd.f32 %v1424, %v1591
      %v1666 = vadd.f32 %v1425, %v1593
      %v1667 = vadd.f32 %v1426, %v1596
      %v1668 = vadd.f32 %v1427, %v1598
      %v1669 = vadd.f32 %v1428, %v1601
      %v1670 = vadd.f32 %v1429, %v1603
      %v1671 = vadd.f32 %v1430, %v1606
      %v1672 = vadd.f32 %v1431, %v1608
      %v1673 = vperm.slane %v270, 0
      %v1674 = vmul.f32 %v221, %v1673
      %v1675 = vmul.f32 %v222, %v1673
      %v1676 = vmul.f32 %v223, %v1673
      %v1677 = vmul.f32 %v224, %v1673
      %v1678 = vmul.f32 %v225, %v1673
      %v1679 = vmul.f32 %v226, %v1673
      %v1680 = vmul.f32 %v227, %v1673
      %v1681 = vmul.f32 %v228, %v1673
      %v1682 = vmul.f32 %v229, %v1673
      %v1683 = vmul.f32 %v230, %v1673
      %v1684 = vmul.f32 %v231, %v1673
      %v1685 = vmul.f32 %v232, %v1673
      %v1686 = vmul.f32 %v233, %v1673
      %v1687 = vmul.f32 %v234, %v1673
      %v1688 = vmul.f32 %v235, %v1673
      %v1689 = vmul.f32 %v236, %v1673
      %v1690 = vmul.f32 %v237, %v1673
      %v1691 = vmul.f32 %v238, %v1673
      %v1692 = vmul.f32 %v239, %v1673
      %v1693 = vmul.f32 %v240, %v1673
      %v1694 = vmul.f32 %v241, %v1673
      %v1695 = vmul.f32 %v242, %v1673
      %v1696 = vmul.f32 %v243, %v1673
      %v1697 = vmul.f32 %v244, %v1673
      %v1698 = vmul.f32 %v245, %v1673
      %v1699 = vmul.f32 %v246, %v1673
      %v1700 = vmul.f32 %v247, %v1673
      %v1701 = vmul.f32 %v248, %v1673
      %v1702 = vmul.f32 %v249, %v1673
      %v1703 = vmul.f32 %v250, %v1673
      %v1704 = vmul.f32 %v251, %v1673
      %v1705 = vmul.f32 %v252, %v1673
      %v1706 = vmul.f32 %v253, %v1673
      %v1707 = vmul.f32 %v254, %v1673
      %v1708 = vmul.f32 %v255, %v1673
      %v1709 = vmul.f32 %v256, %v1673
      %v1710 = vmul.f32 %v257, %v1673
      %v1711 = vmul.f32 %v258, %v1673
      %v1712 = vmul.f32 %v259, %v1673
      %v1713 = vmul.f32 %v260, %v1673
      %v1714 = vmul.f32 %v261, %v1673
      %v1715 = vmul.f32 %v262, %v1673
      %v1716 = vmul.f32 %v263, %v1673
      %v1717 = vmul.f32 %v264, %v1673
      %v1718 = vmul.f32 %v265, %v1673
      %v1719 = vmul.f32 %v266, %v1673
      %v1720 = vmul.f32 %v267, %v1673
      %v1721 = vmul.f32 %v268, %v1673
      %v1770 = vrot.slane %v1674, 2
      %v1771 = vrot.slane %v1675, 2
      %v1772 = vsel %vm675, %v1770, %v1771
      %v1773 = vrot.slane %v1676, 2
      %v1774 = vsel %vm675, %v1771, %v1773
      %v1775 = vrot.slane %v1677, 2
      %v1776 = vrot.slane %v1678, 2
      %v1777 = vsel %vm675, %v1775, %v1776
      %v1778 = vrot.slane %v1679, 2
      %v1779 = vsel %vm675, %v1776, %v1778
      %v1780 = vrot.slane %v1680, 2
      %v1781 = vrot.slane %v1681, 2
      %v1782 = vsel %vm675, %v1780, %v1781
      %v1783 = vrot.slane %v1682, 2
      %v1784 = vsel %vm675, %v1781, %v1783
      %v1785 = vrot.slane %v1683, 2
      %v1786 = vrot.slane %v1684, 2
      %v1787 = vsel %vm675, %v1785, %v1786
      %v1788 = vrot.slane %v1685, 2
      %v1789 = vsel %vm675, %v1786, %v1788
      %v1790 = vrot.slane %v1686, 2
      %v1791 = vrot.slane %v1687, 2
      %v1792 = vsel %vm675, %v1790, %v1791
      %v1793 = vrot.slane %v1688, 2
      %v1794 = vsel %vm675, %v1791, %v1793
      %v1795 = vrot.slane %v1689, 2
      %v1796 = vrot.slane %v1690, 2
      %v1797 = vsel %vm675, %v1795, %v1796
      %v1798 = vrot.slane %v1691, 2
      %v1799 = vsel %vm675, %v1796, %v1798
      %v1800 = vrot.slane %v1692, 2
      %v1801 = vrot.slane %v1693, 2
      %v1802 = vsel %vm675, %v1800, %v1801
      %v1803 = vrot.slane %v1694, 2
      %v1804 = vsel %vm675, %v1801, %v1803
      %v1805 = vrot.slane %v1695, 2
      %v1806 = vrot.slane %v1696, 2
      %v1807 = vsel %vm675, %v1805, %v1806
      %v1808 = vrot.slane %v1697, 2
      %v1809 = vsel %vm675, %v1806, %v1808
      %v1810 = vrot.slane %v1698, 2
      %v1811 = vrot.slane %v1699, 2
      %v1812 = vsel %vm675, %v1810, %v1811
      %v1813 = vrot.slane %v1700, 2
      %v1814 = vsel %vm675, %v1811, %v1813
      %v1815 = vrot.slane %v1701, 2
      %v1816 = vrot.slane %v1702, 2
      %v1817 = vsel %vm675, %v1815, %v1816
      %v1818 = vrot.slane %v1703, 2
      %v1819 = vsel %vm675, %v1816, %v1818
      %v1820 = vrot.slane %v1704, 2
      %v1821 = vrot.slane %v1705, 2
      %v1822 = vsel %vm675, %v1820, %v1821
      %v1823 = vrot.slane %v1706, 2
      %v1824 = vsel %vm675, %v1821, %v1823
      %v1825 = vrot.slane %v1707, 2
      %v1826 = vrot.slane %v1708, 2
      %v1827 = vsel %vm675, %v1825, %v1826
      %v1828 = vrot.slane %v1709, 2
      %v1829 = vsel %vm675, %v1826, %v1828
      %v1830 = vrot.slane %v1710, 2
      %v1831 = vrot.slane %v1711, 2
      %v1832 = vsel %vm675, %v1830, %v1831
      %v1833 = vrot.slane %v1712, 2
      %v1834 = vsel %vm675, %v1831, %v1833
      %v1835 = vrot.slane %v1713, 2
      %v1836 = vrot.slane %v1714, 2
      %v1837 = vsel %vm675, %v1835, %v1836
      %v1838 = vrot.slane %v1715, 2
      %v1839 = vsel %vm675, %v1836, %v1838
      %v1840 = vrot.slane %v1716, 2
      %v1841 = vrot.slane %v1717, 2
      %v1842 = vsel %vm675, %v1840, %v1841
      %v1843 = vrot.slane %v1718, 2
      %v1844 = vsel %vm675, %v1841, %v1843
      %v1845 = vrot.slane %v1719, 2
      %v1846 = vrot.slane %v1720, 2
      %v1847 = vsel %vm675, %v1845, %v1846
      %v1848 = vrot.slane %v1721, 2
      %v1849 = vsel %vm675, %v1846, %v1848
      %v1882 = vadd.f32 %v1641, %v1772
      %v1883 = vadd.f32 %v1642, %v1774
      %v1884 = vadd.f32 %v1643, %v1777
      %v1885 = vadd.f32 %v1644, %v1779
      %v1886 = vadd.f32 %v1645, %v1782
      %v1887 = vadd.f32 %v1646, %v1784
      %v1888 = vadd.f32 %v1647, %v1787
      %v1889 = vadd.f32 %v1648, %v1789
      %v1890 = vadd.f32 %v1649, %v1792
      %v1891 = vadd.f32 %v1650, %v1794
      %v1892 = vadd.f32 %v1651, %v1797
      %v1893 = vadd.f32 %v1652, %v1799
      %v1894 = vadd.f32 %v1653, %v1802
      %v1895 = vadd.f32 %v1654, %v1804
      %v1896 = vadd.f32 %v1655, %v1807
      %v1897 = vadd.f32 %v1656, %v1809
      %v1898 = vadd.f32 %v1657, %v1812
      %v1899 = vadd.f32 %v1658, %v1814
      %v1900 = vadd.f32 %v1659, %v1817
      %v1901 = vadd.f32 %v1660, %v1819
      %v1902 = vadd.f32 %v1661, %v1822
      %v1903 = vadd.f32 %v1662, %v1824
      %v1904 = vadd.f32 %v1663, %v1827
      %v1905 = vadd.f32 %v1664, %v1829
      %v1906 = vadd.f32 %v1665, %v1832
      %v1907 = vadd.f32 %v1666, %v1834
      %v1908 = vadd.f32 %v1667, %v1837
      %v1909 = vadd.f32 %v1668, %v1839
      %v1910 = vadd.f32 %v1669, %v1842
      %v1911 = vadd.f32 %v1670, %v1844
      %v1912 = vadd.f32 %v1671, %v1847
      %v1913 = vadd.f32 %v1672, %v1849
      %vm1914 = vcmask 31744
      %1915 = vst.msk [vmem:[%s208] sm:$0xff] %vm1914, %v1882
      %1916 = vst.msk [vmem:[%s208 + $0x8] sm:$0xff] %vm1914, %v1883
      %1917 = vst.msk [vmem:[%s208 + $0x10] sm:$0xff] %vm1914, %v1884
      %1918 = vst.msk [vmem:[%s208 + $0x18] sm:$0xff] %vm1914, %v1885
      %1919 = vst.msk [vmem:[%s208 + $0x20] sm:$0xff] %vm1914, %v1886
      %1920 = vst.msk [vmem:[%s208 + $0x28] sm:$0xff] %vm1914, %v1887
      %1921 = vst.msk [vmem:[%s208 + $0x30] sm:$0xff] %vm1914, %v1888
      %1922 = vst.msk [vmem:[%s208 + $0x38] sm:$0xff] %vm1914, %v1889
      %1923 = vst.msk [vmem:[%s208 + $0x40] sm:$0xff] %vm1914, %v1890
      %1924 = vst.msk [vmem:[%s208 + $0x48] sm:$0xff] %vm1914, %v1891
      %1925 = vst.msk [vmem:[%s208 + $0x50] sm:$0xff] %vm1914, %v1892
      %1926 = vst.msk [vmem:[%s208 + $0x58] sm:$0xff] %vm1914, %v1893
      %1927 = vst.msk [vmem:[%s208 + $0x60] sm:$0xff] %vm1914, %v1894
      %1928 = vst.msk [vmem:[%s208 + $0x68] sm:$0xff] %vm1914, %v1895
      %1929 = vst.msk [vmem:[%s208 + $0x70] sm:$0xff] %vm1914, %v1896
      %1930 = vst.msk [vmem:[%s208 + $0x78] sm:$0xff] %vm1914, %v1897
      %1931 = vst.msk [vmem:[%s208 + $0x80] sm:$0xff] %vm1914, %v1898
      %1932 = vst.msk [vmem:[%s208 + $0x88] sm:$0xff] %vm1914, %v1899
      %1933 = vst.msk [vmem:[%s208 + $0x90] sm:$0xff] %vm1914, %v1900
      %1934 = vst.msk [vmem:[%s208 + $0x98] sm:$0xff] %vm1914, %v1901
      %1935 = vst.msk [vmem:[%s208 + $0xa0] sm:$0xff] %vm1914, %v1902
      %1936 = vst.msk [vmem:[%s208 + $0xa8] sm:$0xff] %vm1914, %v1903
      %1937 = vst.msk [vmem:[%s208 + $0xb0] sm:$0xff] %vm1914, %v1904
      %1938 = vst.msk [vmem:[%s208 + $0xb8] sm:$0xff] %vm1914, %v1905
      %1939 = vst.msk [vmem:[%s208 + $0xc0] sm:$0xff] %vm1914, %v1906
      %1940 = vst.msk [vmem:[%s208 + $0xc8] sm:$0xff] %vm1914, %v1907
      %1941 = vst.msk [vmem:[%s208 + $0xd0] sm:$0xff] %vm1914, %v1908
      %1942 = vst.msk [vmem:[%s208 + $0xd8] sm:$0xff] %vm1914, %v1909
      %1943 = vst.msk [vmem:[%s208 + $0xe0] sm:$0xff] %vm1914, %v1910
      %1944 = vst.msk [vmem:[%s208 + $0xe8] sm:$0xff] %vm1914, %v1911
      %1945 = vst.msk [vmem:[%s208 + $0xf0] sm:$0xff] %vm1914, %v1912
      %1946 = vst.msk [vmem:[%s208 + $0xf8] sm:$0xff] %vm1914, %v1913
      %v1947 = vsel %vm1914, %v1882, 0.0
      %v1948 = vsel %vm1914, %v1883, 0.0
      %v1949 = vadd.f32 %v1947, %v1948
      %v1950 = vsel %vm1914, %v1884, 0.0
      %v1951 = vadd.f32 %v1949, %v1950
      %v1952 = vsel %vm1914, %v1885, 0.0
      %v1953 = vadd.f32 %v1951, %v1952
      %v1954 = vsel %vm1914, %v1886, 0.0
      %v1955 = vadd.f32 %v1953, %v1954
      %v1956 = vsel %vm1914, %v1887, 0.0
      %v1957 = vadd.f32 %v1955, %v1956
      %v1958 = vsel %vm1914, %v1888, 0.0
      %v1959 = vadd.f32 %v1957, %v1958
      %v1960 = vsel %vm1914, %v1889, 0.0
      %v1961 = vadd.f32 %v1959, %v1960
      %v1962 = vsel %vm1914, %v1890, 0.0
      %v1963 = vadd.f32 %v1961, %v1962
      %v1964 = vsel %vm1914, %v1891, 0.0
      %v1965 = vadd.f32 %v1963, %v1964
      %v1966 = vsel %vm1914, %v1892, 0.0
      %v1967 = vadd.f32 %v1965, %v1966
      %v1968 = vsel %vm1914, %v1893, 0.0
      %v1969 = vadd.f32 %v1967, %v1968
      %v1970 = vsel %vm1914, %v1894, 0.0
      %v1971 = vadd.f32 %v1969, %v1970
      %v1972 = vsel %vm1914, %v1895, 0.0
      %v1973 = vadd.f32 %v1971, %v1972
      %v1974 = vsel %vm1914, %v1896, 0.0
      %v1975 = vadd.f32 %v1973, %v1974
      %v1976 = vsel %vm1914, %v1897, 0.0
      %v1977 = vadd.f32 %v1975, %v1976
      %v1978 = vsel %vm1914, %v1898, 0.0
      %v1979 = vadd.f32 %v1977, %v1978
      %v1980 = vsel %vm1914, %v1899, 0.0
      %v1981 = vadd.f32 %v1979, %v1980
      %v1982 = vsel %vm1914, %v1900, 0.0
      %v1983 = vadd.f32 %v1981, %v1982
      %v1984 = vsel %vm1914, %v1901, 0.0
      %v1985 = vadd.f32 %v1983, %v1984
      %v1986 = vsel %vm1914, %v1902, 0.0
      %v1987 = vadd.f32 %v1985, %v1986
      %v1988 = vsel %vm1914, %v1903, 0.0
      %v1989 = vadd.f32 %v1987, %v1988
      %v1990 = vsel %vm1914, %v1904, 0.0
      %v1991 = vadd.f32 %v1989, %v1990
      %v1992 = vsel %vm1914, %v1905, 0.0
      %v1993 = vadd.f32 %v1991, %v1992
      %v1994 = vsel %vm1914, %v1906, 0.0
      %v1995 = vadd.f32 %v1993, %v1994
      %v1996 = vsel %vm1914, %v1907, 0.0
      %v1997 = vadd.f32 %v1995, %v1996
      %v1998 = vsel %vm1914, %v1908, 0.0
      %v1999 = vadd.f32 %v1997, %v1998
      %v2000 = vsel %vm1914, %v1909, 0.0
      %v2001 = vadd.f32 %v1999, %v2000
      %v2002 = vsel %vm1914, %v1910, 0.0
      %v2003 = vadd.f32 %v2001, %v2002
      %v2004 = vsel %vm1914, %v1911, 0.0
      %v2005 = vadd.f32 %v2003, %v2004
      %v2006 = vsel %vm1914, %v1912, 0.0
      %v2007 = vadd.f32 %v2005, %v2006
      %v2008 = vsel %vm1914, %v1913, 0.0
      %v2009 = vadd.f32 %v2007, %v2008
      %v2010 = vrot.slane %v2009, 4
      %v2011 = vadd.f32 %v2009, %v2010
      %v2012 = vrot.slane %v2011, 2
      %v2013 = vadd.f32 %v2011, %v2012
      %v2014 = vrot.slane %v2013, 1
      %v2015 = vadd.f32 %v2013, %v2014
      %vm2016 = vcmask 24576
      %2017 = vst.msk [vmem:[%s211] sm:$0x1] %vm2016, %v2015
      %v2018 = vmul.f32 %v1882, %v1882
      %v2019 = vmul.f32 %v1883, %v1883
      %v2020 = vmul.f32 %v1884, %v1884
      %v2021 = vmul.f32 %v1885, %v1885
      %v2022 = vmul.f32 %v1886, %v1886
      %v2023 = vmul.f32 %v1887, %v1887
      %v2024 = vmul.f32 %v1888, %v1888
      %v2025 = vmul.f32 %v1889, %v1889
      %v2026 = vmul.f32 %v1890, %v1890
      %v2027 = vmul.f32 %v1891, %v1891
      %v2028 = vmul.f32 %v1892, %v1892
      %v2029 = vmul.f32 %v1893, %v1893
      %v2030 = vmul.f32 %v1894, %v1894
      %v2031 = vmul.f32 %v1895, %v1895
      %v2032 = vmul.f32 %v1896, %v1896
      %v2033 = vmul.f32 %v1897, %v1897
      %v2034 = vmul.f32 %v1898, %v1898
      %v2035 = vmul.f32 %v1899, %v1899
      %v2036 = vmul.f32 %v1900, %v1900
      %v2037 = vmul.f32 %v1901, %v1901
      %v2038 = vmul.f32 %v1902, %v1902
      %v2039 = vmul.f32 %v1903, %v1903
      %v2040 = vmul.f32 %v1904, %v1904
      %v2041 = vmul.f32 %v1905, %v1905
      %v2042 = vmul.f32 %v1906, %v1906
      %v2043 = vmul.f32 %v1907, %v1907
      %v2044 = vmul.f32 %v1908, %v1908
      %v2045 = vmul.f32 %v1909, %v1909
      %v2046 = vmul.f32 %v1910, %v1910
      %v2047 = vmul.f32 %v1911, %v1911
      %v2048 = vmul.f32 %v1912, %v1912
      %v2049 = vmul.f32 %v1913, %v1913
      %v2050 = vsel %vm1914, %v2018, 0.0
      %v2051 = vsel %vm1914, %v2019, 0.0
      %v2052 = vadd.f32 %v2050, %v2051
      %v2053 = vsel %vm1914, %v2020, 0.0
      %v2054 = vadd.f32 %v2052, %v2053
      %v2055 = vsel %vm1914, %v2021, 0.0
      %v2056 = vadd.f32 %v2054, %v2055
      %v2057 = vsel %vm1914, %v2022, 0.0
      %v2058 = vadd.f32 %v2056, %v2057
      %v2059 = vsel %vm1914, %v2023, 0.0
      %v2060 = vadd.f32 %v2058, %v2059
      %v2061 = vsel %vm1914, %v2024, 0.0
      %v2062 = vadd.f32 %v2060, %v2061
      %v2063 = vsel %vm1914, %v2025, 0.0
      %v2064 = vadd.f32 %v2062, %v2063
      %v2065 = vsel %vm1914, %v2026, 0.0
      %v2066 = vadd.f32 %v2064, %v2065
      %v2067 = vsel %vm1914, %v2027, 0.0
      %v2068 = vadd.f32 %v2066, %v2067
      %v2069 = vsel %vm1914, %v2028, 0.0
      %v2070 = vadd.f32 %v2068, %v2069
      %v2071 = vsel %vm1914, %v2029, 0.0
      %v2072 = vadd.f32 %v2070, %v2071
      %v2073 = vsel %vm1914, %v2030, 0.0
      %v2074 = vadd.f32 %v2072, %v2073
      %v2075 = vsel %vm1914, %v2031, 0.0
      %v2076 = vadd.f32 %v2074, %v2075
      %v2077 = vsel %vm1914, %v2032, 0.0
      %v2078 = vadd.f32 %v2076, %v2077
      %v2079 = vsel %vm1914, %v2033, 0.0
      %v2080 = vadd.f32 %v2078, %v2079
      %v2081 = vsel %vm1914, %v2034, 0.0
      %v2082 = vadd.f32 %v2080, %v2081
      %v2083 = vsel %vm1914, %v2035, 0.0
      %v2084 = vadd.f32 %v2082, %v2083
      %v2085 = vsel %vm1914, %v2036, 0.0
      %v2086 = vadd.f32 %v2084, %v2085
      %v2087 = vsel %vm1914, %v2037, 0.0
      %v2088 = vadd.f32 %v2086, %v2087
      %v2089 = vsel %vm1914, %v2038, 0.0
      %v2090 = vadd.f32 %v2088, %v2089
      %v2091 = vsel %vm1914, %v2039, 0.0
      %v2092 = vadd.f32 %v2090, %v2091
      %v2093 = vsel %vm1914, %v2040, 0.0
      %v2094 = vadd.f32 %v2092, %v2093
      %v2095 = vsel %vm1914, %v2041, 0.0
      %v2096 = vadd.f32 %v2094, %v2095
      %v2097 = vsel %vm1914, %v2042, 0.0
      %v2098 = vadd.f32 %v2096, %v2097
      %v2099 = vsel %vm1914, %v2043, 0.0
      %v2100 = vadd.f32 %v2098, %v2099
      %v2101 = vsel %vm1914, %v2044, 0.0
      %v2102 = vadd.f32 %v2100, %v2101
      %v2103 = vsel %vm1914, %v2045, 0.0
      %v2104 = vadd.f32 %v2102, %v2103
      %v2105 = vsel %vm1914, %v2046, 0.0
      %v2106 = vadd.f32 %v2104, %v2105
      %v2107 = vsel %vm1914, %v2047, 0.0
      %v2108 = vadd.f32 %v2106, %v2107
      %v2109 = vsel %vm1914, %v2048, 0.0
      %v2110 = vadd.f32 %v2108, %v2109
      %v2111 = vsel %vm1914, %v2049, 0.0
      %v2112 = vadd.f32 %v2110, %v2111
      %v2113 = vrot.slane %v2112, 4
      %v2114 = vadd.f32 %v2112, %v2113
      %v2115 = vrot.slane %v2114, 2
      %v2116 = vadd.f32 %v2114, %v2115
      %v2117 = vrot.slane %v2116, 1
      %v2118 = vadd.f32 %v2116, %v2117
      %2119 = vst.msk [vmem:[%s214] sm:$0x1] %vm2016, %v2118
      %p2120 = scmp.lt.s32.totalorder %s16, 1
      %s2121 = scalar_select %p2120, %s16, 1
      %s2122 = smul.addr %s2121, 32
      %s2123 = smul.addr %s2122, 8
      %s2124 = scalar_lea.vmem %s2, %s2123
      %p2125 = scmp.lt.s32.totalorder %s16, 1
      %s2126 = scalar_select %p2125, %s16, 1
      %s2127 = scalar_lea.vmem %s3, %s2126
      %p2128 = scmp.lt.s32.totalorder %s16, 1
      %s2129 = scalar_select %p2128, %s16, 1
      %s2130 = scalar_lea.vmem %s4, %s2129
      // Predicated region
      $region29: #{depthwise_separable_conv.3} parent=27 // pred_check
        %p2131 = pneg %p81
      $region30: #{depthwise_separable_conv.3} parent=27 // pred_check_branch
        %2133 = sbr.rel (%p2131) target = $region32
      $region31: #{depthwise_separable_conv.3} parent=27 // pred_region
        _
      $region32: #{depthwise_separable_conv.3} parent=27 // pred_fallthru
        _
      // Predicated region
      $region33: #{depthwise_separable_conv.3} parent=27 // pred_check
        %p2134 = pneg %p107
      $region34: #{depthwise_separable_conv.3} parent=27 // pred_check_branch
        %2136 = sbr.rel (%p2134) target = $region36
      $region35: #{depthwise_separable_conv.3} parent=27 // pred_region
        _
      $region36: #{depthwise_separable_conv.3} parent=27 // pred_fallthru
        _
      // Predicated region
      $region37: #{depthwise_separable_conv.3} parent=27 // pred_check
        %p2137 = pneg %p133
      $region38: #{depthwise_separable_conv.3} parent=27 // pred_check_branch
        %2139 = sbr.rel (%p2137) target = $region40
      $region39: #{depthwise_separable_conv.3} parent=27 // pred_region
        _
      $region40: #{depthwise_separable_conv.3} parent=27 // pred_fallthru
        _
    $region28: #{depthwise_separable_conv.3} parent=5 // pred_fallthru
      _
    %p2140 = scmp.le.s32.totalorder 2, %s11
    // Predicated region
    $region41: #{depthwise_separable_conv.3} parent=5 // pred_check
      %p2141 = pneg %p2140
    $region42: #{depthwise_separable_conv.3} parent=5 // pred_check_branch
      %2143 = sbr.rel (%p2141) target = $region44
    $region43: #{depthwise_separable_conv.3} parent=5 // pred_region
      %s2144 = ssub.s32 %s11, 2
      // Predicated region
      $region45: #{depthwise_separable_conv.3} parent=43 // pred_check
        %p2145 = pneg %p87
      $region46: #{depthwise_separable_conv.3} parent=43 // pred_check_branch
        %2147 = sbr.rel (%p2145) target = $region48
      $region47: #{depthwise_separable_conv.3} parent=43 // pred_region
        %p2148 = scmp.lt.s32.totalorder %s17, 1
        %s2149 = scalar_select %p2148, %s17, 1
        %s2150 = smul.addr %s2149, 32
        %s2151 = smul.addr %s2150, 8
        %s2152 = scalar_lea.vmem %s2, %s2151
      $region48: #{depthwise_separable_conv.3} parent=43 // pred_fallthru
        _
      // Predicated region
      $region49: #{depthwise_separable_conv.3} parent=43 // pred_check
        %p2153 = pneg %p113
      $region50: #{depthwise_separable_conv.3} parent=43 // pred_check_branch
        %2155 = sbr.rel (%p2153) target = $region52
      $region51: #{depthwise_separable_conv.3} parent=43 // pred_region
        %p2156 = scmp.lt.s32.totalorder %s17, 1
        %s2157 = scalar_select %p2156, %s17, 1
        %s2158 = scalar_lea.vmem %s3, %s2157
      $region52: #{depthwise_separable_conv.3} parent=43 // pred_fallthru
        _
      // Predicated region
      $region53: #{depthwise_separable_conv.3} parent=43 // pred_check
        %p2159 = pneg %p139
      $region54: #{depthwise_separable_conv.3} parent=43 // pred_check_branch
        %2161 = sbr.rel (%p2159) target = $region56
      $region55: #{depthwise_separable_conv.3} parent=43 // pred_region
        %p2162 = scmp.lt.s32.totalorder %s17, 1
        %s2163 = scalar_select %p2162, %s17, 1
        %s2164 = scalar_lea.vmem %s4, %s2163
      $region56: #{depthwise_separable_conv.3} parent=43 // pred_fallthru
        _
    $region44: #{depthwise_separable_conv.3} parent=5 // pred_fallthru
      _
  $region6: #{depthwise_separable_conv.3} parent=0 // loop_footer
    %s15 = sadd.s32 1, %s11
  $region7: #{depthwise_separable_conv.3} parent=0 // loop_footer_branch
    %10 = sbr.rel target = $region3
  $region8: #{depthwise_separable_conv.3} parent=0 // loop_exit
    _

</llo_original>
